<compile_context>
chip_gen: v6e
topology: v6e:2x2x1
jax: 0.10.0
libtpu: 0.0.40
codegen_flags: <defaults>
</compile_context>

<pallas_src>
import functools
import numpy as np
import jax
import jax.numpy as jnp
from jax import lax
from jax.experimental import pallas as pl
from jax.experimental.pallas import tpu as pltpu

C_OUT, KSZ = 20, 5
H_IN = W_IN = 28                      # 2880 = 20 * 12 * 12  => 28x28 inputs
H_CONV = W_CONV = H_IN - KSZ + 1      # 24
H_POOL = W_POOL = H_CONV // 2         # 12
FLAT = C_OUT * H_POOL * W_POOL        # 2880
TB = 8                                # images per grid step (batch tile)
LANE = 128


def easynet_fused_kernel(x5_ref, wband_ref, selh0_ref, selh1_ref,
                         selw0_ref, selw1_ref, wl3_ref, beff_ref, out_ref):
    """Fused conv(5x5, valid) + 2x2 max-pool + Linear for a tile of TB images.

    x5_ref:    (TB*24, 140)   bf16  shifted-row stack, rows b*24+h, cols kh*28+col
    wband_ref: (140, 480)     bf16  banded conv weight, cols c*24+w
    selh0/1:   (TB*12, TB*24) bf16  0/1 row selectors (even/odd conv row),
                                    output rows ordered i*TB + b
    selw0/1:   (480, 240)     bf16  0/1 col selectors (even/odd conv col)
    wl3_ref:   (12, 240, NCP) bf16  linear weight regrouped per pooled row i
    beff_ref:  (1, NCP)       f32   b_lin + conv-bias folded through the linear
    out_ref:   (TB, NCP)      f32   logits (lane-padded)
    """
    tb = out_ref.shape[0]

    # ---- convolution: one K=140 matmul, batch stacked into M -----------------
    acc = jnp.dot(x5_ref[...], wband_ref[...],
                  preferred_element_type=jnp.float32)            # (TB*24, 480)
    accb = acc.astype(jnp.bfloat16)

    # ---- 2x2 max-pool, height first (rows 24 -> 12 per image, rows -> i*TB+b)
    ph = jnp.maximum(
        jnp.dot(selh0_ref[...], accb, preferred_element_type=jnp.float32),
        jnp.dot(selh1_ref[...], accb, preferred_element_type=jnp.float32))
    phb = ph.astype(jnp.bfloat16)                                # (TB*12, 480)

    # ---- width pool (cols c*24+w -> c*12+j) -----------------------------------
    pooled = jnp.maximum(
        jnp.dot(phb, selw0_ref[...], preferred_element_type=jnp.float32),
        jnp.dot(phb, selw1_ref[...], preferred_element_type=jnp.float32))
    # pooled: (TB*12, 240) f32, rows i*TB + b, cols c*12 + j.
    # (conv bias is folded into beff: bias commutes with max-pool)

    # ---- fused Linear: logits[b] = sum_i pooled[i*TB + b, :] @ wl3[i] + beff --
    logits = jnp.zeros(out_ref.shape, jnp.float32)
    for i in range(H_POOL):
        blk = pooled[i * tb:(i + 1) * tb, :].astype(jnp.bfloat16)   # (TB, 240)
        logits = logits + jnp.dot(blk, wl3_ref[i],
                                  preferred_element_type=jnp.float32)
    out_ref[...] = logits + beff_ref[...]


def pack_params(w_conv, b_conv, w_lin, b_lin, tb=TB):
    """Host-side packing of PyTorch-layout parameters. Run ONCE, outside jit."""
    wc = np.asarray(w_conv, np.float32).reshape(C_OUT, KSZ, KSZ)
    bc = np.asarray(b_conv, np.float32)
    wl = np.asarray(w_lin, np.float32)                           # (n_classes, 2880)
    bl = np.asarray(b_lin, np.float32)
    n_classes = wl.shape[0]
    nc_pad = ((n_classes + LANE - 1) // LANE) * LANE

    # Banded conv weight for the K=140 matmul: wband[kh*28 + (w+kw), c*24 + w]
    wband = np.zeros((KSZ * W_IN, C_OUT * W_CONV), np.float32)
    for kh in range(KSZ):
        for kw in range(KSZ):
            for c in range(C_OUT):
                for w in range(W_CONV):
                    wband[kh * W_IN + w + kw, c * W_CONV + w] = wc[c, kh, kw]

    # Height-pool 0/1 row selectors; output rows ordered i*tb + b so the fused
    # Linear can take contiguous TB-row slices per pooled row i.
    selh0 = np.zeros((tb * H_POOL, tb * H_CONV), np.float32)
    selh1 = np.zeros_like(selh0)
    for b in range(tb):
        for i in range(H_POOL):
            selh0[i * tb + b, b * H_CONV + 2 * i] = 1.0
            selh1[i * tb + b, b * H_CONV + 2 * i + 1] = 1.0

    # Width-pool 0/1 column selectors: c*24 + {2j, 2j+1} -> c*12 + j
    selw0 = np.zeros((C_OUT * W_CONV, C_OUT * W_POOL), np.float32)
    selw1 = np.zeros_like(selw0)
    for c in range(C_OUT):
        for j in range(W_POOL):
            selw0[c * W_CONV + 2 * j, c * W_POOL + j] = 1.0
            selw1[c * W_CONV + 2 * j + 1, c * W_POOL + j] = 1.0

    # Linear weight regrouped per pooled row i (folds the NCHW flatten order
    # c*144 + i*12 + j into the weight): wl3[i, c*12 + j, o] = wl[o, c*144+i*12+j]
    wl4 = wl.reshape(n_classes, C_OUT, H_POOL, W_POOL)           # (o, c, i, j)
    wl3 = np.transpose(wl4, (2, 1, 3, 0)).reshape(H_POOL, C_OUT * W_POOL, n_classes)
    wl3p = np.zeros((H_POOL, C_OUT * W_POOL, nc_pad), np.float32)
    wl3p[:, :, :n_classes] = wl3

    # Conv bias commutes with max-pool -> fold its contribution into the bias.
    beff = bl + wl4.sum(axis=(2, 3)) @ bc                        # (n_classes,)
    beffp = np.zeros((1, nc_pad), np.float32)
    beffp[0, :n_classes] = beff

    return dict(
        wband=jnp.asarray(wband, jnp.bfloat16),
        selh0=jnp.asarray(selh0, jnp.bfloat16),
        selh1=jnp.asarray(selh1, jnp.bfloat16),
        selw0=jnp.asarray(selw0, jnp.bfloat16),
        selw1=jnp.asarray(selw1, jnp.bfloat16),
        wl3=jnp.asarray(wl3p, jnp.bfloat16),
        beff=jnp.asarray(beffp, jnp.float32),
    )


def easynet_forward(x_nchw, packed, *, n_classes):
    """Pure JAX/Pallas forward (jit-able). x_nchw: (N, 1, 28, 28)."""
    N = x_nchw.shape[0]
    nc_pad = packed["wl3"].shape[-1]
    grid_n = -(-N // TB)
    n_pad = grid_n * TB

    x = x_nchw[:, 0, :, :].astype(jnp.float32)                   # (N, 28, 28)
    if n_pad != N:
        x = jnp.pad(x, ((0, n_pad - N), (0, 0), (0, 0)))

    # Shifted-row stack for the single K=140 conv matmul:
    #   x5[n, h, kh*28 + col] = x[n, h + kh, col]
    x5 = jnp.concatenate([x[:, kh:kh + H_CONV, :] for kh in range(KSZ)],
                         axis=-1).astype(jnp.bfloat16)           # (n_pad, 24, 140)
    x5 = x5.reshape(n_pad * H_CONV, KSZ * W_IN)                  # rows b*24 + h

    logits = pl.pallas_call(
        easynet_fused_kernel,
        out_shape=jax.ShapeDtypeStruct((n_pad, nc_pad), jnp.float32),
        grid=(grid_n,),
        in_specs=[
            pl.BlockSpec((TB * H_CONV, KSZ * W_IN), lambda n: (n, 0)),
            pl.BlockSpec((KSZ * W_IN, C_OUT * W_CONV), lambda n: (0, 0)),
            pl.BlockSpec((TB * H_POOL, TB * H_CONV), lambda n: (0, 0)),
            pl.BlockSpec((TB * H_POOL, TB * H_CONV), lambda n: (0, 0)),
            pl.BlockSpec((C_OUT * W_CONV, C_OUT * W_POOL), lambda n: (0, 0)),
            pl.BlockSpec((C_OUT * W_CONV, C_OUT * W_POOL), lambda n: (0, 0)),
            pl.BlockSpec((H_POOL, C_OUT * W_POOL, nc_pad), lambda n: (0, 0, 0)),
            pl.BlockSpec((1, nc_pad), lambda n: (0, 0)),
        ],
        out_specs=pl.BlockSpec((TB, nc_pad), lambda n: (n, 0)),
        compiler_params=pltpu.CompilerParams(dimension_semantics=("parallel",)),
    )(x5, packed["wband"], packed["selh0"], packed["selh1"],
      packed["selw0"], packed["selw1"], packed["wl3"], packed["beff"])

    return logits[:N, :n_classes]


def reference_forward(x_nchw, w_conv, b_conv, w_lin, b_lin):
    conv = lax.conv_general_dilated(
        x_nchw.astype(jnp.float32), w_conv.astype(jnp.float32),
        window_strides=(1, 1), padding="VALID",
        dimension_numbers=("NCHW", "OIHW", "NCHW"),
        precision=lax.Precision.HIGHEST)
    conv = conv + b_conv[None, :, None, None]
    pooled = lax.reduce_window(conv, -jnp.inf, lax.max,
                               (1, 1, 2, 2), (1, 1, 2, 2), "VALID")
    flat = pooled.reshape(x_nchw.shape[0], -1)
    return jnp.dot(flat, w_lin.T, precision=lax.Precision.HIGHEST) + b_lin[None, :]


if __name__ == "__main__":
    n_classes = 10
    N = 2

    key = jax.random.PRNGKey(0)
    k1, k2, k3, k4, k5 = jax.random.split(key, 5)
    x = jax.random.normal(k1, (N, 1, H_IN, W_IN), jnp.float32)
    # parameters with nn.Conv2d / nn.Linear shapes
    w_conv = jax.random.normal(k2, (C_OUT, 1, KSZ, KSZ), jnp.float32) * 0.2
    b_conv = jax.random.normal(k3, (C_OUT,), jnp.float32) * 0.1
    w_lin = jax.random.normal(k4, (n_classes, FLAT), jnp.float32) / np.sqrt(FLAT)
    b_lin = jax.random.normal(k5, (n_classes,), jnp.float32) * 0.1

    packed = pack_params(w_conv, b_conv, w_lin, b_lin)   # once, outside the forward
    fwd = jax.jit(functools.partial(easynet_forward, n_classes=n_classes))

    logits = jax.block_until_ready(fwd(x, packed))

    ref = jax.block_until_ready(reference_forward(x, w_conv, b_conv, w_lin, b_lin))
    np.testing.assert_allclose(np.asarray(logits), np.asarray(ref),
                               rtol=5e-2, atol=5e-2)
    print("KERNEL_OK")
</pallas_src>

<mosaic_0001>
module attributes {stable_mosaic.version = 11 : i64} {
  func.func @easynet_fused_kernel(%arg0: i32, %arg1: memref<192x140xbf16, #tpu.memory_space<vmem>>, %arg2: memref<140x480xbf16, #tpu.memory_space<vmem>>, %arg3: memref<96x192xbf16, #tpu.memory_space<vmem>>, %arg4: memref<96x192xbf16, #tpu.memory_space<vmem>>, %arg5: memref<480x240xbf16, #tpu.memory_space<vmem>>, %arg6: memref<480x240xbf16, #tpu.memory_space<vmem>>, %arg7: memref<12x240x128xbf16, #tpu.memory_space<vmem>>, %arg8: memref<1x128xf32, #tpu.memory_space<vmem>>, %arg9: memref<8x128xf32, #tpu.memory_space<vmem>>) attributes {dimension_semantics = [#tpu.dimension_semantics<parallel>], iteration_bounds = array<i64: 1>, scalar_prefetch = 0 : i64, scratch_operands = 0 : i64, tpu.core_type = #tpu.core_type<tc>, window_params = [{transform_indices = @transform_0, window_bounds = array<i64: 192, 140>}, {pipeline_mode = #tpu.pipeline_mode<synchronous>, transform_indices = @transform_1, window_bounds = array<i64: 140, 480>}, {pipeline_mode = #tpu.pipeline_mode<synchronous>, transform_indices = @transform_2, window_bounds = array<i64: 96, 192>}, {pipeline_mode = #tpu.pipeline_mode<synchronous>, transform_indices = @transform_3, window_bounds = array<i64: 96, 192>}, {pipeline_mode = #tpu.pipeline_mode<synchronous>, transform_indices = @transform_4, window_bounds = array<i64: 480, 240>}, {pipeline_mode = #tpu.pipeline_mode<synchronous>, transform_indices = @transform_5, window_bounds = array<i64: 480, 240>}, {pipeline_mode = #tpu.pipeline_mode<synchronous>, transform_indices = @transform_6, window_bounds = array<i64: 12, 240, 128>}, {pipeline_mode = #tpu.pipeline_mode<synchronous>, transform_indices = @transform_7, window_bounds = array<i64: 1, 128>}, {transform_indices = @transform_8, window_bounds = array<i64: 8, 128>}]} {
    %c0 = arith.constant 0 : index
    %c0_0 = arith.constant 0 : index
    %0 = vector.load %arg1[%c0, %c0_0] : memref<192x140xbf16, #tpu.memory_space<vmem>>, vector<192x140xbf16>
    %c0_1 = arith.constant 0 : index
    %c0_2 = arith.constant 0 : index
    %1 = vector.load %arg2[%c0_1, %c0_2] : memref<140x480xbf16, #tpu.memory_space<vmem>>, vector<140x480xbf16>
    %cst = arith.constant dense<0.000000e+00> : vector<192x480xf32>
    %2 = tpu.matmul %0, %1, %cst {dimension_numbers = #tpu.dot_dimension_numbers<[1], [0], [0], [1], [0, 0, 1, 1], [], []>} : vector<192x140xbf16>, vector<140x480xbf16>, vector<192x480xf32> -> vector<192x480xf32>
    %3 = arith.truncf %2 : vector<192x480xf32> to vector<192x480xbf16>
    %c0_3 = arith.constant 0 : index
    %c0_4 = arith.constant 0 : index
    %4 = vector.load %arg3[%c0_3, %c0_4] : memref<96x192xbf16, #tpu.memory_space<vmem>>, vector<96x192xbf16>
    %cst_5 = arith.constant dense<0.000000e+00> : vector<96x480xf32>
    %5 = tpu.matmul %4, %3, %cst_5 {dimension_numbers = #tpu.dot_dimension_numbers<[1], [0], [0], [1], [0, 0, 1, 1], [], []>} : vector<96x192xbf16>, vector<192x480xbf16>, vector<96x480xf32> -> vector<96x480xf32>
    %c0_6 = arith.constant 0 : index
    %c0_7 = arith.constant 0 : index
    %6 = vector.load %arg4[%c0_6, %c0_7] : memref<96x192xbf16, #tpu.memory_space<vmem>>, vector<96x192xbf16>
    %cst_8 = arith.constant dense<0.000000e+00> : vector<96x480xf32>
    %7 = tpu.matmul %6, %3, %cst_8 {dimension_numbers = #tpu.dot_dimension_numbers<[1], [0], [0], [1], [0, 0, 1, 1], [], []>} : vector<96x192xbf16>, vector<192x480xbf16>, vector<96x480xf32> -> vector<96x480xf32>
    %8 = arith.maximumf %5, %7 : vector<96x480xf32>
    %9 = arith.truncf %8 : vector<96x480xf32> to vector<96x480xbf16>
    %c0_9 = arith.constant 0 : index
    %c0_10 = arith.constant 0 : index
    %10 = vector.load %arg5[%c0_9, %c0_10] : memref<480x240xbf16, #tpu.memory_space<vmem>>, vector<480x240xbf16>
    %cst_11 = arith.constant dense<0.000000e+00> : vector<96x240xf32>
    %11 = tpu.matmul %9, %10, %cst_11 {dimension_numbers = #tpu.dot_dimension_numbers<[1], [0], [0], [1], [0, 0, 1, 1], [], []>} : vector<96x480xbf16>, vector<480x240xbf16>, vector<96x240xf32> -> vector<96x240xf32>
    %c0_12 = arith.constant 0 : index
    %c0_13 = arith.constant 0 : index
    %12 = vector.load %arg6[%c0_12, %c0_13] : memref<480x240xbf16, #tpu.memory_space<vmem>>, vector<480x240xbf16>
    %cst_14 = arith.constant dense<0.000000e+00> : vector<96x240xf32>
    %13 = tpu.matmul %9, %12, %cst_14 {dimension_numbers = #tpu.dot_dimension_numbers<[1], [0], [0], [1], [0, 0, 1, 1], [], []>} : vector<96x480xbf16>, vector<480x240xbf16>, vector<96x240xf32> -> vector<96x240xf32>
    %14 = arith.maximumf %11, %13 : vector<96x240xf32>
    %cst_15 = arith.constant 0.000000e+00 : f32
    %15 = vector.broadcast %cst_15 : f32 to vector<8x128xf32>
    %16 = vector.extract_strided_slice %14 {offsets = [0, 0], sizes = [8, 240], strides = [1, 1]} : vector<96x240xf32> to vector<8x240xf32>
    %17 = arith.truncf %16 : vector<8x240xf32> to vector<8x240xbf16>
    %c0_16 = arith.constant 0 : index
    %c0_17 = arith.constant 0 : index
    %c0_18 = arith.constant 0 : index
    %18 = vector.load %arg7[%c0_16, %c0_17, %c0_18] : memref<12x240x128xbf16, #tpu.memory_space<vmem>>, vector<1x240x128xbf16>
    %19 = vector.shape_cast %18 : vector<1x240x128xbf16> to vector<240x128xbf16>
    %cst_19 = arith.constant dense<0.000000e+00> : vector<8x128xf32>
    %20 = tpu.matmul %17, %19, %cst_19 {dimension_numbers = #tpu.dot_dimension_numbers<[1], [0], [0], [1], [0, 0, 1, 1], [], []>} : vector<8x240xbf16>, vector<240x128xbf16>, vector<8x128xf32> -> vector<8x128xf32>
    %21 = arith.addf %15, %20 : vector<8x128xf32>
    %22 = vector.extract_strided_slice %14 {offsets = [8, 0], sizes = [8, 240], strides = [1, 1]} : vector<96x240xf32> to vector<8x240xf32>
    %23 = arith.truncf %22 : vector<8x240xf32> to vector<8x240xbf16>
    %c1 = arith.constant 1 : index
    %c0_20 = arith.constant 0 : index
    %c0_21 = arith.constant 0 : index
    %24 = vector.load %arg7[%c1, %c0_20, %c0_21] : memref<12x240x128xbf16, #tpu.memory_space<vmem>>, vector<1x240x128xbf16>
    %25 = vector.shape_cast %24 : vector<1x240x128xbf16> to vector<240x128xbf16>
    %cst_22 = arith.constant dense<0.000000e+00> : vector<8x128xf32>
    %26 = tpu.matmul %23, %25, %cst_22 {dimension_numbers = #tpu.dot_dimension_numbers<[1], [0], [0], [1], [0, 0, 1, 1], [], []>} : vector<8x240xbf16>, vector<240x128xbf16>, vector<8x128xf32> -> vector<8x128xf32>
    %27 = arith.addf %21, %26 : vector<8x128xf32>
    %28 = vector.extract_strided_slice %14 {offsets = [16, 0], sizes = [8, 240], strides = [1, 1]} : vector<96x240xf32> to vector<8x240xf32>
    %29 = arith.truncf %28 : vector<8x240xf32> to vector<8x240xbf16>
    %c2 = arith.constant 2 : index
    %c0_23 = arith.constant 0 : index
    %c0_24 = arith.constant 0 : index
    %30 = vector.load %arg7[%c2, %c0_23, %c0_24] : memref<12x240x128xbf16, #tpu.memory_space<vmem>>, vector<1x240x128xbf16>
    %31 = vector.shape_cast %30 : vector<1x240x128xbf16> to vector<240x128xbf16>
    %cst_25 = arith.constant dense<0.000000e+00> : vector<8x128xf32>
    %32 = tpu.matmul %29, %31, %cst_25 {dimension_numbers = #tpu.dot_dimension_numbers<[1], [0], [0], [1], [0, 0, 1, 1], [], []>} : vector<8x240xbf16>, vector<240x128xbf16>, vector<8x128xf32> -> vector<8x128xf32>
    %33 = arith.addf %27, %32 : vector<8x128xf32>
    %34 = vector.extract_strided_slice %14 {offsets = [24, 0], sizes = [8, 240], strides = [1, 1]} : vector<96x240xf32> to vector<8x240xf32>
    %35 = arith.truncf %34 : vector<8x240xf32> to vector<8x240xbf16>
    %c3 = arith.constant 3 : index
    %c0_26 = arith.constant 0 : index
    %c0_27 = arith.constant 0 : index
    %36 = vector.load %arg7[%c3, %c0_26, %c0_27] : memref<12x240x128xbf16, #tpu.memory_space<vmem>>, vector<1x240x128xbf16>
    %37 = vector.shape_cast %36 : vector<1x240x128xbf16> to vector<240x128xbf16>
    %cst_28 = arith.constant dense<0.000000e+00> : vector<8x128xf32>
    %38 = tpu.matmul %35, %37, %cst_28 {dimension_numbers = #tpu.dot_dimension_numbers<[1], [0], [0], [1], [0, 0, 1, 1], [], []>} : vector<8x240xbf16>, vector<240x128xbf16>, vector<8x128xf32> -> vector<8x128xf32>
    %39 = arith.addf %33, %38 : vector<8x128xf32>
    %40 = vector.extract_strided_slice %14 {offsets = [32, 0], sizes = [8, 240], strides = [1, 1]} : vector<96x240xf32> to vector<8x240xf32>
    %41 = arith.truncf %40 : vector<8x240xf32> to vector<8x240xbf16>
    %c4 = arith.constant 4 : index
    %c0_29 = arith.constant 0 : index
    %c0_30 = arith.constant 0 : index
    %42 = vector.load %arg7[%c4, %c0_29, %c0_30] : memref<12x240x128xbf16, #tpu.memory_space<vmem>>, vector<1x240x128xbf16>
    %43 = vector.shape_cast %42 : vector<1x240x128xbf16> to vector<240x128xbf16>
    %cst_31 = arith.constant dense<0.000000e+00> : vector<8x128xf32>
    %44 = tpu.matmul %41, %43, %cst_31 {dimension_numbers = #tpu.dot_dimension_numbers<[1], [0], [0], [1], [0, 0, 1, 1], [], []>} : vector<8x240xbf16>, vector<240x128xbf16>, vector<8x128xf32> -> vector<8x128xf32>
    %45 = arith.addf %39, %44 : vector<8x128xf32>
    %46 = vector.extract_strided_slice %14 {offsets = [40, 0], sizes = [8, 240], strides = [1, 1]} : vector<96x240xf32> to vector<8x240xf32>
    %47 = arith.truncf %46 : vector<8x240xf32> to vector<8x240xbf16>
    %c5 = arith.constant 5 : index
    %c0_32 = arith.constant 0 : index
    %c0_33 = arith.constant 0 : index
    %48 = vector.load %arg7[%c5, %c0_32, %c0_33] : memref<12x240x128xbf16, #tpu.memory_space<vmem>>, vector<1x240x128xbf16>
    %49 = vector.shape_cast %48 : vector<1x240x128xbf16> to vector<240x128xbf16>
    %cst_34 = arith.constant dense<0.000000e+00> : vector<8x128xf32>
    %50 = tpu.matmul %47, %49, %cst_34 {dimension_numbers = #tpu.dot_dimension_numbers<[1], [0], [0], [1], [0, 0, 1, 1], [], []>} : vector<8x240xbf16>, vector<240x128xbf16>, vector<8x128xf32> -> vector<8x128xf32>
    %51 = arith.addf %45, %50 : vector<8x128xf32>
    %52 = vector.extract_strided_slice %14 {offsets = [48, 0], sizes = [8, 240], strides = [1, 1]} : vector<96x240xf32> to vector<8x240xf32>
    %53 = arith.truncf %52 : vector<8x240xf32> to vector<8x240xbf16>
    %c6 = arith.constant 6 : index
    %c0_35 = arith.constant 0 : index
    %c0_36 = arith.constant 0 : index
    %54 = vector.load %arg7[%c6, %c0_35, %c0_36] : memref<12x240x128xbf16, #tpu.memory_space<vmem>>, vector<1x240x128xbf16>
    %55 = vector.shape_cast %54 : vector<1x240x128xbf16> to vector<240x128xbf16>
    %cst_37 = arith.constant dense<0.000000e+00> : vector<8x128xf32>
    %56 = tpu.matmul %53, %55, %cst_37 {dimension_numbers = #tpu.dot_dimension_numbers<[1], [0], [0], [1], [0, 0, 1, 1], [], []>} : vector<8x240xbf16>, vector<240x128xbf16>, vector<8x128xf32> -> vector<8x128xf32>
    %57 = arith.addf %51, %56 : vector<8x128xf32>
    %58 = vector.extract_strided_slice %14 {offsets = [56, 0], sizes = [8, 240], strides = [1, 1]} : vector<96x240xf32> to vector<8x240xf32>
    %59 = arith.truncf %58 : vector<8x240xf32> to vector<8x240xbf16>
    %c7 = arith.constant 7 : index
    %c0_38 = arith.constant 0 : index
    %c0_39 = arith.constant 0 : index
    %60 = vector.load %arg7[%c7, %c0_38, %c0_39] : memref<12x240x128xbf16, #tpu.memory_space<vmem>>, vector<1x240x128xbf16>
    %61 = vector.shape_cast %60 : vector<1x240x128xbf16> to vector<240x128xbf16>
    %cst_40 = arith.constant dense<0.000000e+00> : vector<8x128xf32>
    %62 = tpu.matmul %59, %61, %cst_40 {dimension_numbers = #tpu.dot_dimension_numbers<[1], [0], [0], [1], [0, 0, 1, 1], [], []>} : vector<8x240xbf16>, vector<240x128xbf16>, vector<8x128xf32> -> vector<8x128xf32>
    %63 = arith.addf %57, %62 : vector<8x128xf32>
    %64 = vector.extract_strided_slice %14 {offsets = [64, 0], sizes = [8, 240], strides = [1, 1]} : vector<96x240xf32> to vector<8x240xf32>
    %65 = arith.truncf %64 : vector<8x240xf32> to vector<8x240xbf16>
    %c8 = arith.constant 8 : index
    %c0_41 = arith.constant 0 : index
    %c0_42 = arith.constant 0 : index
    %66 = vector.load %arg7[%c8, %c0_41, %c0_42] : memref<12x240x128xbf16, #tpu.memory_space<vmem>>, vector<1x240x128xbf16>
    %67 = vector.shape_cast %66 : vector<1x240x128xbf16> to vector<240x128xbf16>
    %cst_43 = arith.constant dense<0.000000e+00> : vector<8x128xf32>
    %68 = tpu.matmul %65, %67, %cst_43 {dimension_numbers = #tpu.dot_dimension_numbers<[1], [0], [0], [1], [0, 0, 1, 1], [], []>} : vector<8x240xbf16>, vector<240x128xbf16>, vector<8x128xf32> -> vector<8x128xf32>
    %69 = arith.addf %63, %68 : vector<8x128xf32>
    %70 = vector.extract_strided_slice %14 {offsets = [72, 0], sizes = [8, 240], strides = [1, 1]} : vector<96x240xf32> to vector<8x240xf32>
    %71 = arith.truncf %70 : vector<8x240xf32> to vector<8x240xbf16>
    %c9 = arith.constant 9 : index
    %c0_44 = arith.constant 0 : index
    %c0_45 = arith.constant 0 : index
    %72 = vector.load %arg7[%c9, %c0_44, %c0_45] : memref<12x240x128xbf16, #tpu.memory_space<vmem>>, vector<1x240x128xbf16>
    %73 = vector.shape_cast %72 : vector<1x240x128xbf16> to vector<240x128xbf16>
    %cst_46 = arith.constant dense<0.000000e+00> : vector<8x128xf32>
    %74 = tpu.matmul %71, %73, %cst_46 {dimension_numbers = #tpu.dot_dimension_numbers<[1], [0], [0], [1], [0, 0, 1, 1], [], []>} : vector<8x240xbf16>, vector<240x128xbf16>, vector<8x128xf32> -> vector<8x128xf32>
    %75 = arith.addf %69, %74 : vector<8x128xf32>
    %76 = vector.extract_strided_slice %14 {offsets = [80, 0], sizes = [8, 240], strides = [1, 1]} : vector<96x240xf32> to vector<8x240xf32>
    %77 = arith.truncf %76 : vector<8x240xf32> to vector<8x240xbf16>
    %c10 = arith.constant 10 : index
    %c0_47 = arith.constant 0 : index
    %c0_48 = arith.constant 0 : index
    %78 = vector.load %arg7[%c10, %c0_47, %c0_48] : memref<12x240x128xbf16, #tpu.memory_space<vmem>>, vector<1x240x128xbf16>
    %79 = vector.shape_cast %78 : vector<1x240x128xbf16> to vector<240x128xbf16>
    %cst_49 = arith.constant dense<0.000000e+00> : vector<8x128xf32>
    %80 = tpu.matmul %77, %79, %cst_49 {dimension_numbers = #tpu.dot_dimension_numbers<[1], [0], [0], [1], [0, 0, 1, 1], [], []>} : vector<8x240xbf16>, vector<240x128xbf16>, vector<8x128xf32> -> vector<8x128xf32>
    %81 = arith.addf %75, %80 : vector<8x128xf32>
    %82 = vector.extract_strided_slice %14 {offsets = [88, 0], sizes = [8, 240], strides = [1, 1]} : vector<96x240xf32> to vector<8x240xf32>
    %83 = arith.truncf %82 : vector<8x240xf32> to vector<8x240xbf16>
    %c11 = arith.constant 11 : index
    %c0_50 = arith.constant 0 : index
    %c0_51 = arith.constant 0 : index
    %84 = vector.load %arg7[%c11, %c0_50, %c0_51] : memref<12x240x128xbf16, #tpu.memory_space<vmem>>, vector<1x240x128xbf16>
    %85 = vector.shape_cast %84 : vector<1x240x128xbf16> to vector<240x128xbf16>
    %cst_52 = arith.constant dense<0.000000e+00> : vector<8x128xf32>
    %86 = tpu.matmul %83, %85, %cst_52 {dimension_numbers = #tpu.dot_dimension_numbers<[1], [0], [0], [1], [0, 0, 1, 1], [], []>} : vector<8x240xbf16>, vector<240x128xbf16>, vector<8x128xf32> -> vector<8x128xf32>
    %87 = arith.addf %81, %86 : vector<8x128xf32>
    %c0_53 = arith.constant 0 : index
    %c0_54 = arith.constant 0 : index
    %88 = vector.load %arg8[%c0_53, %c0_54] : memref<1x128xf32, #tpu.memory_space<vmem>>, vector<1x128xf32>
    %89 = vector.broadcast %88 : vector<1x128xf32> to vector<8x128xf32>
    %90 = arith.addf %87, %89 : vector<8x128xf32>
    %c0_55 = arith.constant 0 : index
    %c0_56 = arith.constant 0 : index
    %91 = vector.load %arg9[%c0_55, %c0_56] : memref<8x128xf32, #tpu.memory_space<vmem>>, vector<8x128xf32>
    tpu.vector_store %arg9[%c0_55, %c0_56], %90 {strides = array<i32>} : memref<8x128xf32, #tpu.memory_space<vmem>>, vector<8x128xf32>,
    return
  }
  func.func @transform_0(%arg0: i32) -> (i32, i32) {
    %c0_i32 = arith.constant 0 : i32
    %c0_i32_0 = arith.constant 0 : i32
    return %arg0, %c0_i32 : i32, i32
  }
  func.func @transform_1(%arg0: i32) -> (i32, i32) {
    %c0_i32 = arith.constant 0 : i32
    %c0_i32_0 = arith.constant 0 : i32
    %c0_i32_1 = arith.constant 0 : i32
    return %c0_i32, %c0_i32_0 : i32, i32
  }
  func.func @transform_2(%arg0: i32) -> (i32, i32) {
    %c0_i32 = arith.constant 0 : i32
    %c0_i32_0 = arith.constant 0 : i32
    %c0_i32_1 = arith.constant 0 : i32
    return %c0_i32, %c0_i32_0 : i32, i32
  }
  func.func @transform_3(%arg0: i32) -> (i32, i32) {
    %c0_i32 = arith.constant 0 : i32
    %c0_i32_0 = arith.constant 0 : i32
    %c0_i32_1 = arith.constant 0 : i32
    return %c0_i32, %c0_i32_0 : i32, i32
  }
  func.func @transform_4(%arg0: i32) -> (i32, i32) {
    %c0_i32 = arith.constant 0 : i32
    %c0_i32_0 = arith.constant 0 : i32
    %c0_i32_1 = arith.constant 0 : i32
    return %c0_i32, %c0_i32_0 : i32, i32
  }
  func.func @transform_5(%arg0: i32) -> (i32, i32) {
    %c0_i32 = arith.constant 0 : i32
    %c0_i32_0 = arith.constant 0 : i32
    %c0_i32_1 = arith.constant 0 : i32
    return %c0_i32, %c0_i32_0 : i32, i32
  }
  func.func @transform_6(%arg0: i32) -> (i32, i32, i32) {
    %c0_i32 = arith.constant 0 : i32
    %c0_i32_0 = arith.constant 0 : i32
    %c0_i32_1 = arith.constant 0 : i32
    %c0_i32_2 = arith.constant 0 : i32
    return %c0_i32, %c0_i32_0, %c0_i32_1 : i32, i32, i32
  }
  func.func @transform_7(%arg0: i32) -> (i32, i32) {
    %c0_i32 = arith.constant 0 : i32
    %c0_i32_0 = arith.constant 0 : i32
    %c0_i32_1 = arith.constant 0 : i32
    return %c0_i32, %c0_i32_0 : i32, i32
  }
  func.func @transform_8(%arg0: i32) -> (i32, i32) {
    %c0_i32 = arith.constant 0 : i32
    %c0_i32_0 = arith.constant 0 : i32
    return %arg0, %c0_i32 : i32, i32
  }
}

</mosaic_0001>

<llo_original>
// kernel: easynet_forward.1
$region0: #{easynet_forward.1}
  #allocation0 [shape = 'u32[]', space=smem, size = 0x4, offset = 0x4, fixed_abs, tag = 'smem constant byte address 0x4 - core index']
  #allocation1 [shape = 'u32[144,128]{1,0:T(1,128)}', space=vmem, size = 0x12000, scoped, tag = 'internal scratch']
  %s0 = inlined_call_operand.vmem [shape: bf16[192,140], index: 0, kind: input, shape index: {}]
  %s1 = inlined_call_operand.vmem [shape: bf16[140,480], index: 1, kind: input, shape index: {}]
  %s2 = inlined_call_operand.vmem [shape: bf16[96,192], index: 2, kind: input, shape index: {}]
  %s3 = inlined_call_operand.hbm [shape: bf16[96,192], index: 3, kind: input, shape index: {}]
  %s4 = inlined_call_operand.vmem [shape: bf16[480,240], index: 4, kind: input, shape index: {}]
  %s5 = inlined_call_operand.vmem [shape: bf16[480,240], index: 5, kind: input, shape index: {}]
  %s6 = inlined_call_operand.vmem [shape: bf16[12,240,128], index: 6, kind: input, shape index: {}]
  %s7 = inlined_call_operand.vmem [shape: f32[1,128], index: 7, kind: input, shape index: {}]
  %s8 = inlined_call_operand.vmem [shape: f32[8,128], index: 8, kind: output, shape index: {}]
  %s9 = sld [smem:[#allocation0]]
  $region46: #{easynet_forward.1} parent=0
    _
  %s11 = ssub.s32 1, %s9
  %s12 = scalar_select 0, %s11, %s9
  $region1: #{easynet_forward.1} parent=0
    #allocation2 [shape = 'u8[49152]{0}', space=vmem, size = 0xc000, scoped, tag = 'input window, operand 3, single buffered']
    #allocation3 [shape = 's32[1]{0}', space=sflag, size = 0x4, scoped, tag = 'scoped memory for easynet_forward.1']
    %13 = vsyncpa [#allocation3], 0
    // Predicated region
    $region2: #{easynet_forward.1} parent=1 // pred_check
      _
    $region3: #{easynet_forward.1} parent=1 // pred_check_branch
      %15 = sbr.rel (0) target = $region5
    $region4: #{easynet_forward.1} parent=1 // pred_region
      _
    $region5: #{easynet_forward.1} parent=1 // pred_fallthru
      _
    // Predicated region
    $region6: #{easynet_forward.1} parent=1 // pred_check
      _
    $region7: #{easynet_forward.1} parent=1 // pred_check_branch
      %17 = sbr.rel (0) target = $region9
    $region8: #{easynet_forward.1} parent=1 // pred_region
      _
    $region9: #{easynet_forward.1} parent=1 // pred_fallthru
      _
    // Predicated region
    $region10: #{easynet_forward.1} parent=1 // pred_check
      _
    $region11: #{easynet_forward.1} parent=1 // pred_check_branch
      %19 = sbr.rel (0) target = $region13
    $region12: #{easynet_forward.1} parent=1 // pred_region
      _
    $region13: #{easynet_forward.1} parent=1 // pred_fallthru
      _
    // Predicated region
    $region14: #{easynet_forward.1} parent=1 // pred_check
      _
    $region15: #{easynet_forward.1} parent=1 // pred_check_branch
      %21 = sbr.rel (0) target = $region17
    $region16: #{easynet_forward.1} parent=1 // pred_region
      %s23 = ssub.s32 1536, 1536
      %24 = vsyncadd [#allocation3], %s23
      %s25 = sshll.u32 [#allocation2], 4
      %s26 = int_to_ptr.vmem [resolvable:$true] %s25
      %31 = dma.hbm_to_vmem [thread:$0]  %s3, 1536, %s26, [#allocation3], 128, 128, 8
    $region17: #{easynet_forward.1} parent=1 // pred_fallthru
      _
    // Predicated region
    $region18: #{easynet_forward.1} parent=1 // pred_check
      _
    $region19: #{easynet_forward.1} parent=1 // pred_check_branch
      %33 = sbr.rel (0) target = $region21
    $region20: #{easynet_forward.1} parent=1 // pred_region
      _
    $region21: #{easynet_forward.1} parent=1 // pred_fallthru
      _
    // Predicated region
    $region22: #{easynet_forward.1} parent=1 // pred_check
      _
    $region23: #{easynet_forward.1} parent=1 // pred_check_branch
      %35 = sbr.rel (0) target = $region25
    $region24: #{easynet_forward.1} parent=1 // pred_region
      _
    $region25: #{easynet_forward.1} parent=1 // pred_fallthru
      _
    // Predicated region
    $region26: #{easynet_forward.1} parent=1 // pred_check
      _
    $region27: #{easynet_forward.1} parent=1 // pred_check_branch
      %37 = sbr.rel (0) target = $region29
    $region28: #{easynet_forward.1} parent=1 // pred_region
      _
    $region29: #{easynet_forward.1} parent=1 // pred_fallthru
      _
    // Predicated region
    $region30: #{easynet_forward.1} parent=1 // pred_check
      _
    $region31: #{easynet_forward.1} parent=1 // pred_check_branch
      %39 = sbr.rel (0) target = $region33
    $region32: #{easynet_forward.1} parent=1 // pred_region
      _
    $region33: #{easynet_forward.1} parent=1 // pred_fallthru
      _
    // Predicated region
    $region34: #{easynet_forward.1} parent=1 // pred_check
      _
    $region35: #{easynet_forward.1} parent=1 // pred_check_branch
      %41 = sbr.rel (0) target = $region37
    $region36: #{easynet_forward.1} parent=1 // pred_region
      %42 = dma.done [#allocation3], 1536
    $region37: #{easynet_forward.1} parent=1 // pred_fallthru
      _
    %v44 = vld [vmem:[%s0] sm:$0xff]
    %v45 = vld [vmem:[%s0 + $0x8] sm:$0xff]
    %v46 = vld [vmem:[%s0 + $0x10] sm:$0xff]
    %v47 = vld [vmem:[%s0 + $0x18] sm:$0xff]
    %v48 = vld [vmem:[%s0 + $0x20] sm:$0xff]
    %v49 = vld [vmem:[%s0 + $0x28] sm:$0xff]
    %v50 = vld [vmem:[%s0 + $0x30] sm:$0xff]
    %v51 = vld [vmem:[%s0 + $0x38] sm:$0xff]
    %v52 = vld [vmem:[%s0 + $0x40] sm:$0xff]
    %v53 = vld [vmem:[%s0 + $0x48] sm:$0xff]
    %v54 = vld [vmem:[%s0 + $0x50] sm:$0xff]
    %v55 = vld [vmem:[%s0 + $0x58] sm:$0xff]
    %v56 = vld [vmem:[%s0 + $0x60] sm:$0xff]
    %v57 = vld [vmem:[%s0 + $0x68] sm:$0xff]
    %v58 = vld [vmem:[%s0 + $0x70] sm:$0xff]
    %v59 = vld [vmem:[%s0 + $0x78] sm:$0xff]
    %v60 = vld [vmem:[%s0 + $0x80] sm:$0xff]
    %v61 = vld [vmem:[%s0 + $0x88] sm:$0xff]
    %v62 = vld [vmem:[%s0 + $0x90] sm:$0xff]
    %v63 = vld [vmem:[%s0 + $0x98] sm:$0xff]
    %v64 = vld [vmem:[%s0 + $0xa0] sm:$0xff]
    %v65 = vld [vmem:[%s0 + $0xa8] sm:$0xff]
    %v66 = vld [vmem:[%s0 + $0xb0] sm:$0xff]
    %v67 = vld [vmem:[%s0 + $0xb8] sm:$0xff]
    %v68 = vld [vmem:[%s1] sm:$0xff]
    %v69 = vld [vmem:[%s1 + $0x8] sm:$0xff]
    %v70 = vld [vmem:[%s1 + $0x10] sm:$0xff]
    %v71 = vld [vmem:[%s1 + $0x18] sm:$0xff]
    %v72 = vld [vmem:[%s1 + $0x20] sm:$0xff]
    %v73 = vld [vmem:[%s1 + $0x28] sm:$0xff]
    %v74 = vld [vmem:[%s1 + $0x30] sm:$0xff]
    %v75 = vld [vmem:[%s1 + $0x38] sm:$0xff]
    %v76 = vld [vmem:[%s1 + $0x40] sm:$0xff]
    %v77 = vld [vmem:[%s1 + $0x48] sm:$0xff]
    %v78 = vld [vmem:[%s1 + $0x50] sm:$0xff]
    %v79 = vld [vmem:[%s1 + $0x58] sm:$0xff]
    %v80 = vld [vmem:[%s1 + $0x60] sm:$0xff]
    %v81 = vld [vmem:[%s1 + $0x68] sm:$0xff]
    %v82 = vld [vmem:[%s1 + $0x70] sm:$0xff]
    %v83 = vld [vmem:[%s1 + $0x78] sm:$0xff]
    %v84 = vld [vmem:[%s1 + $0x80] sm:$0xff]
    %v85 = vld [vmem:[%s1 + $0x88] sm:$0xff]
    %v86 = vld [vmem:[%s1 + $0x90] sm:$0xff]
    %v87 = vld [vmem:[%s1 + $0x98] sm:$0xff]
    %v88 = vld [vmem:[%s1 + $0xa0] sm:$0xff]
    %v89 = vld [vmem:[%s1 + $0xa8] sm:$0xff]
    %v90 = vld [vmem:[%s1 + $0xb0] sm:$0xff]
    %v91 = vld [vmem:[%s1 + $0xb8] sm:$0xff]
    %v92 = vld [vmem:[%s1 + $0xc0] sm:$0xff]
    %v93 = vld [vmem:[%s1 + $0xc8] sm:$0xff]
    %v94 = vld [vmem:[%s1 + $0xd0] sm:$0xff]
    %v95 = vld [vmem:[%s1 + $0xd8] sm:$0xff]
    %v96 = vld [vmem:[%s1 + $0xe0] sm:$0xff]
    %v97 = vld [vmem:[%s1 + $0xe8] sm:$0xff]
    %v98 = vld [vmem:[%s1 + $0xf0] sm:$0xff]
    %v99 = vld [vmem:[%s1 + $0xf8] sm:$0xff]
    %v100 = vld [vmem:[%s1 + $0x100] sm:$0xff]
    %v101 = vld [vmem:[%s1 + $0x108] sm:$0xff]
    %v102 = vld [vmem:[%s1 + $0x110] sm:$0x33]
    %v103 = vld [vmem:[%s1 + $0x118] sm:$0x33]
    %v128 = vunpack.c.l.b16 %v44
    %v129 = vunpack.c.h.b16 %v44
    %v130 = vunpack.c.l.b16 %v45
    %v131 = vunpack.c.h.b16 %v45
    %v132 = vunpack.c.l.b16 %v46
    %v133 = vunpack.c.h.b16 %v46
    %v134 = vunpack.c.l.b16 %v47
    %v135 = vunpack.c.h.b16 %v47
    %v136 = vunpack.c.l.b16 %v48
    %v137 = vunpack.c.h.b16 %v48
    %v138 = vunpack.c.l.b16 %v49
    %v139 = vunpack.c.h.b16 %v49
    %v140 = vunpack.c.l.b16 %v50
    %v141 = vunpack.c.h.b16 %v50
    %v142 = vunpack.c.l.b16 %v51
    %v143 = vunpack.c.h.b16 %v51
    %v144 = vunpack.c.l.b16 %v52
    %v145 = vunpack.c.h.b16 %v52
    %v146 = vunpack.c.l.b16 %v53
    %v147 = vunpack.c.h.b16 %v53
    %v148 = vunpack.c.l.b16 %v54
    %v149 = vunpack.c.h.b16 %v54
    %v150 = vunpack.c.l.b16 %v55
    %v151 = vunpack.c.h.b16 %v55
    %v152 = vunpack.c.l.b16 %v56
    %v153 = vunpack.c.h.b16 %v56
    %v154 = vunpack.c.l.b16 %v57
    %v155 = vunpack.c.h.b16 %v57
    %v156 = vunpack.c.l.b16 %v58
    %v157 = vunpack.c.h.b16 %v58
    %v158 = vunpack.c.l.b16 %v59
    %v159 = vunpack.c.h.b16 %v59
    %v160 = vunpack.c.l.b16 %v60
    %v161 = vunpack.c.h.b16 %v60
    %v162 = vunpack.c.l.b16 %v61
    %v163 = vunpack.c.h.b16 %v61
    %v164 = vunpack.c.l.b16 %v62
    %v165 = vunpack.c.h.b16 %v62
    %v166 = vunpack.c.l.b16 %v63
    %v167 = vunpack.c.h.b16 %v63
    %v168 = vunpack.c.l.b16 %v64
    %v169 = vunpack.c.h.b16 %v64
    %v170 = vunpack.c.l.b16 %v65
    %v171 = vunpack.c.h.b16 %v65
    %v172 = vunpack.c.l.b16 %v66
    %v173 = vunpack.c.h.b16 %v66
    %v174 = vunpack.c.l.b16 %v67
    %v175 = vunpack.c.h.b16 %v67
    %v176 = vpack.c.b16 %v130, %v128
    %v177 = vpack.c.b16 %v131, %v129
    %v178 = vpack.c.b16 %v134, %v132
    %v179 = vpack.c.b16 %v135, %v133
    %v180 = vpack.c.b16 %v138, %v136
    %v181 = vpack.c.b16 %v139, %v137
    %v182 = vpack.c.b16 %v142, %v140
    %v183 = vpack.c.b16 %v143, %v141
    %v184 = vpack.c.b16 %v146, %v144
    %v185 = vpack.c.b16 %v147, %v145
    %v186 = vpack.c.b16 %v150, %v148
    %v187 = vpack.c.b16 %v151, %v149
    %v188 = vpack.c.b16 %v154, %v152
    %v189 = vpack.c.b16 %v155, %v153
    %v190 = vpack.c.b16 %v158, %v156
    %v191 = vpack.c.b16 %v159, %v157
    %v192 = vpack.c.b16 %v162, %v160
    %v193 = vpack.c.b16 %v163, %v161
    %v194 = vpack.c.b16 %v166, %v164
    %v195 = vpack.c.b16 %v167, %v165
    %v196 = vpack.c.b16 %v170, %v168
    %v197 = vpack.c.b16 %v171, %v169
    %v198 = vpack.c.b16 %v174, %v172
    %v199 = vpack.c.b16 %v175, %v173
    %v248 = vunpack.c.l.b16 %v68
    %v249 = vunpack.c.h.b16 %v68
    %v250 = vunpack.c.l.b16 %v69
    %v251 = vunpack.c.h.b16 %v69
    %v252 = vunpack.c.l.b16 %v70
    %v253 = vunpack.c.h.b16 %v70
    %v254 = vunpack.c.l.b16 %v71
    %v255 = vunpack.c.h.b16 %v71
    %v256 = vunpack.c.l.b16 %v72
    %v257 = vunpack.c.h.b16 %v72
    %v258 = vunpack.c.l.b16 %v73
    %v259 = vunpack.c.h.b16 %v73
    %v260 = vunpack.c.l.b16 %v74
    %v261 = vunpack.c.h.b16 %v74
    %v262 = vunpack.c.l.b16 %v75
    %v263 = vunpack.c.h.b16 %v75
    %v264 = vunpack.c.l.b16 %v76
    %v265 = vunpack.c.h.b16 %v76
    %v266 = vunpack.c.l.b16 %v77
    %v267 = vunpack.c.h.b16 %v77
    %v268 = vunpack.c.l.b16 %v78
    %v269 = vunpack.c.h.b16 %v78
    %v270 = vunpack.c.l.b16 %v79
    %v271 = vunpack.c.h.b16 %v79
    %v272 = vunpack.c.l.b16 %v80
    %v273 = vunpack.c.h.b16 %v80
    %v274 = vunpack.c.l.b16 %v81
    %v275 = vunpack.c.h.b16 %v81
    %v276 = vunpack.c.l.b16 %v82
    %v277 = vunpack.c.h.b16 %v82
    %v278 = vunpack.c.l.b16 %v83
    %v279 = vunpack.c.h.b16 %v83
    %v280 = vunpack.c.l.b16 %v84
    %v281 = vunpack.c.h.b16 %v84
    %v282 = vunpack.c.l.b16 %v85
    %v283 = vunpack.c.h.b16 %v85
    %v284 = vunpack.c.l.b16 %v86
    %v285 = vunpack.c.h.b16 %v86
    %v286 = vunpack.c.l.b16 %v87
    %v287 = vunpack.c.h.b16 %v87
    %v288 = vunpack.c.l.b16 %v88
    %v289 = vunpack.c.h.b16 %v88
    %v290 = vunpack.c.l.b16 %v89
    %v291 = vunpack.c.h.b16 %v89
    %v292 = vunpack.c.l.b16 %v90
    %v293 = vunpack.c.h.b16 %v90
    %v294 = vunpack.c.l.b16 %v91
    %v295 = vunpack.c.h.b16 %v91
    %v296 = vunpack.c.l.b16 %v92
    %v297 = vunpack.c.h.b16 %v92
    %v298 = vunpack.c.l.b16 %v93
    %v299 = vunpack.c.h.b16 %v93
    %v300 = vunpack.c.l.b16 %v94
    %v301 = vunpack.c.h.b16 %v94
    %v302 = vunpack.c.l.b16 %v95
    %v303 = vunpack.c.h.b16 %v95
    %v304 = vunpack.c.l.b16 %v96
    %v305 = vunpack.c.h.b16 %v96
    %v306 = vunpack.c.l.b16 %v97
    %v307 = vunpack.c.h.b16 %v97
    %v308 = vunpack.c.l.b16 %v98
    %v309 = vunpack.c.h.b16 %v98
    %v310 = vunpack.c.l.b16 %v99
    %v311 = vunpack.c.h.b16 %v99
    %v312 = vunpack.c.l.b16 %v100
    %v313 = vunpack.c.h.b16 %v100
    %v314 = vunpack.c.l.b16 %v101
    %v315 = vunpack.c.h.b16 %v101
    %v316 = vunpack.c.l.b16 %v102
    %v317 = vunpack.c.h.b16 %v102
    %v318 = vunpack.c.l.b16 %v103
    %v319 = vunpack.c.h.b16 %v103
    %v320 = vpack.c.b16 %v252, %v248
    %v321 = vpack.c.b16 %v253, %v249
    %v322 = vpack.c.b16 %v254, %v250
    %v323 = vpack.c.b16 %v255, %v251
    %v324 = vpack.c.b16 %v260, %v256
    %v325 = vpack.c.b16 %v261, %v257
    %v326 = vpack.c.b16 %v262, %v258
    %v327 = vpack.c.b16 %v263, %v259
    %v328 = vpack.c.b16 %v268, %v264
    %v329 = vpack.c.b16 %v269, %v265
    %v330 = vpack.c.b16 %v270, %v266
    %v331 = vpack.c.b16 %v271, %v267
    %v332 = vpack.c.b16 %v276, %v272
    %v333 = vpack.c.b16 %v277, %v273
    %v334 = vpack.c.b16 %v278, %v274
    %v335 = vpack.c.b16 %v279, %v275
    %v336 = vpack.c.b16 %v284, %v280
    %v337 = vpack.c.b16 %v285, %v281
    %v338 = vpack.c.b16 %v286, %v282
    %v339 = vpack.c.b16 %v287, %v283
    %v340 = vpack.c.b16 %v292, %v288
    %v341 = vpack.c.b16 %v293, %v289
    %v342 = vpack.c.b16 %v294, %v290
    %v343 = vpack.c.b16 %v295, %v291
    %v344 = vpack.c.b16 %v300, %v296
    %v345 = vpack.c.b16 %v301, %v297
    %v346 = vpack.c.b16 %v302, %v298
    %v347 = vpack.c.b16 %v303, %v299
    %v348 = vpack.c.b16 %v308, %v304
    %v349 = vpack.c.b16 %v309, %v305
    %v350 = vpack.c.b16 %v310, %v306
    %v351 = vpack.c.b16 %v311, %v307
    %v352 = vpack.c.b16 %v316, %v312
    %v353 = vpack.c.b16 %v317, %v313
    %v354 = vpack.c.b16 %v318, %v314
    %v355 = vpack.c.b16 %v319, %v315
    %vm388 = vcmask 97280
    %v390 = vsel %vm388, %v177, 0
    %v393 = vsel %vm388, %v179, 0
    %v396 = vsel %vm388, %v181, 0
    %v399 = vsel %vm388, %v183, 0
    %v402 = vsel %vm388, %v185, 0
    %v405 = vsel %vm388, %v187, 0
    %v408 = vsel %vm388, %v189, 0
    %v411 = vsel %vm388, %v191, 0
    %v414 = vsel %vm388, %v193, 0
    %v417 = vsel %vm388, %v195, 0
    %v420 = vsel %vm388, %v197, 0
    %v423 = vsel %vm388, %v199, 0
    %vm425 = vcmask 1045504
    %v427 = vsel %vm425, %v352, 0
    %v430 = vsel %vm425, %v353, 0
    %v433 = vsel %vm425, %v354, 0
    %v436 = vsel %vm425, %v355, 0
    %438 = vmatprep.subr.bf16.mxu0 %v349
    %439 = vmatpush1.bf16.msra.mxu0 %v348
    %440 = vmatprep.subr.bf16.mxu0 %v345
    %441 = vmatpush1.bf16.msra.mxu0 %v344
    %442 = vmatprep.subr.bf16.mxu0 %v341
    %443 = vmatpush1.bf16.msra.mxu0 %v340
    %444 = vmatprep.subr.bf16.mxu0 %v337
    %445 = vmatpush1.bf16.msra.mxu0 %v336
    %446 = vmatprep.subr.bf16.mxu0 %v333
    %447 = vmatpush1.bf16.msra.mxu0 %v332
    %448 = vmatprep.subr.bf16.mxu0 %v329
    %449 = vmatpush1.bf16.msra.mxu0 %v328
    %450 = vmatprep.subr.bf16.mxu0 %v325
    %451 = vmatpush1.bf16.msra.mxu0 %v324
    %452 = vmatprep.subr.bf16.mxu0 %v321
    %453 = vmatpush1.bf16.msra.mxu0 %v320
    %454 = vmatprep.subr.bf16.mxu0 0
    %455 = vmatpush2.bf16.msra.mxu0 0
    %456 = vmatprep.subr.bf16.mxu0 0
    %457 = vmatpush2.bf16.msra.mxu0 0
    %458 = vmatprep.subr.bf16.mxu0 0
    %459 = vmatpush2.bf16.msra.mxu0 0
    %460 = vmatprep.subr.bf16.mxu0 0
    %461 = vmatpush2.bf16.msra.mxu0 0
    %462 = vmatprep.subr.bf16.mxu0 0
    %463 = vmatpush2.bf16.msra.mxu0 0
    %464 = vmatprep.subr.bf16.mxu0 0
    %465 = vmatpush2.bf16.msra.mxu0 0
    %466 = vmatprep.subr.bf16.mxu0 0
    %467 = vmatpush2.bf16.msra.mxu0 0
    %468 = vmatprep.subr.bf16.mxu0 %v430
    %469 = vmatpush2.bf16.msra.mxu0 %v427
    %470 = vmatprep.mubr.bf16.mxu0 %v390
    %471 = vmatmul.mubr.bf16.gmra.mxu0 %v176
    %v472 = vpop.f32.mrf.mxu0
    %v473 = vadd.f32 0.0, %v472
    %v474 = vpop.f32.mrf.mxu0
    %v475 = vadd.f32 0.0, %v474
    %v476 = vpop.f32.mrf.mxu0
    %v477 = vadd.f32 0.0, %v476
    %v478 = vpop.f32.mrf.mxu0
    %v479 = vadd.f32 0.0, %v478
    %480 = vmatprep.mubr.bf16.mxu0 %v393
    %481 = vmatmul.mubr.bf16.gmra.mxu0 %v178
    %v482 = vpop.f32.mrf.mxu0
    %v483 = vadd.f32 0.0, %v482
    %v484 = vpop.f32.mrf.mxu0
    %v485 = vadd.f32 0.0, %v484
    %v486 = vpop.f32.mrf.mxu0
    %v487 = vadd.f32 0.0, %v486
    %v488 = vpop.f32.mrf.mxu0
    %v489 = vadd.f32 0.0, %v488
    %490 = vmatprep.mubr.bf16.mxu0 %v396
    %491 = vmatmul.mubr.bf16.gmra.mxu0 %v180
    %v492 = vpop.f32.mrf.mxu0
    %v493 = vadd.f32 0.0, %v492
    %v494 = vpop.f32.mrf.mxu0
    %v495 = vadd.f32 0.0, %v494
    %v496 = vpop.f32.mrf.mxu0
    %v497 = vadd.f32 0.0, %v496
    %v498 = vpop.f32.mrf.mxu0
    %v499 = vadd.f32 0.0, %v498
    %500 = vmatprep.mubr.bf16.mxu0 %v399
    %501 = vmatmul.mubr.bf16.gmra.mxu0 %v182
    %v502 = vpop.f32.mrf.mxu0
    %v503 = vadd.f32 0.0, %v502
    %v504 = vpop.f32.mrf.mxu0
    %v505 = vadd.f32 0.0, %v504
    %v506 = vpop.f32.mrf.mxu0
    %v507 = vadd.f32 0.0, %v506
    %v508 = vpop.f32.mrf.mxu0
    %v509 = vadd.f32 0.0, %v508
    %510 = vmatprep.mubr.bf16.mxu0 %v402
    %511 = vmatmul.mubr.bf16.gmra.mxu0 %v184
    %v512 = vpop.f32.mrf.mxu0
    %v513 = vadd.f32 0.0, %v512
    %v514 = vpop.f32.mrf.mxu0
    %v515 = vadd.f32 0.0, %v514
    %v516 = vpop.f32.mrf.mxu0
    %v517 = vadd.f32 0.0, %v516
    %v518 = vpop.f32.mrf.mxu0
    %v519 = vadd.f32 0.0, %v518
    %520 = vmatprep.mubr.bf16.mxu0 %v405
    %521 = vmatmul.mubr.bf16.gmra.mxu0 %v186
    %v522 = vpop.f32.mrf.mxu0
    %v523 = vadd.f32 0.0, %v522
    %v524 = vpop.f32.mrf.mxu0
    %v525 = vadd.f32 0.0, %v524
    %v526 = vpop.f32.mrf.mxu0
    %v527 = vadd.f32 0.0, %v526
    %v528 = vpop.f32.mrf.mxu0
    %v529 = vadd.f32 0.0, %v528
    %530 = vmatprep.mubr.bf16.mxu0 %v408
    %531 = vmatmul.mubr.bf16.gmra.mxu0 %v188
    %v532 = vpop.f32.mrf.mxu0
    %v533 = vadd.f32 0.0, %v532
    %v534 = vpop.f32.mrf.mxu0
    %v535 = vadd.f32 0.0, %v534
    %v536 = vpop.f32.mrf.mxu0
    %v537 = vadd.f32 0.0, %v536
    %v538 = vpop.f32.mrf.mxu0
    %v539 = vadd.f32 0.0, %v538
    %540 = vmatprep.mubr.bf16.mxu0 %v411
    %541 = vmatmul.mubr.bf16.gmra.mxu0 %v190
    %v542 = vpop.f32.mrf.mxu0
    %v543 = vadd.f32 0.0, %v542
    %v544 = vpop.f32.mrf.mxu0
    %v545 = vadd.f32 0.0, %v544
    %v546 = vpop.f32.mrf.mxu0
    %v547 = vadd.f32 0.0, %v546
    %v548 = vpop.f32.mrf.mxu0
    %v549 = vadd.f32 0.0, %v548
    %550 = vmatprep.mubr.bf16.mxu0 %v414
    %551 = vmatmul.mubr.bf16.gmra.mxu0 %v192
    %v552 = vpop.f32.mrf.mxu0
    %v553 = vadd.f32 0.0, %v552
    %v554 = vpop.f32.mrf.mxu0
    %v555 = vadd.f32 0.0, %v554
    %v556 = vpop.f32.mrf.mxu0
    %v557 = vadd.f32 0.0, %v556
    %v558 = vpop.f32.mrf.mxu0
    %v559 = vadd.f32 0.0, %v558
    %560 = vmatprep.mubr.bf16.mxu0 %v417
    %561 = vmatmul.mubr.bf16.gmra.mxu0 %v194
    %v562 = vpop.f32.mrf.mxu0
    %v563 = vadd.f32 0.0, %v562
    %v564 = vpop.f32.mrf.mxu0
    %v565 = vadd.f32 0.0, %v564
    %v566 = vpop.f32.mrf.mxu0
    %v567 = vadd.f32 0.0, %v566
    %v568 = vpop.f32.mrf.mxu0
    %v569 = vadd.f32 0.0, %v568
    %570 = vmatprep.mubr.bf16.mxu0 %v420
    %571 = vmatmul.mubr.bf16.gmra.mxu0 %v196
    %v572 = vpop.f32.mrf.mxu0
    %v573 = vadd.f32 0.0, %v572
    %v574 = vpop.f32.mrf.mxu0
    %v575 = vadd.f32 0.0, %v574
    %v576 = vpop.f32.mrf.mxu0
    %v577 = vadd.f32 0.0, %v576
    %v578 = vpop.f32.mrf.mxu0
    %v579 = vadd.f32 0.0, %v578
    %580 = vmatprep.mubr.bf16.mxu0 %v423
    %581 = vmatmul.mubr.bf16.gmra.mxu0 %v198
    %v582 = vpop.f32.mrf.mxu0
    %v583 = vadd.f32 0.0, %v582
    %v584 = vpop.f32.mrf.mxu0
    %v585 = vadd.f32 0.0, %v584
    %v586 = vpop.f32.mrf.mxu0
    %v587 = vadd.f32 0.0, %v586
    %v588 = vpop.f32.mrf.mxu0
    %v589 = vadd.f32 0.0, %v588
    %590 = vdwg.mxu0
    %591 = vmatprep.subr.bf16.mxu0 %v351
    %592 = vmatpush1.bf16.msra.mxu0 %v350
    %593 = vmatprep.subr.bf16.mxu0 %v347
    %594 = vmatpush1.bf16.msra.mxu0 %v346
    %595 = vmatprep.subr.bf16.mxu0 %v343
    %596 = vmatpush1.bf16.msra.mxu0 %v342
    %597 = vmatprep.subr.bf16.mxu0 %v339
    %598 = vmatpush1.bf16.msra.mxu0 %v338
    %599 = vmatprep.subr.bf16.mxu0 %v335
    %600 = vmatpush1.bf16.msra.mxu0 %v334
    %601 = vmatprep.subr.bf16.mxu0 %v331
    %602 = vmatpush1.bf16.msra.mxu0 %v330
    %603 = vmatprep.subr.bf16.mxu0 %v327
    %604 = vmatpush1.bf16.msra.mxu0 %v326
    %605 = vmatprep.subr.bf16.mxu0 %v323
    %606 = vmatpush1.bf16.msra.mxu0 %v322
    %607 = vmatprep.subr.bf16.mxu0 0
    %608 = vmatpush2.bf16.msra.mxu0 0
    %609 = vmatprep.subr.bf16.mxu0 0
    %610 = vmatpush2.bf16.msra.mxu0 0
    %611 = vmatprep.subr.bf16.mxu0 0
    %612 = vmatpush2.bf16.msra.mxu0 0
    %613 = vmatprep.subr.bf16.mxu0 0
    %614 = vmatpush2.bf16.msra.mxu0 0
    %615 = vmatprep.subr.bf16.mxu0 0
    %616 = vmatpush2.bf16.msra.mxu0 0
    %617 = vmatprep.subr.bf16.mxu0 0
    %618 = vmatpush2.bf16.msra.mxu0 0
    %619 = vmatprep.subr.bf16.mxu0 0
    %620 = vmatpush2.bf16.msra.mxu0 0
    %621 = vmatprep.subr.bf16.mxu0 %v436
    %622 = vmatpush2.bf16.msra.mxu0 %v433
    %623 = vmatprep.mubr.bf16.mxu0 %v390
    %624 = vmatmul.mubr.bf16.gmra.mxu0 %v176
    %v625 = vpop.f32.mrf.mxu0
    %v626 = vadd.f32 0.0, %v625
    %v627 = vpop.f32.mrf.mxu0
    %v628 = vadd.f32 0.0, %v627
    %v629 = vpop.f32.mrf.mxu0
    %v630 = vadd.f32 0.0, %v629
    %v631 = vpop.f32.mrf.mxu0
    %v632 = vadd.f32 0.0, %v631
    %633 = vmatprep.mubr.bf16.mxu0 %v393
    %634 = vmatmul.mubr.bf16.gmra.mxu0 %v178
    %v635 = vpop.f32.mrf.mxu0
    %v636 = vadd.f32 0.0, %v635
    %v637 = vpop.f32.mrf.mxu0
    %v638 = vadd.f32 0.0, %v637
    %v639 = vpop.f32.mrf.mxu0
    %v640 = vadd.f32 0.0, %v639
    %v641 = vpop.f32.mrf.mxu0
    %v642 = vadd.f32 0.0, %v641
    %643 = vmatprep.mubr.bf16.mxu0 %v396
    %644 = vmatmul.mubr.bf16.gmra.mxu0 %v180
    %v645 = vpop.f32.mrf.mxu0
    %v646 = vadd.f32 0.0, %v645
    %v647 = vpop.f32.mrf.mxu0
    %v648 = vadd.f32 0.0, %v647
    %v649 = vpop.f32.mrf.mxu0
    %v650 = vadd.f32 0.0, %v649
    %v651 = vpop.f32.mrf.mxu0
    %v652 = vadd.f32 0.0, %v651
    %653 = vmatprep.mubr.bf16.mxu0 %v399
    %654 = vmatmul.mubr.bf16.gmra.mxu0 %v182
    %v655 = vpop.f32.mrf.mxu0
    %v656 = vadd.f32 0.0, %v655
    %v657 = vpop.f32.mrf.mxu0
    %v658 = vadd.f32 0.0, %v657
    %v659 = vpop.f32.mrf.mxu0
    %v660 = vadd.f32 0.0, %v659
    %v661 = vpop.f32.mrf.mxu0
    %v662 = vadd.f32 0.0, %v661
    %663 = vmatprep.mubr.bf16.mxu0 %v402
    %664 = vmatmul.mubr.bf16.gmra.mxu0 %v184
    %v665 = vpop.f32.mrf.mxu0
    %v666 = vadd.f32 0.0, %v665
    %v667 = vpop.f32.mrf.mxu0
    %v668 = vadd.f32 0.0, %v667
    %v669 = vpop.f32.mrf.mxu0
    %v670 = vadd.f32 0.0, %v669
    %v671 = vpop.f32.mrf.mxu0
    %v672 = vadd.f32 0.0, %v671
    %673 = vmatprep.mubr.bf16.mxu0 %v405
    %674 = vmatmul.mubr.bf16.gmra.mxu0 %v186
    %v675 = vpop.f32.mrf.mxu0
    %v676 = vadd.f32 0.0, %v675
    %v677 = vpop.f32.mrf.mxu0
    %v678 = vadd.f32 0.0, %v677
    %v679 = vpop.f32.mrf.mxu0
    %v680 = vadd.f32 0.0, %v679
    %v681 = vpop.f32.mrf.mxu0
    %v682 = vadd.f32 0.0, %v681
    %683 = vmatprep.mubr.bf16.mxu0 %v408
    %684 = vmatmul.mubr.bf16.gmra.mxu0 %v188
    %v685 = vpop.f32.mrf.mxu0
    %v686 = vadd.f32 0.0, %v685
    %v687 = vpop.f32.mrf.mxu0
    %v688 = vadd.f32 0.0, %v687
    %v689 = vpop.f32.mrf.mxu0
    %v690 = vadd.f32 0.0, %v689
    %v691 = vpop.f32.mrf.mxu0
    %v692 = vadd.f32 0.0, %v691
    %693 = vmatprep.mubr.bf16.mxu0 %v411
    %694 = vmatmul.mubr.bf16.gmra.mxu0 %v190
    %v695 = vpop.f32.mrf.mxu0
    %v696 = vadd.f32 0.0, %v695
    %v697 = vpop.f32.mrf.mxu0
    %v698 = vadd.f32 0.0, %v697
    %v699 = vpop.f32.mrf.mxu0
    %v700 = vadd.f32 0.0, %v699
    %v701 = vpop.f32.mrf.mxu0
    %v702 = vadd.f32 0.0, %v701
    %703 = vmatprep.mubr.bf16.mxu0 %v414
    %704 = vmatmul.mubr.bf16.gmra.mxu0 %v192
    %v705 = vpop.f32.mrf.mxu0
    %v706 = vadd.f32 0.0, %v705
    %v707 = vpop.f32.mrf.mxu0
    %v708 = vadd.f32 0.0, %v707
    %v709 = vpop.f32.mrf.mxu0
    %v710 = vadd.f32 0.0, %v709
    %v711 = vpop.f32.mrf.mxu0
    %v712 = vadd.f32 0.0, %v711
    %713 = vmatprep.mubr.bf16.mxu0 %v417
    %714 = vmatmul.mubr.bf16.gmra.mxu0 %v194
    %v715 = vpop.f32.mrf.mxu0
    %v716 = vadd.f32 0.0, %v715
    %v717 = vpop.f32.mrf.mxu0
    %v718 = vadd.f32 0.0, %v717
    %v719 = vpop.f32.mrf.mxu0
    %v720 = vadd.f32 0.0, %v719
    %v721 = vpop.f32.mrf.mxu0
    %v722 = vadd.f32 0.0, %v721
    %723 = vmatprep.mubr.bf16.mxu0 %v420
    %724 = vmatmul.mubr.bf16.gmra.mxu0 %v196
    %v725 = vpop.f32.mrf.mxu0
    %v726 = vadd.f32 0.0, %v725
    %v727 = vpop.f32.mrf.mxu0
    %v728 = vadd.f32 0.0, %v727
    %v729 = vpop.f32.mrf.mxu0
    %v730 = vadd.f32 0.0, %v729
    %v731 = vpop.f32.mrf.mxu0
    %v732 = vadd.f32 0.0, %v731
    %733 = vmatprep.mubr.bf16.mxu0 %v423
    %734 = vmatmul.mubr.bf16.gmra.mxu0 %v198
    %v735 = vpop.f32.mrf.mxu0
    %v736 = vadd.f32 0.0, %v735
    %v737 = vpop.f32.mrf.mxu0
    %v738 = vadd.f32 0.0, %v737
    %v739 = vpop.f32.mrf.mxu0
    %v740 = vadd.f32 0.0, %v739
    %v741 = vpop.f32.mrf.mxu0
    %v742 = vadd.f32 0.0, %v741
    %743 = vdwg.mxu0
    %v744 = vpack.c.bf16 %v477, %v473
    %v745 = vpack.c.bf16 %v479, %v475
    %v746 = vpack.c.bf16 %v630, %v626
    %v747 = vpack.c.bf16 %v632, %v628
    %v748 = vpack.c.bf16 %v487, %v483
    %v749 = vpack.c.bf16 %v489, %v485
    %v750 = vpack.c.bf16 %v640, %v636
    %v751 = vpack.c.bf16 %v642, %v638
    %v752 = vpack.c.bf16 %v497, %v493
    %v753 = vpack.c.bf16 %v499, %v495
    %v754 = vpack.c.bf16 %v650, %v646
    %v755 = vpack.c.bf16 %v652, %v648
    %v756 = vpack.c.bf16 %v507, %v503
    %v757 = vpack.c.bf16 %v509, %v505
    %v758 = vpack.c.bf16 %v660, %v656
    %v759 = vpack.c.bf16 %v662, %v658
    %v760 = vpack.c.bf16 %v517, %v513
    %v761 = vpack.c.bf16 %v519, %v515
    %v762 = vpack.c.bf16 %v670, %v666
    %v763 = vpack.c.bf16 %v672, %v668
    %v764 = vpack.c.bf16 %v527, %v523
    %v765 = vpack.c.bf16 %v529, %v525
    %v766 = vpack.c.bf16 %v680, %v676
    %v767 = vpack.c.bf16 %v682, %v678
    %v768 = vpack.c.bf16 %v537, %v533
    %v769 = vpack.c.bf16 %v539, %v535
    %v770 = vpack.c.bf16 %v690, %v686
    %v771 = vpack.c.bf16 %v692, %v688
    %v772 = vpack.c.bf16 %v547, %v543
    %v773 = vpack.c.bf16 %v549, %v545
    %v774 = vpack.c.bf16 %v700, %v696
    %v775 = vpack.c.bf16 %v702, %v698
    %v776 = vpack.c.bf16 %v557, %v553
    %v777 = vpack.c.bf16 %v559, %v555
    %v778 = vpack.c.bf16 %v710, %v706
    %v779 = vpack.c.bf16 %v712, %v708
    %v780 = vpack.c.bf16 %v567, %v563
    %v781 = vpack.c.bf16 %v569, %v565
    %v782 = vpack.c.bf16 %v720, %v716
    %v783 = vpack.c.bf16 %v722, %v718
    %v784 = vpack.c.bf16 %v577, %v573
    %v785 = vpack.c.bf16 %v579, %v575
    %v786 = vpack.c.bf16 %v730, %v726
    %v787 = vpack.c.bf16 %v732, %v728
    %v788 = vpack.c.bf16 %v587, %v583
    %v789 = vpack.c.bf16 %v589, %v585
    %v790 = vpack.c.bf16 %v740, %v736
    %v791 = vpack.c.bf16 %v742, %v738
    %v792 = vld [vmem:[%s2] sm:$0xff]
    %v793 = vld [vmem:[%s2 + $0x8] sm:$0xff]
    %v794 = vld [vmem:[%s2 + $0x10] sm:$0xff]
    %v795 = vld [vmem:[%s2 + $0x18] sm:$0xff]
    %v796 = vld [vmem:[%s2 + $0x20] sm:$0xff]
    %v797 = vld [vmem:[%s2 + $0x28] sm:$0xff]
    %v798 = vld [vmem:[%s2 + $0x30] sm:$0xff]
    %v799 = vld [vmem:[%s2 + $0x38] sm:$0xff]
    %v800 = vld [vmem:[%s2 + $0x40] sm:$0xff]
    %v801 = vld [vmem:[%s2 + $0x48] sm:$0xff]
    %v802 = vld [vmem:[%s2 + $0x50] sm:$0xff]
    %v803 = vld [vmem:[%s2 + $0x58] sm:$0xff]
    %v816 = vunpack.c.l.b16 %v792
    %v817 = vunpack.c.h.b16 %v792
    %v818 = vunpack.c.l.b16 %v793
    %v819 = vunpack.c.h.b16 %v793
    %v820 = vunpack.c.l.b16 %v794
    %v821 = vunpack.c.h.b16 %v794
    %v822 = vunpack.c.l.b16 %v795
    %v823 = vunpack.c.h.b16 %v795
    %v824 = vunpack.c.l.b16 %v796
    %v825 = vunpack.c.h.b16 %v796
    %v826 = vunpack.c.l.b16 %v797
    %v827 = vunpack.c.h.b16 %v797
    %v828 = vunpack.c.l.b16 %v798
    %v829 = vunpack.c.h.b16 %v798
    %v830 = vunpack.c.l.b16 %v799
    %v831 = vunpack.c.h.b16 %v799
    %v832 = vunpack.c.l.b16 %v800
    %v833 = vunpack.c.h.b16 %v800
    %v834 = vunpack.c.l.b16 %v801
    %v835 = vunpack.c.h.b16 %v801
    %v836 = vunpack.c.l.b16 %v802
    %v837 = vunpack.c.h.b16 %v802
    %v838 = vunpack.c.l.b16 %v803
    %v839 = vunpack.c.h.b16 %v803
    %v840 = vpack.c.b16 %v818, %v816
    %v841 = vpack.c.b16 %v819, %v817
    %v842 = vpack.c.b16 %v822, %v820
    %v843 = vpack.c.b16 %v823, %v821
    %v844 = vpack.c.b16 %v826, %v824
    %v845 = vpack.c.b16 %v827, %v825
    %v846 = vpack.c.b16 %v830, %v828
    %v847 = vpack.c.b16 %v831, %v829
    %v848 = vpack.c.b16 %v834, %v832
    %v849 = vpack.c.b16 %v835, %v833
    %v850 = vpack.c.b16 %v838, %v836
    %v851 = vpack.c.b16 %v839, %v837
    %vm858 = vcmask 523264
    %v860 = vsel %vm858, %v841, 0
    %v863 = vsel %vm858, %v843, 0
    %v866 = vsel %vm858, %v845, 0
    %v869 = vsel %vm858, %v847, 0
    %v872 = vsel %vm858, %v849, 0
    %v875 = vsel %vm858, %v851, 0
    %877 = vmatprep.subr.bf16.mxu0 %v773
    %878 = vmatpush1.bf16.msra.mxu0 %v772
    %879 = vmatprep.subr.bf16.mxu0 %v769
    %880 = vmatpush1.bf16.msra.mxu0 %v768
    %881 = vmatprep.subr.bf16.mxu0 %v765
    %882 = vmatpush1.bf16.msra.mxu0 %v764
    %883 = vmatprep.subr.bf16.mxu0 %v761
    %884 = vmatpush1.bf16.msra.mxu0 %v760
    %885 = vmatprep.subr.bf16.mxu0 %v757
    %886 = vmatpush1.bf16.msra.mxu0 %v756
    %887 = vmatprep.subr.bf16.mxu0 %v753
    %888 = vmatpush1.bf16.msra.mxu0 %v752
    %889 = vmatprep.subr.bf16.mxu0 %v749
    %890 = vmatpush1.bf16.msra.mxu0 %v748
    %891 = vmatprep.subr.bf16.mxu0 %v745
    %892 = vmatpush1.bf16.msra.mxu0 %v744
    %893 = vmatprep.subr.bf16.mxu0 0
    %894 = vmatpush2.bf16.msra.mxu0 0
    %895 = vmatprep.subr.bf16.mxu0 0
    %896 = vmatpush2.bf16.msra.mxu0 0
    %897 = vmatprep.subr.bf16.mxu0 0
    %898 = vmatpush2.bf16.msra.mxu0 0
    %899 = vmatprep.subr.bf16.mxu0 0
    %900 = vmatpush2.bf16.msra.mxu0 0
    %901 = vmatprep.subr.bf16.mxu0 %v789
    %902 = vmatpush2.bf16.msra.mxu0 %v788
    %903 = vmatprep.subr.bf16.mxu0 %v785
    %904 = vmatpush2.bf16.msra.mxu0 %v784
    %905 = vmatprep.subr.bf16.mxu0 %v781
    %906 = vmatpush2.bf16.msra.mxu0 %v780
    %907 = vmatprep.subr.bf16.mxu0 %v777
    %908 = vmatpush2.bf16.msra.mxu0 %v776
    %909 = vmatprep.mubr.bf16.mxu0 %v860
    %910 = vmatmul.mubr.bf16.gmra.mxu0 %v840
    %v911 = vpop.f32.mrf.mxu0
    %v912 = vadd.f32 0.0, %v911
    %v913 = vpop.f32.mrf.mxu0
    %v914 = vadd.f32 0.0, %v913
    %v915 = vpop.f32.mrf.mxu0
    %v916 = vadd.f32 0.0, %v915
    %v917 = vpop.f32.mrf.mxu0
    %v918 = vadd.f32 0.0, %v917
    %919 = vmatprep.mubr.bf16.mxu0 %v863
    %920 = vmatmul.mubr.bf16.gmra.mxu0 %v842
    %v921 = vpop.f32.mrf.mxu0
    %v922 = vadd.f32 0.0, %v921
    %v923 = vpop.f32.mrf.mxu0
    %v924 = vadd.f32 0.0, %v923
    %v925 = vpop.f32.mrf.mxu0
    %v926 = vadd.f32 0.0, %v925
    %v927 = vpop.f32.mrf.mxu0
    %v928 = vadd.f32 0.0, %v927
    %929 = vmatprep.mubr.bf16.mxu0 %v866
    %930 = vmatmul.mubr.bf16.gmra.mxu0 %v844
    %v931 = vpop.f32.mrf.mxu0
    %v932 = vadd.f32 0.0, %v931
    %v933 = vpop.f32.mrf.mxu0
    %v934 = vadd.f32 0.0, %v933
    %v935 = vpop.f32.mrf.mxu0
    %v936 = vadd.f32 0.0, %v935
    %v937 = vpop.f32.mrf.mxu0
    %v938 = vadd.f32 0.0, %v937
    %939 = vmatprep.mubr.bf16.mxu0 %v869
    %940 = vmatmul.mubr.bf16.gmra.mxu0 %v846
    %v941 = vpop.f32.mrf.mxu0
    %v942 = vadd.f32 0.0, %v941
    %v943 = vpop.f32.mrf.mxu0
    %v944 = vadd.f32 0.0, %v943
    %v945 = vpop.f32.mrf.mxu0
    %v946 = vadd.f32 0.0, %v945
    %v947 = vpop.f32.mrf.mxu0
    %v948 = vadd.f32 0.0, %v947
    %949 = vmatprep.mubr.bf16.mxu0 %v872
    %950 = vmatmul.mubr.bf16.gmra.mxu0 %v848
    %v951 = vpop.f32.mrf.mxu0
    %v952 = vadd.f32 0.0, %v951
    %v953 = vpop.f32.mrf.mxu0
    %v954 = vadd.f32 0.0, %v953
    %v955 = vpop.f32.mrf.mxu0
    %v956 = vadd.f32 0.0, %v955
    %v957 = vpop.f32.mrf.mxu0
    %v958 = vadd.f32 0.0, %v957
    %959 = vmatprep.mubr.bf16.mxu0 %v875
    %960 = vmatmul.mubr.bf16.gmra.mxu0 %v850
    %v961 = vpop.f32.mrf.mxu0
    %v962 = vadd.f32 0.0, %v961
    %v963 = vpop.f32.mrf.mxu0
    %v964 = vadd.f32 0.0, %v963
    %v965 = vpop.f32.mrf.mxu0
    %v966 = vadd.f32 0.0, %v965
    %v967 = vpop.f32.mrf.mxu0
    %v968 = vadd.f32 0.0, %v967
    %969 = vdwg.mxu0
    %970 = vmatprep.subr.bf16.mxu0 %v775
    %971 = vmatpush1.bf16.msra.mxu0 %v774
    %972 = vmatprep.subr.bf16.mxu0 %v771
    %973 = vmatpush1.bf16.msra.mxu0 %v770
    %974 = vmatprep.subr.bf16.mxu0 %v767
    %975 = vmatpush1.bf16.msra.mxu0 %v766
    %976 = vmatprep.subr.bf16.mxu0 %v763
    %977 = vmatpush1.bf16.msra.mxu0 %v762
    %978 = vmatprep.subr.bf16.mxu0 %v759
    %979 = vmatpush1.bf16.msra.mxu0 %v758
    %980 = vmatprep.subr.bf16.mxu0 %v755
    %981 = vmatpush1.bf16.msra.mxu0 %v754
    %982 = vmatprep.subr.bf16.mxu0 %v751
    %983 = vmatpush1.bf16.msra.mxu0 %v750
    %984 = vmatprep.subr.bf16.mxu0 %v747
    %985 = vmatpush1.bf16.msra.mxu0 %v746
    %986 = vmatprep.subr.bf16.mxu0 0
    %987 = vmatpush2.bf16.msra.mxu0 0
    %988 = vmatprep.subr.bf16.mxu0 0
    %989 = vmatpush2.bf16.msra.mxu0 0
    %990 = vmatprep.subr.bf16.mxu0 0
    %991 = vmatpush2.bf16.msra.mxu0 0
    %992 = vmatprep.subr.bf16.mxu0 0
    %993 = vmatpush2.bf16.msra.mxu0 0
    %994 = vmatprep.subr.bf16.mxu0 %v791
    %995 = vmatpush2.bf16.msra.mxu0 %v790
    %996 = vmatprep.subr.bf16.mxu0 %v787
    %997 = vmatpush2.bf16.msra.mxu0 %v786
    %998 = vmatprep.subr.bf16.mxu0 %v783
    %999 = vmatpush2.bf16.msra.mxu0 %v782
    %1000 = vmatprep.subr.bf16.mxu0 %v779
    %1001 = vmatpush2.bf16.msra.mxu0 %v778
    %1002 = vmatprep.mubr.bf16.mxu0 %v860
    %1003 = vmatmul.mubr.bf16.gmra.mxu0 %v840
    %v1004 = vpop.f32.mrf.mxu0
    %v1005 = vadd.f32 0.0, %v1004
    %v1006 = vpop.f32.mrf.mxu0
    %v1007 = vadd.f32 0.0, %v1006
    %v1008 = vpop.f32.mrf.mxu0
    %v1009 = vadd.f32 0.0, %v1008
    %v1010 = vpop.f32.mrf.mxu0
    %v1011 = vadd.f32 0.0, %v1010
    %1012 = vmatprep.mubr.bf16.mxu0 %v863
    %1013 = vmatmul.mubr.bf16.gmra.mxu0 %v842
    %v1014 = vpop.f32.mrf.mxu0
    %v1015 = vadd.f32 0.0, %v1014
    %v1016 = vpop.f32.mrf.mxu0
    %v1017 = vadd.f32 0.0, %v1016
    %v1018 = vpop.f32.mrf.mxu0
    %v1019 = vadd.f32 0.0, %v1018
    %v1020 = vpop.f32.mrf.mxu0
    %v1021 = vadd.f32 0.0, %v1020
    %1022 = vmatprep.mubr.bf16.mxu0 %v866
    %1023 = vmatmul.mubr.bf16.gmra.mxu0 %v844
    %v1024 = vpop.f32.mrf.mxu0
    %v1025 = vadd.f32 0.0, %v1024
    %v1026 = vpop.f32.mrf.mxu0
    %v1027 = vadd.f32 0.0, %v1026
    %v1028 = vpop.f32.mrf.mxu0
    %v1029 = vadd.f32 0.0, %v1028
    %v1030 = vpop.f32.mrf.mxu0
    %v1031 = vadd.f32 0.0, %v1030
    %1032 = vmatprep.mubr.bf16.mxu0 %v869
    %1033 = vmatmul.mubr.bf16.gmra.mxu0 %v846
    %v1034 = vpop.f32.mrf.mxu0
    %v1035 = vadd.f32 0.0, %v1034
    %v1036 = vpop.f32.mrf.mxu0
    %v1037 = vadd.f32 0.0, %v1036
    %v1038 = vpop.f32.mrf.mxu0
    %v1039 = vadd.f32 0.0, %v1038
    %v1040 = vpop.f32.mrf.mxu0
    %v1041 = vadd.f32 0.0, %v1040
    %1042 = vmatprep.mubr.bf16.mxu0 %v872
    %1043 = vmatmul.mubr.bf16.gmra.mxu0 %v848
    %v1044 = vpop.f32.mrf.mxu0
    %v1045 = vadd.f32 0.0, %v1044
    %v1046 = vpop.f32.mrf.mxu0
    %v1047 = vadd.f32 0.0, %v1046
    %v1048 = vpop.f32.mrf.mxu0
    %v1049 = vadd.f32 0.0, %v1048
    %v1050 = vpop.f32.mrf.mxu0
    %v1051 = vadd.f32 0.0, %v1050
    %1052 = vmatprep.mubr.bf16.mxu0 %v875
    %1053 = vmatmul.mubr.bf16.gmra.mxu0 %v850
    %v1054 = vpop.f32.mrf.mxu0
    %v1055 = vadd.f32 0.0, %v1054
    %v1056 = vpop.f32.mrf.mxu0
    %v1057 = vadd.f32 0.0, %v1056
    %v1058 = vpop.f32.mrf.mxu0
    %v1059 = vadd.f32 0.0, %v1058
    %v1060 = vpop.f32.mrf.mxu0
    %v1061 = vadd.f32 0.0, %v1060
    %1062 = vdwg.mxu0
    %v1063 = vld [vmem:[#allocation2] sm:$0xff]
    %v1064 = vld [vmem:[#allocation2 + $0x8] sm:$0xff]
    %v1065 = vld [vmem:[#allocation2 + $0x10] sm:$0xff]
    %v1066 = vld [vmem:[#allocation2 + $0x18] sm:$0xff]
    %v1067 = vld [vmem:[#allocation2 + $0x20] sm:$0xff]
    %v1068 = vld [vmem:[#allocation2 + $0x28] sm:$0xff]
    %v1069 = vld [vmem:[#allocation2 + $0x30] sm:$0xff]
    %v1070 = vld [vmem:[#allocation2 + $0x38] sm:$0xff]
    %v1071 = vld [vmem:[#allocation2 + $0x40] sm:$0xff]
    %v1072 = vld [vmem:[#allocation2 + $0x48] sm:$0xff]
    %v1073 = vld [vmem:[#allocation2 + $0x50] sm:$0xff]
    %v1074 = vld [vmem:[#allocation2 + $0x58] sm:$0xff]
    %v1087 = vunpack.c.l.b16 %v1063
    %v1088 = vunpack.c.h.b16 %v1063
    %v1089 = vunpack.c.l.b16 %v1064
    %v1090 = vunpack.c.h.b16 %v1064
    %v1091 = vunpack.c.l.b16 %v1065
    %v1092 = vunpack.c.h.b16 %v1065
    %v1093 = vunpack.c.l.b16 %v1066
    %v1094 = vunpack.c.h.b16 %v1066
    %v1095 = vunpack.c.l.b16 %v1067
    %v1096 = vunpack.c.h.b16 %v1067
    %v1097 = vunpack.c.l.b16 %v1068
    %v1098 = vunpack.c.h.b16 %v1068
    %v1099 = vunpack.c.l.b16 %v1069
    %v1100 = vunpack.c.h.b16 %v1069
    %v1101 = vunpack.c.l.b16 %v1070
    %v1102 = vunpack.c.h.b16 %v1070
    %v1103 = vunpack.c.l.b16 %v1071
    %v1104 = vunpack.c.h.b16 %v1071
    %v1105 = vunpack.c.l.b16 %v1072
    %v1106 = vunpack.c.h.b16 %v1072
    %v1107 = vunpack.c.l.b16 %v1073
    %v1108 = vunpack.c.h.b16 %v1073
    %v1109 = vunpack.c.l.b16 %v1074
    %v1110 = vunpack.c.h.b16 %v1074
    %v1111 = vpack.c.b16 %v1089, %v1087
    %v1112 = vpack.c.b16 %v1090, %v1088
    %v1113 = vpack.c.b16 %v1093, %v1091
    %v1114 = vpack.c.b16 %v1094, %v1092
    %v1115 = vpack.c.b16 %v1097, %v1095
    %v1116 = vpack.c.b16 %v1098, %v1096
    %v1117 = vpack.c.b16 %v1101, %v1099
    %v1118 = vpack.c.b16 %v1102, %v1100
    %v1119 = vpack.c.b16 %v1105, %v1103
    %v1120 = vpack.c.b16 %v1106, %v1104
    %v1121 = vpack.c.b16 %v1109, %v1107
    %v1122 = vpack.c.b16 %v1110, %v1108
    %v1130 = vsel %vm858, %v1112, 0
    %v1133 = vsel %vm858, %v1114, 0
    %v1136 = vsel %vm858, %v1116, 0
    %v1139 = vsel %vm858, %v1118, 0
    %v1142 = vsel %vm858, %v1120, 0
    %v1145 = vsel %vm858, %v1122, 0
    %1147 = vmatprep.subr.bf16.mxu0 %v773
    %1148 = vmatpush1.bf16.msra.mxu0 %v772
    %1149 = vmatprep.subr.bf16.mxu0 %v769
    %1150 = vmatpush1.bf16.msra.mxu0 %v768
    %1151 = vmatprep.subr.bf16.mxu0 %v765
    %1152 = vmatpush1.bf16.msra.mxu0 %v764
    %1153 = vmatprep.subr.bf16.mxu0 %v761
    %1154 = vmatpush1.bf16.msra.mxu0 %v760
    %1155 = vmatprep.subr.bf16.mxu0 %v757
    %1156 = vmatpush1.bf16.msra.mxu0 %v756
    %1157 = vmatprep.subr.bf16.mxu0 %v753
    %1158 = vmatpush1.bf16.msra.mxu0 %v752
    %1159 = vmatprep.subr.bf16.mxu0 %v749
    %1160 = vmatpush1.bf16.msra.mxu0 %v748
    %1161 = vmatprep.subr.bf16.mxu0 %v745
    %1162 = vmatpush1.bf16.msra.mxu0 %v744
    %1163 = vmatprep.subr.bf16.mxu0 0
    %1164 = vmatpush2.bf16.msra.mxu0 0
    %1165 = vmatprep.subr.bf16.mxu0 0
    %1166 = vmatpush2.bf16.msra.mxu0 0
    %1167 = vmatprep.subr.bf16.mxu0 0
    %1168 = vmatpush2.bf16.msra.mxu0 0
    %1169 = vmatprep.subr.bf16.mxu0 0
    %1170 = vmatpush2.bf16.msra.mxu0 0
    %1171 = vmatprep.subr.bf16.mxu0 %v789
    %1172 = vmatpush2.bf16.msra.mxu0 %v788
    %1173 = vmatprep.subr.bf16.mxu0 %v785
    %1174 = vmatpush2.bf16.msra.mxu0 %v784
    %1175 = vmatprep.subr.bf16.mxu0 %v781
    %1176 = vmatpush2.bf16.msra.mxu0 %v780
    %1177 = vmatprep.subr.bf16.mxu0 %v777
    %1178 = vmatpush2.bf16.msra.mxu0 %v776
    %1179 = vmatprep.mubr.bf16.mxu0 %v1130
    %1180 = vmatmul.mubr.bf16.gmra.mxu0 %v1111
    %v1181 = vpop.f32.mrf.mxu0
    %v1182 = vadd.f32 0.0, %v1181
    %v1183 = vpop.f32.mrf.mxu0
    %v1184 = vadd.f32 0.0, %v1183
    %v1185 = vpop.f32.mrf.mxu0
    %v1186 = vadd.f32 0.0, %v1185
    %v1187 = vpop.f32.mrf.mxu0
    %v1188 = vadd.f32 0.0, %v1187
    %1189 = vmatprep.mubr.bf16.mxu0 %v1133
    %1190 = vmatmul.mubr.bf16.gmra.mxu0 %v1113
    %v1191 = vpop.f32.mrf.mxu0
    %v1192 = vadd.f32 0.0, %v1191
    %v1193 = vpop.f32.mrf.mxu0
    %v1194 = vadd.f32 0.0, %v1193
    %v1195 = vpop.f32.mrf.mxu0
    %v1196 = vadd.f32 0.0, %v1195
    %v1197 = vpop.f32.mrf.mxu0
    %v1198 = vadd.f32 0.0, %v1197
    %1199 = vmatprep.mubr.bf16.mxu0 %v1136
    %1200 = vmatmul.mubr.bf16.gmra.mxu0 %v1115
    %v1201 = vpop.f32.mrf.mxu0
    %v1202 = vadd.f32 0.0, %v1201
    %v1203 = vpop.f32.mrf.mxu0
    %v1204 = vadd.f32 0.0, %v1203
    %v1205 = vpop.f32.mrf.mxu0
    %v1206 = vadd.f32 0.0, %v1205
    %v1207 = vpop.f32.mrf.mxu0
    %v1208 = vadd.f32 0.0, %v1207
    %1209 = vmatprep.mubr.bf16.mxu0 %v1139
    %1210 = vmatmul.mubr.bf16.gmra.mxu0 %v1117
    %v1211 = vpop.f32.mrf.mxu0
    %v1212 = vadd.f32 0.0, %v1211
    %v1213 = vpop.f32.mrf.mxu0
    %v1214 = vadd.f32 0.0, %v1213
    %v1215 = vpop.f32.mrf.mxu0
    %v1216 = vadd.f32 0.0, %v1215
    %v1217 = vpop.f32.mrf.mxu0
    %v1218 = vadd.f32 0.0, %v1217
    %1219 = vmatprep.mubr.bf16.mxu0 %v1142
    %1220 = vmatmul.mubr.bf16.gmra.mxu0 %v1119
    %v1221 = vpop.f32.mrf.mxu0
    %v1222 = vadd.f32 0.0, %v1221
    %v1223 = vpop.f32.mrf.mxu0
    %v1224 = vadd.f32 0.0, %v1223
    %v1225 = vpop.f32.mrf.mxu0
    %v1226 = vadd.f32 0.0, %v1225
    %v1227 = vpop.f32.mrf.mxu0
    %v1228 = vadd.f32 0.0, %v1227
    %1229 = vmatprep.mubr.bf16.mxu0 %v1145
    %1230 = vmatmul.mubr.bf16.gmra.mxu0 %v1121
    %v1231 = vpop.f32.mrf.mxu0
    %v1232 = vadd.f32 0.0, %v1231
    %v1233 = vpop.f32.mrf.mxu0
    %v1234 = vadd.f32 0.0, %v1233
    %v1235 = vpop.f32.mrf.mxu0
    %v1236 = vadd.f32 0.0, %v1235
    %v1237 = vpop.f32.mrf.mxu0
    %v1238 = vadd.f32 0.0, %v1237
    %1239 = vdwg.mxu0
    %1240 = vmatprep.subr.bf16.mxu0 %v775
    %1241 = vmatpush1.bf16.msra.mxu0 %v774
    %1242 = vmatprep.subr.bf16.mxu0 %v771
    %1243 = vmatpush1.bf16.msra.mxu0 %v770
    %1244 = vmatprep.subr.bf16.mxu0 %v767
    %1245 = vmatpush1.bf16.msra.mxu0 %v766
    %1246 = vmatprep.subr.bf16.mxu0 %v763
    %1247 = vmatpush1.bf16.msra.mxu0 %v762
    %1248 = vmatprep.subr.bf16.mxu0 %v759
    %1249 = vmatpush1.bf16.msra.mxu0 %v758
    %1250 = vmatprep.subr.bf16.mxu0 %v755
    %1251 = vmatpush1.bf16.msra.mxu0 %v754
    %1252 = vmatprep.subr.bf16.mxu0 %v751
    %1253 = vmatpush1.bf16.msra.mxu0 %v750
    %1254 = vmatprep.subr.bf16.mxu0 %v747
    %1255 = vmatpush1.bf16.msra.mxu0 %v746
    %1256 = vmatprep.subr.bf16.mxu0 0
    %1257 = vmatpush2.bf16.msra.mxu0 0
    %1258 = vmatprep.subr.bf16.mxu0 0
    %1259 = vmatpush2.bf16.msra.mxu0 0
    %1260 = vmatprep.subr.bf16.mxu0 0
    %1261 = vmatpush2.bf16.msra.mxu0 0
    %1262 = vmatprep.subr.bf16.mxu0 0
    %1263 = vmatpush2.bf16.msra.mxu0 0
    %1264 = vmatprep.subr.bf16.mxu0 %v791
    %1265 = vmatpush2.bf16.msra.mxu0 %v790
    %1266 = vmatprep.subr.bf16.mxu0 %v787
    %1267 = vmatpush2.bf16.msra.mxu0 %v786
    %1268 = vmatprep.subr.bf16.mxu0 %v783
    %1269 = vmatpush2.bf16.msra.mxu0 %v782
    %1270 = vmatprep.subr.bf16.mxu0 %v779
    %1271 = vmatpush2.bf16.msra.mxu0 %v778
    %1272 = vmatprep.mubr.bf16.mxu0 %v1130
    %1273 = vmatmul.mubr.bf16.gmra.mxu0 %v1111
    %v1274 = vpop.f32.mrf.mxu0
    %v1275 = vadd.f32 0.0, %v1274
    %v1276 = vpop.f32.mrf.mxu0
    %v1277 = vadd.f32 0.0, %v1276
    %v1278 = vpop.f32.mrf.mxu0
    %v1279 = vadd.f32 0.0, %v1278
    %v1280 = vpop.f32.mrf.mxu0
    %v1281 = vadd.f32 0.0, %v1280
    %1282 = vmatprep.mubr.bf16.mxu0 %v1133
    %1283 = vmatmul.mubr.bf16.gmra.mxu0 %v1113
    %v1284 = vpop.f32.mrf.mxu0
    %v1285 = vadd.f32 0.0, %v1284
    %v1286 = vpop.f32.mrf.mxu0
    %v1287 = vadd.f32 0.0, %v1286
    %v1288 = vpop.f32.mrf.mxu0
    %v1289 = vadd.f32 0.0, %v1288
    %v1290 = vpop.f32.mrf.mxu0
    %v1291 = vadd.f32 0.0, %v1290
    %1292 = vmatprep.mubr.bf16.mxu0 %v1136
    %1293 = vmatmul.mubr.bf16.gmra.mxu0 %v1115
    %v1294 = vpop.f32.mrf.mxu0
    %v1295 = vadd.f32 0.0, %v1294
    %v1296 = vpop.f32.mrf.mxu0
    %v1297 = vadd.f32 0.0, %v1296
    %v1298 = vpop.f32.mrf.mxu0
    %v1299 = vadd.f32 0.0, %v1298
    %v1300 = vpop.f32.mrf.mxu0
    %v1301 = vadd.f32 0.0, %v1300
    %1302 = vmatprep.mubr.bf16.mxu0 %v1139
    %1303 = vmatmul.mubr.bf16.gmra.mxu0 %v1117
    %v1304 = vpop.f32.mrf.mxu0
    %v1305 = vadd.f32 0.0, %v1304
    %v1306 = vpop.f32.mrf.mxu0
    %v1307 = vadd.f32 0.0, %v1306
    %v1308 = vpop.f32.mrf.mxu0
    %v1309 = vadd.f32 0.0, %v1308
    %v1310 = vpop.f32.mrf.mxu0
    %v1311 = vadd.f32 0.0, %v1310
    %1312 = vmatprep.mubr.bf16.mxu0 %v1142
    %1313 = vmatmul.mubr.bf16.gmra.mxu0 %v1119
    %v1314 = vpop.f32.mrf.mxu0
    %v1315 = vadd.f32 0.0, %v1314
    %v1316 = vpop.f32.mrf.mxu0
    %v1317 = vadd.f32 0.0, %v1316
    %v1318 = vpop.f32.mrf.mxu0
    %v1319 = vadd.f32 0.0, %v1318
    %v1320 = vpop.f32.mrf.mxu0
    %v1321 = vadd.f32 0.0, %v1320
    %1322 = vmatprep.mubr.bf16.mxu0 %v1145
    %1323 = vmatmul.mubr.bf16.gmra.mxu0 %v1121
    %v1324 = vpop.f32.mrf.mxu0
    %v1325 = vadd.f32 0.0, %v1324
    %v1326 = vpop.f32.mrf.mxu0
    %v1327 = vadd.f32 0.0, %v1326
    %v1328 = vpop.f32.mrf.mxu0
    %v1329 = vadd.f32 0.0, %v1328
    %v1330 = vpop.f32.mrf.mxu0
    %v1331 = vadd.f32 0.0, %v1330
    %1332 = vdwg.mxu0
    %v1333 = vmax.f32 %v912, %v1182
    %v1334 = vmax.f32 %v914, %v1184
    %v1335 = vmax.f32 %v1005, %v1275
    %v1336 = vmax.f32 %v1007, %v1277
    %v1337 = vmax.f32 %v916, %v1186
    %v1338 = vmax.f32 %v918, %v1188
    %v1339 = vmax.f32 %v1009, %v1279
    %v1340 = vmax.f32 %v1011, %v1281
    %v1341 = vmax.f32 %v922, %v1192
    %v1342 = vmax.f32 %v924, %v1194
    %v1343 = vmax.f32 %v1015, %v1285
    %v1344 = vmax.f32 %v1017, %v1287
    %v1345 = vmax.f32 %v926, %v1196
    %v1346 = vmax.f32 %v928, %v1198
    %v1347 = vmax.f32 %v1019, %v1289
    %v1348 = vmax.f32 %v1021, %v1291
    %v1349 = vmax.f32 %v932, %v1202
    %v1350 = vmax.f32 %v934, %v1204
    %v1351 = vmax.f32 %v1025, %v1295
    %v1352 = vmax.f32 %v1027, %v1297
    %v1353 = vmax.f32 %v936, %v1206
    %v1354 = vmax.f32 %v938, %v1208
    %v1355 = vmax.f32 %v1029, %v1299
    %v1356 = vmax.f32 %v1031, %v1301
    %v1357 = vmax.f32 %v942, %v1212
    %v1358 = vmax.f32 %v944, %v1214
    %v1359 = vmax.f32 %v1035, %v1305
    %v1360 = vmax.f32 %v1037, %v1307
    %v1361 = vmax.f32 %v946, %v1216
    %v1362 = vmax.f32 %v948, %v1218
    %v1363 = vmax.f32 %v1039, %v1309
    %v1364 = vmax.f32 %v1041, %v1311
    %v1365 = vmax.f32 %v952, %v1222
    %v1366 = vmax.f32 %v954, %v1224
    %v1367 = vmax.f32 %v1045, %v1315
    %v1368 = vmax.f32 %v1047, %v1317
    %v1369 = vmax.f32 %v956, %v1226
    %v1370 = vmax.f32 %v958, %v1228
    %v1371 = vmax.f32 %v1049, %v1319
    %v1372 = vmax.f32 %v1051, %v1321
    %v1373 = vmax.f32 %v962, %v1232
    %v1374 = vmax.f32 %v964, %v1234
    %v1375 = vmax.f32 %v1055, %v1325
    %v1376 = vmax.f32 %v1057, %v1327
    %v1377 = vmax.f32 %v966, %v1236
    %v1378 = vmax.f32 %v968, %v1238
    %v1379 = vmax.f32 %v1059, %v1329
    %v1380 = vmax.f32 %v1061, %v1331
    %v1381 = vpack.c.bf16 %v1337, %v1333
    %v1382 = vpack.c.bf16 %v1338, %v1334
    %v1383 = vpack.c.bf16 %v1339, %v1335
    %v1384 = vpack.c.bf16 %v1340, %v1336
    %v1385 = vpack.c.bf16 %v1345, %v1341
    %v1386 = vpack.c.bf16 %v1346, %v1342
    %v1387 = vpack.c.bf16 %v1347, %v1343
    %v1388 = vpack.c.bf16 %v1348, %v1344
    %v1389 = vpack.c.bf16 %v1353, %v1349
    %v1390 = vpack.c.bf16 %v1354, %v1350
    %v1391 = vpack.c.bf16 %v1355, %v1351
    %v1392 = vpack.c.bf16 %v1356, %v1352
    %v1393 = vpack.c.bf16 %v1361, %v1357
    %v1394 = vpack.c.bf16 %v1362, %v1358
    %v1395 = vpack.c.bf16 %v1363, %v1359
    %v1396 = vpack.c.bf16 %v1364, %v1360
    %v1397 = vpack.c.bf16 %v1369, %v1365
    %v1398 = vpack.c.bf16 %v1370, %v1366
    %v1399 = vpack.c.bf16 %v1371, %v1367
    %v1400 = vpack.c.bf16 %v1372, %v1368
    %v1401 = vpack.c.bf16 %v1377, %v1373
    %v1402 = vpack.c.bf16 %v1378, %v1374
    %v1403 = vpack.c.bf16 %v1379, %v1375
    %v1404 = vpack.c.bf16 %v1380, %v1376
    %v1405 = vld [vmem:[%s4] sm:$0xff]
    %v1406 = vld [vmem:[%s4 + $0x8] sm:$0xff]
    %v1407 = vld [vmem:[%s4 + $0x10] sm:$0xff]
    %v1408 = vld [vmem:[%s4 + $0x18] sm:$0xff]
    %v1409 = vld [vmem:[%s4 + $0x20] sm:$0xff]
    %v1410 = vld [vmem:[%s4 + $0x28] sm:$0xff]
    %v1411 = vld [vmem:[%s4 + $0x30] sm:$0xff]
    %v1412 = vld [vmem:[%s4 + $0x38] sm:$0xff]
    %v1413 = vld [vmem:[%s4 + $0x40] sm:$0xff]
    %v1414 = vld [vmem:[%s4 + $0x48] sm:$0xff]
    %v1415 = vld [vmem:[%s4 + $0x50] sm:$0xff]
    %v1416 = vld [vmem:[%s4 + $0x58] sm:$0xff]
    %v1417 = vld [vmem:[%s4 + $0x60] sm:$0xff]
    %v1418 = vld [vmem:[%s4 + $0x68] sm:$0xff]
    %v1419 = vld [vmem:[%s4 + $0x70] sm:$0xff]
    %v1420 = vld [vmem:[%s4 + $0x78] sm:$0xff]
    %v1421 = vld [vmem:[%s4 + $0x80] sm:$0xff]
    %v1422 = vld [vmem:[%s4 + $0x88] sm:$0xff]
    %v1423 = vld [vmem:[%s4 + $0x90] sm:$0xff]
    %v1424 = vld [vmem:[%s4 + $0x98] sm:$0xff]
    %v1425 = vld [vmem:[%s4 + $0xa0] sm:$0xff]
    %v1426 = vld [vmem:[%s4 + $0xa8] sm:$0xff]
    %v1427 = vld [vmem:[%s4 + $0xb0] sm:$0xff]
    %v1428 = vld [vmem:[%s4 + $0xb8] sm:$0xff]
    %v1429 = vld [vmem:[%s4 + $0xc0] sm:$0xff]
    %v1430 = vld [vmem:[%s4 + $0xc8] sm:$0xff]
    %v1431 = vld [vmem:[%s4 + $0xd0] sm:$0xff]
    %v1432 = vld [vmem:[%s4 + $0xd8] sm:$0xff]
    %v1433 = vld [vmem:[%s4 + $0xe0] sm:$0xff]
    %v1434 = vld [vmem:[%s4 + $0xe8] sm:$0xff]
    %v1435 = vld [vmem:[%s4 + $0xf0] sm:$0xff]
    %v1436 = vld [vmem:[%s4 + $0xf8] sm:$0xff]
    %v1437 = vld [vmem:[%s4 + $0x100] sm:$0xff]
    %v1438 = vld [vmem:[%s4 + $0x108] sm:$0xff]
    %v1439 = vld [vmem:[%s4 + $0x110] sm:$0xff]
    %v1440 = vld [vmem:[%s4 + $0x118] sm:$0xff]
    %v1441 = vld [vmem:[%s4 + $0x120] sm:$0xff]
    %v1442 = vld [vmem:[%s4 + $0x128] sm:$0xff]
    %v1443 = vld [vmem:[%s4 + $0x130] sm:$0xff]
    %v1444 = vld [vmem:[%s4 + $0x138] sm:$0xff]
    %v1445 = vld [vmem:[%s4 + $0x140] sm:$0xff]
    %v1446 = vld [vmem:[%s4 + $0x148] sm:$0xff]
    %v1447 = vld [vmem:[%s4 + $0x150] sm:$0xff]
    %v1448 = vld [vmem:[%s4 + $0x158] sm:$0xff]
    %v1449 = vld [vmem:[%s4 + $0x160] sm:$0xff]
    %v1450 = vld [vmem:[%s4 + $0x168] sm:$0xff]
    %v1451 = vld [vmem:[%s4 + $0x170] sm:$0xff]
    %v1452 = vld [vmem:[%s4 + $0x178] sm:$0xff]
    %v1453 = vld [vmem:[%s4 + $0x180] sm:$0xff]
    %v1454 = vld [vmem:[%s4 + $0x188] sm:$0xff]
    %v1455 = vld [vmem:[%s4 + $0x190] sm:$0xff]
    %v1456 = vld [vmem:[%s4 + $0x198] sm:$0xff]
    %v1457 = vld [vmem:[%s4 + $0x1a0] sm:$0xff]
    %v1458 = vld [vmem:[%s4 + $0x1a8] sm:$0xff]
    %v1459 = vld [vmem:[%s4 + $0x1b0] sm:$0xff]
    %v1460 = vld [vmem:[%s4 + $0x1b8] sm:$0xff]
    %v1461 = vld [vmem:[%s4 + $0x1c0] sm:$0xff]
    %v1462 = vld [vmem:[%s4 + $0x1c8] sm:$0xff]
    %v1463 = vld [vmem:[%s4 + $0x1d0] sm:$0xff]
    %v1464 = vld [vmem:[%s4 + $0x1d8] sm:$0xff]
    %v1525 = vunpack.c.l.b16 %v1405
    %v1526 = vunpack.c.h.b16 %v1405
    %v1527 = vunpack.c.l.b16 %v1406
    %v1528 = vunpack.c.h.b16 %v1406
    %v1529 = vunpack.c.l.b16 %v1407
    %v1530 = vunpack.c.h.b16 %v1407
    %v1531 = vunpack.c.l.b16 %v1408
    %v1532 = vunpack.c.h.b16 %v1408
    %v1533 = vunpack.c.l.b16 %v1409
    %v1534 = vunpack.c.h.b16 %v1409
    %v1535 = vunpack.c.l.b16 %v1410
    %v1536 = vunpack.c.h.b16 %v1410
    %v1537 = vunpack.c.l.b16 %v1411
    %v1538 = vunpack.c.h.b16 %v1411
    %v1539 = vunpack.c.l.b16 %v1412
    %v1540 = vunpack.c.h.b16 %v1412
    %v1541 = vunpack.c.l.b16 %v1413
    %v1542 = vunpack.c.h.b16 %v1413
    %v1543 = vunpack.c.l.b16 %v1414
    %v1544 = vunpack.c.h.b16 %v1414
    %v1545 = vunpack.c.l.b16 %v1415
    %v1546 = vunpack.c.h.b16 %v1415
    %v1547 = vunpack.c.l.b16 %v1416
    %v1548 = vunpack.c.h.b16 %v1416
    %v1549 = vunpack.c.l.b16 %v1417
    %v1550 = vunpack.c.h.b16 %v1417
    %v1551 = vunpack.c.l.b16 %v1418
    %v1552 = vunpack.c.h.b16 %v1418
    %v1553 = vunpack.c.l.b16 %v1419
    %v1554 = vunpack.c.h.b16 %v1419
    %v1555 = vunpack.c.l.b16 %v1420
    %v1556 = vunpack.c.h.b16 %v1420
    %v1557 = vunpack.c.l.b16 %v1421
    %v1558 = vunpack.c.h.b16 %v1421
    %v1559 = vunpack.c.l.b16 %v1422
    %v1560 = vunpack.c.h.b16 %v1422
    %v1561 = vunpack.c.l.b16 %v1423
    %v1562 = vunpack.c.h.b16 %v1423
    %v1563 = vunpack.c.l.b16 %v1424
    %v1564 = vunpack.c.h.b16 %v1424
    %v1565 = vunpack.c.l.b16 %v1425
    %v1566 = vunpack.c.h.b16 %v1425
    %v1567 = vunpack.c.l.b16 %v1426
    %v1568 = vunpack.c.h.b16 %v1426
    %v1569 = vunpack.c.l.b16 %v1427
    %v1570 = vunpack.c.h.b16 %v1427
    %v1571 = vunpack.c.l.b16 %v1428
    %v1572 = vunpack.c.h.b16 %v1428
    %v1573 = vunpack.c.l.b16 %v1429
    %v1574 = vunpack.c.h.b16 %v1429
    %v1575 = vunpack.c.l.b16 %v1430
    %v1576 = vunpack.c.h.b16 %v1430
    %v1577 = vunpack.c.l.b16 %v1431
    %v1578 = vunpack.c.h.b16 %v1431
    %v1579 = vunpack.c.l.b16 %v1432
    %v1580 = vunpack.c.h.b16 %v1432
    %v1581 = vunpack.c.l.b16 %v1433
    %v1582 = vunpack.c.h.b16 %v1433
    %v1583 = vunpack.c.l.b16 %v1434
    %v1584 = vunpack.c.h.b16 %v1434
    %v1585 = vunpack.c.l.b16 %v1435
    %v1586 = vunpack.c.h.b16 %v1435
    %v1587 = vunpack.c.l.b16 %v1436
    %v1588 = vunpack.c.h.b16 %v1436
    %v1589 = vunpack.c.l.b16 %v1437
    %v1590 = vunpack.c.h.b16 %v1437
    %v1591 = vunpack.c.l.b16 %v1438
    %v1592 = vunpack.c.h.b16 %v1438
    %v1593 = vunpack.c.l.b16 %v1439
    %v1594 = vunpack.c.h.b16 %v1439
    %v1595 = vunpack.c.l.b16 %v1440
    %v1596 = vunpack.c.h.b16 %v1440
    %v1597 = vunpack.c.l.b16 %v1441
    %v1598 = vunpack.c.h.b16 %v1441
    %v1599 = vunpack.c.l.b16 %v1442
    %v1600 = vunpack.c.h.b16 %v1442
    %v1601 = vunpack.c.l.b16 %v1443
    %v1602 = vunpack.c.h.b16 %v1443
    %v1603 = vunpack.c.l.b16 %v1444
    %v1604 = vunpack.c.h.b16 %v1444
    %v1605 = vunpack.c.l.b16 %v1445
    %v1606 = vunpack.c.h.b16 %v1445
    %v1607 = vunpack.c.l.b16 %v1446
    %v1608 = vunpack.c.h.b16 %v1446
    %v1609 = vunpack.c.l.b16 %v1447
    %v1610 = vunpack.c.h.b16 %v1447
    %v1611 = vunpack.c.l.b16 %v1448
    %v1612 = vunpack.c.h.b16 %v1448
    %v1613 = vunpack.c.l.b16 %v1449
    %v1614 = vunpack.c.h.b16 %v1449
    %v1615 = vunpack.c.l.b16 %v1450
    %v1616 = vunpack.c.h.b16 %v1450
    %v1617 = vunpack.c.l.b16 %v1451
    %v1618 = vunpack.c.h.b16 %v1451
    %v1619 = vunpack.c.l.b16 %v1452
    %v1620 = vunpack.c.h.b16 %v1452
    %v1621 = vunpack.c.l.b16 %v1453
    %v1622 = vunpack.c.h.b16 %v1453
    %v1623 = vunpack.c.l.b16 %v1454
    %v1624 = vunpack.c.h.b16 %v1454
    %v1625 = vunpack.c.l.b16 %v1455
    %v1626 = vunpack.c.h.b16 %v1455
    %v1627 = vunpack.c.l.b16 %v1456
    %v1628 = vunpack.c.h.b16 %v1456
    %v1629 = vunpack.c.l.b16 %v1457
    %v1630 = vunpack.c.h.b16 %v1457
    %v1631 = vunpack.c.l.b16 %v1458
    %v1632 = vunpack.c.h.b16 %v1458
    %v1633 = vunpack.c.l.b16 %v1459
    %v1634 = vunpack.c.h.b16 %v1459
    %v1635 = vunpack.c.l.b16 %v1460
    %v1636 = vunpack.c.h.b16 %v1460
    %v1637 = vunpack.c.l.b16 %v1461
    %v1638 = vunpack.c.h.b16 %v1461
    %v1639 = vunpack.c.l.b16 %v1462
    %v1640 = vunpack.c.h.b16 %v1462
    %v1641 = vunpack.c.l.b16 %v1463
    %v1642 = vunpack.c.h.b16 %v1463
    %v1643 = vunpack.c.l.b16 %v1464
    %v1644 = vunpack.c.h.b16 %v1464
    %v1645 = vpack.c.b16 %v1527, %v1525
    %v1646 = vpack.c.b16 %v1528, %v1526
    %v1647 = vpack.c.b16 %v1531, %v1529
    %v1648 = vpack.c.b16 %v1532, %v1530
    %v1649 = vpack.c.b16 %v1535, %v1533
    %v1650 = vpack.c.b16 %v1536, %v1534
    %v1651 = vpack.c.b16 %v1539, %v1537
    %v1652 = vpack.c.b16 %v1540, %v1538
    %v1653 = vpack.c.b16 %v1543, %v1541
    %v1654 = vpack.c.b16 %v1544, %v1542
    %v1655 = vpack.c.b16 %v1547, %v1545
    %v1656 = vpack.c.b16 %v1548, %v1546
    %v1657 = vpack.c.b16 %v1551, %v1549
    %v1658 = vpack.c.b16 %v1552, %v1550
    %v1659 = vpack.c.b16 %v1555, %v1553
    %v1660 = vpack.c.b16 %v1556, %v1554
    %v1661 = vpack.c.b16 %v1559, %v1557
    %v1662 = vpack.c.b16 %v1560, %v1558
    %v1663 = vpack.c.b16 %v1563, %v1561
    %v1664 = vpack.c.b16 %v1564, %v1562
    %v1665 = vpack.c.b16 %v1567, %v1565
    %v1666 = vpack.c.b16 %v1568, %v1566
    %v1667 = vpack.c.b16 %v1571, %v1569
    %v1668 = vpack.c.b16 %v1572, %v1570
    %v1669 = vpack.c.b16 %v1575, %v1573
    %v1670 = vpack.c.b16 %v1576, %v1574
    %v1671 = vpack.c.b16 %v1579, %v1577
    %v1672 = vpack.c.b16 %v1580, %v1578
    %v1673 = vpack.c.b16 %v1583, %v1581
    %v1674 = vpack.c.b16 %v1584, %v1582
    %v1675 = vpack.c.b16 %v1587, %v1585
    %v1676 = vpack.c.b16 %v1588, %v1586
    %v1677 = vpack.c.b16 %v1591, %v1589
    %v1678 = vpack.c.b16 %v1592, %v1590
    %v1679 = vpack.c.b16 %v1595, %v1593
    %v1680 = vpack.c.b16 %v1596, %v1594
    %v1681 = vpack.c.b16 %v1599, %v1597
    %v1682 = vpack.c.b16 %v1600, %v1598
    %v1683 = vpack.c.b16 %v1603, %v1601
    %v1684 = vpack.c.b16 %v1604, %v1602
    %v1685 = vpack.c.b16 %v1607, %v1605
    %v1686 = vpack.c.b16 %v1608, %v1606
    %v1687 = vpack.c.b16 %v1611, %v1609
    %v1688 = vpack.c.b16 %v1612, %v1610
    %v1689 = vpack.c.b16 %v1615, %v1613
    %v1690 = vpack.c.b16 %v1616, %v1614
    %v1691 = vpack.c.b16 %v1619, %v1617
    %v1692 = vpack.c.b16 %v1620, %v1618
    %v1693 = vpack.c.b16 %v1623, %v1621
    %v1694 = vpack.c.b16 %v1624, %v1622
    %v1695 = vpack.c.b16 %v1627, %v1625
    %v1696 = vpack.c.b16 %v1628, %v1626
    %v1697 = vpack.c.b16 %v1631, %v1629
    %v1698 = vpack.c.b16 %v1632, %v1630
    %v1699 = vpack.c.b16 %v1635, %v1633
    %v1700 = vpack.c.b16 %v1636, %v1634
    %v1701 = vpack.c.b16 %v1639, %v1637
    %v1702 = vpack.c.b16 %v1640, %v1638
    %v1703 = vpack.c.b16 %v1643, %v1641
    %v1704 = vpack.c.b16 %v1644, %v1642
    %vm1765 = vcmask 785408
    %v1767 = vsel %vm1765, %v1384, 0
    %v1770 = vsel %vm1765, %v1388, 0
    %v1773 = vsel %vm1765, %v1392, 0
    %v1776 = vsel %vm1765, %v1396, 0
    %v1779 = vsel %vm1765, %v1400, 0
    %v1782 = vsel %vm1765, %v1404, 0
    %1784 = vmatprep.subr.bf16.mxu0 %v1660
    %1785 = vmatpush1.bf16.msra.mxu0 %v1659
    %1786 = vmatprep.subr.bf16.mxu0 %v1658
    %1787 = vmatpush1.bf16.msra.mxu0 %v1657
    %1788 = vmatprep.subr.bf16.mxu0 %v1656
    %1789 = vmatpush1.bf16.msra.mxu0 %v1655
    %1790 = vmatprep.subr.bf16.mxu0 %v1654
    %1791 = vmatpush1.bf16.msra.mxu0 %v1653
    %1792 = vmatprep.subr.bf16.mxu0 %v1652
    %1793 = vmatpush1.bf16.msra.mxu0 %v1651
    %1794 = vmatprep.subr.bf16.mxu0 %v1650
    %1795 = vmatpush1.bf16.msra.mxu0 %v1649
    %1796 = vmatprep.subr.bf16.mxu0 %v1648
    %1797 = vmatpush1.bf16.msra.mxu0 %v1647
    %1798 = vmatprep.subr.bf16.mxu0 %v1646
    %1799 = vmatpush1.bf16.msra.mxu0 %v1645
    %1800 = vmatprep.subr.bf16.mxu0 %v1676
    %1801 = vmatpush2.bf16.msra.mxu0 %v1675
    %1802 = vmatprep.subr.bf16.mxu0 %v1674
    %1803 = vmatpush2.bf16.msra.mxu0 %v1673
    %1804 = vmatprep.subr.bf16.mxu0 %v1672
    %1805 = vmatpush2.bf16.msra.mxu0 %v1671
    %1806 = vmatprep.subr.bf16.mxu0 %v1670
    %1807 = vmatpush2.bf16.msra.mxu0 %v1669
    %1808 = vmatprep.subr.bf16.mxu0 %v1668
    %1809 = vmatpush2.bf16.msra.mxu0 %v1667
    %1810 = vmatprep.subr.bf16.mxu0 %v1666
    %1811 = vmatpush2.bf16.msra.mxu0 %v1665
    %1812 = vmatprep.subr.bf16.mxu0 %v1664
    %1813 = vmatpush2.bf16.msra.mxu0 %v1663
    %1814 = vmatprep.subr.bf16.mxu0 %v1662
    %1815 = vmatpush2.bf16.msra.mxu0 %v1661
    %1816 = vmatprep.mubr.bf16.mxu0 %v1382
    %1817 = vmatmul.mubr.bf16.gmra.mxu0 %v1381
    %v1818 = vpop.f32.mrf.mxu0
    %v1819 = vadd.f32 0.0, %v1818
    %v1820 = vpop.f32.mrf.mxu0
    %v1821 = vadd.f32 0.0, %v1820
    %v1822 = vpop.f32.mrf.mxu0
    %v1823 = vadd.f32 0.0, %v1822
    %v1824 = vpop.f32.mrf.mxu0
    %v1825 = vadd.f32 0.0, %v1824
    %1826 = vmatprep.mubr.bf16.mxu0 %v1386
    %1827 = vmatmul.mubr.bf16.gmra.mxu0 %v1385
    %v1828 = vpop.f32.mrf.mxu0
    %v1829 = vadd.f32 0.0, %v1828
    %v1830 = vpop.f32.mrf.mxu0
    %v1831 = vadd.f32 0.0, %v1830
    %v1832 = vpop.f32.mrf.mxu0
    %v1833 = vadd.f32 0.0, %v1832
    %v1834 = vpop.f32.mrf.mxu0
    %v1835 = vadd.f32 0.0, %v1834
    %1836 = vmatprep.mubr.bf16.mxu0 %v1390
    %1837 = vmatmul.mubr.bf16.gmra.mxu0 %v1389
    %v1838 = vpop.f32.mrf.mxu0
    %v1839 = vadd.f32 0.0, %v1838
    %v1840 = vpop.f32.mrf.mxu0
    %v1841 = vadd.f32 0.0, %v1840
    %v1842 = vpop.f32.mrf.mxu0
    %v1843 = vadd.f32 0.0, %v1842
    %v1844 = vpop.f32.mrf.mxu0
    %v1845 = vadd.f32 0.0, %v1844
    %1846 = vmatprep.mubr.bf16.mxu0 %v1394
    %1847 = vmatmul.mubr.bf16.gmra.mxu0 %v1393
    %v1848 = vpop.f32.mrf.mxu0
    %v1849 = vadd.f32 0.0, %v1848
    %v1850 = vpop.f32.mrf.mxu0
    %v1851 = vadd.f32 0.0, %v1850
    %v1852 = vpop.f32.mrf.mxu0
    %v1853 = vadd.f32 0.0, %v1852
    %v1854 = vpop.f32.mrf.mxu0
    %v1855 = vadd.f32 0.0, %v1854
    %1856 = vmatprep.mubr.bf16.mxu0 %v1398
    %1857 = vmatmul.mubr.bf16.gmra.mxu0 %v1397
    %v1858 = vpop.f32.mrf.mxu0
    %v1859 = vadd.f32 0.0, %v1858
    %v1860 = vpop.f32.mrf.mxu0
    %v1861 = vadd.f32 0.0, %v1860
    %v1862 = vpop.f32.mrf.mxu0
    %v1863 = vadd.f32 0.0, %v1862
    %v1864 = vpop.f32.mrf.mxu0
    %v1865 = vadd.f32 0.0, %v1864
    %1866 = vmatprep.mubr.bf16.mxu0 %v1402
    %1867 = vmatmul.mubr.bf16.gmra.mxu0 %v1401
    %v1868 = vpop.f32.mrf.mxu0
    %v1869 = vadd.f32 0.0, %v1868
    %v1870 = vpop.f32.mrf.mxu0
    %v1871 = vadd.f32 0.0, %v1870
    %v1872 = vpop.f32.mrf.mxu0
    %v1873 = vadd.f32 0.0, %v1872
    %v1874 = vpop.f32.mrf.mxu0
    %v1875 = vadd.f32 0.0, %v1874
    %1876 = vdwg.mxu0
    %1877 = vmatprep.subr.bf16.mxu0 %v1692
    %1878 = vmatpush1.bf16.msra.mxu0 %v1691
    %1879 = vmatprep.subr.bf16.mxu0 %v1690
    %1880 = vmatpush1.bf16.msra.mxu0 %v1689
    %1881 = vmatprep.subr.bf16.mxu0 %v1688
    %1882 = vmatpush1.bf16.msra.mxu0 %v1687
    %1883 = vmatprep.subr.bf16.mxu0 %v1686
    %1884 = vmatpush1.bf16.msra.mxu0 %v1685
    %1885 = vmatprep.subr.bf16.mxu0 %v1684
    %1886 = vmatpush1.bf16.msra.mxu0 %v1683
    %1887 = vmatprep.subr.bf16.mxu0 %v1682
    %1888 = vmatpush1.bf16.msra.mxu0 %v1681
    %1889 = vmatprep.subr.bf16.mxu0 %v1680
    %1890 = vmatpush1.bf16.msra.mxu0 %v1679
    %1891 = vmatprep.subr.bf16.mxu0 %v1678
    %1892 = vmatpush1.bf16.msra.mxu0 %v1677
    %1893 = vmatprep.subr.bf16.mxu0 0
    %1894 = vmatpush2.bf16.msra.mxu0 0
    %1895 = vmatprep.subr.bf16.mxu0 0
    %1896 = vmatpush2.bf16.msra.mxu0 0
    %1897 = vmatprep.subr.bf16.mxu0 %v1704
    %1898 = vmatpush2.bf16.msra.mxu0 %v1703
    %1899 = vmatprep.subr.bf16.mxu0 %v1702
    %1900 = vmatpush2.bf16.msra.mxu0 %v1701
    %1901 = vmatprep.subr.bf16.mxu0 %v1700
    %1902 = vmatpush2.bf16.msra.mxu0 %v1699
    %1903 = vmatprep.subr.bf16.mxu0 %v1698
    %1904 = vmatpush2.bf16.msra.mxu0 %v1697
    %1905 = vmatprep.subr.bf16.mxu0 %v1696
    %1906 = vmatpush2.bf16.msra.mxu0 %v1695
    %1907 = vmatprep.subr.bf16.mxu0 %v1694
    %1908 = vmatpush2.bf16.msra.mxu0 %v1693
    %1909 = vmatprep.mubr.bf16.mxu0 %v1767
    %1910 = vmatmul.mubr.bf16.gmra.mxu0 %v1383
    %v1911 = vpop.f32.mrf.mxu0
    %v1912 = vadd.f32 %v1819, %v1911
    %v1913 = vpop.f32.mrf.mxu0
    %v1914 = vadd.f32 %v1821, %v1913
    %v1915 = vpop.f32.mrf.mxu0
    %v1916 = vadd.f32 %v1823, %v1915
    %v1917 = vpop.f32.mrf.mxu0
    %v1918 = vadd.f32 %v1825, %v1917
    %1919 = vmatprep.mubr.bf16.mxu0 %v1770
    %1920 = vmatmul.mubr.bf16.gmra.mxu0 %v1387
    %v1921 = vpop.f32.mrf.mxu0
    %v1922 = vadd.f32 %v1829, %v1921
    %v1923 = vpop.f32.mrf.mxu0
    %v1924 = vadd.f32 %v1831, %v1923
    %v1925 = vpop.f32.mrf.mxu0
    %v1926 = vadd.f32 %v1833, %v1925
    %v1927 = vpop.f32.mrf.mxu0
    %v1928 = vadd.f32 %v1835, %v1927
    %1929 = vmatprep.mubr.bf16.mxu0 %v1773
    %1930 = vmatmul.mubr.bf16.gmra.mxu0 %v1391
    %v1931 = vpop.f32.mrf.mxu0
    %v1932 = vadd.f32 %v1839, %v1931
    %v1933 = vpop.f32.mrf.mxu0
    %v1934 = vadd.f32 %v1841, %v1933
    %v1935 = vpop.f32.mrf.mxu0
    %v1936 = vadd.f32 %v1843, %v1935
    %v1937 = vpop.f32.mrf.mxu0
    %v1938 = vadd.f32 %v1845, %v1937
    %1939 = vmatprep.mubr.bf16.mxu0 %v1776
    %1940 = vmatmul.mubr.bf16.gmra.mxu0 %v1395
    %v1941 = vpop.f32.mrf.mxu0
    %v1942 = vadd.f32 %v1849, %v1941
    %v1943 = vpop.f32.mrf.mxu0
    %v1944 = vadd.f32 %v1851, %v1943
    %v1945 = vpop.f32.mrf.mxu0
    %v1946 = vadd.f32 %v1853, %v1945
    %v1947 = vpop.f32.mrf.mxu0
    %v1948 = vadd.f32 %v1855, %v1947
    %1949 = vmatprep.mubr.bf16.mxu0 %v1779
    %1950 = vmatmul.mubr.bf16.gmra.mxu0 %v1399
    %v1951 = vpop.f32.mrf.mxu0
    %v1952 = vadd.f32 %v1859, %v1951
    %v1953 = vpop.f32.mrf.mxu0
    %v1954 = vadd.f32 %v1861, %v1953
    %v1955 = vpop.f32.mrf.mxu0
    %v1956 = vadd.f32 %v1863, %v1955
    %v1957 = vpop.f32.mrf.mxu0
    %v1958 = vadd.f32 %v1865, %v1957
    %1959 = vmatprep.mubr.bf16.mxu0 %v1782
    %1960 = vmatmul.mubr.bf16.gmra.mxu0 %v1403
    %v1961 = vpop.f32.mrf.mxu0
    %v1962 = vadd.f32 %v1869, %v1961
    %v1963 = vpop.f32.mrf.mxu0
    %v1964 = vadd.f32 %v1871, %v1963
    %v1965 = vpop.f32.mrf.mxu0
    %v1966 = vadd.f32 %v1873, %v1965
    %v1967 = vpop.f32.mrf.mxu0
    %v1968 = vadd.f32 %v1875, %v1967
    %1969 = vdwg.mxu0
    %v1970 = vld [vmem:[%s5] sm:$0xff]
    %v1971 = vld [vmem:[%s5 + $0x8] sm:$0xff]
    %v1972 = vld [vmem:[%s5 + $0x10] sm:$0xff]
    %v1973 = vld [vmem:[%s5 + $0x18] sm:$0xff]
    %v1974 = vld [vmem:[%s5 + $0x20] sm:$0xff]
    %v1975 = vld [vmem:[%s5 + $0x28] sm:$0xff]
    %v1976 = vld [vmem:[%s5 + $0x30] sm:$0xff]
    %v1977 = vld [vmem:[%s5 + $0x38] sm:$0xff]
    %v1978 = vld [vmem:[%s5 + $0x40] sm:$0xff]
    %v1979 = vld [vmem:[%s5 + $0x48] sm:$0xff]
    %v1980 = vld [vmem:[%s5 + $0x50] sm:$0xff]
    %v1981 = vld [vmem:[%s5 + $0x58] sm:$0xff]
    %v1982 = vld [vmem:[%s5 + $0x60] sm:$0xff]
    %v1983 = vld [vmem:[%s5 + $0x68] sm:$0xff]
    %v1984 = vld [vmem:[%s5 + $0x70] sm:$0xff]
    %v1985 = vld [vmem:[%s5 + $0x78] sm:$0xff]
    %v1986 = vld [vmem:[%s5 + $0x80] sm:$0xff]
    %v1987 = vld [vmem:[%s5 + $0x88] sm:$0xff]
    %v1988 = vld [vmem:[%s5 + $0x90] sm:$0xff]
    %v1989 = vld [vmem:[%s5 + $0x98] sm:$0xff]
    %v1990 = vld [vmem:[%s5 + $0xa0] sm:$0xff]
    %v1991 = vld [vmem:[%s5 + $0xa8] sm:$0xff]
    %v1992 = vld [vmem:[%s5 + $0xb0] sm:$0xff]
    %v1993 = vld [vmem:[%s5 + $0xb8] sm:$0xff]
    %v1994 = vld [vmem:[%s5 + $0xc0] sm:$0xff]
    %v1995 = vld [vmem:[%s5 + $0xc8] sm:$0xff]
    %v1996 = vld [vmem:[%s5 + $0xd0] sm:$0xff]
    %v1997 = vld [vmem:[%s5 + $0xd8] sm:$0xff]
    %v1998 = vld [vmem:[%s5 + $0xe0] sm:$0xff]
    %v1999 = vld [vmem:[%s5 + $0xe8] sm:$0xff]
    %v2000 = vld [vmem:[%s5 + $0xf0] sm:$0xff]
    %v2001 = vld [vmem:[%s5 + $0xf8] sm:$0xff]
    %v2002 = vld [vmem:[%s5 + $0x100] sm:$0xff]
    %v2003 = vld [vmem:[%s5 + $0x108] sm:$0xff]
    %v2004 = vld [vmem:[%s5 + $0x110] sm:$0xff]
    %v2005 = vld [vmem:[%s5 + $0x118] sm:$0xff]
    %v2006 = vld [vmem:[%s5 + $0x120] sm:$0xff]
    %v2007 = vld [vmem:[%s5 + $0x128] sm:$0xff]
    %v2008 = vld [vmem:[%s5 + $0x130] sm:$0xff]
    %v2009 = vld [vmem:[%s5 + $0x138] sm:$0xff]
    %v2010 = vld [vmem:[%s5 + $0x140] sm:$0xff]
    %v2011 = vld [vmem:[%s5 + $0x148] sm:$0xff]
    %v2012 = vld [vmem:[%s5 + $0x150] sm:$0xff]
    %v2013 = vld [vmem:[%s5 + $0x158] sm:$0xff]
    %v2014 = vld [vmem:[%s5 + $0x160] sm:$0xff]
    %v2015 = vld [vmem:[%s5 + $0x168] sm:$0xff]
    %v2016 = vld [vmem:[%s5 + $0x170] sm:$0xff]
    %v2017 = vld [vmem:[%s5 + $0x178] sm:$0xff]
    %v2018 = vld [vmem:[%s5 + $0x180] sm:$0xff]
    %v2019 = vld [vmem:[%s5 + $0x188] sm:$0xff]
    %v2020 = vld [vmem:[%s5 + $0x190] sm:$0xff]
    %v2021 = vld [vmem:[%s5 + $0x198] sm:$0xff]
    %v2022 = vld [vmem:[%s5 + $0x1a0] sm:$0xff]
    %v2023 = vld [vmem:[%s5 + $0x1a8] sm:$0xff]
    %v2024 = vld [vmem:[%s5 + $0x1b0] sm:$0xff]
    %v2025 = vld [vmem:[%s5 + $0x1b8] sm:$0xff]
    %v2026 = vld [vmem:[%s5 + $0x1c0] sm:$0xff]
    %v2027 = vld [vmem:[%s5 + $0x1c8] sm:$0xff]
    %v2028 = vld [vmem:[%s5 + $0x1d0] sm:$0xff]
    %v2029 = vld [vmem:[%s5 + $0x1d8] sm:$0xff]
    %v2090 = vunpack.c.l.b16 %v1970
    %v2091 = vunpack.c.h.b16 %v1970
    %v2092 = vunpack.c.l.b16 %v1971
    %v2093 = vunpack.c.h.b16 %v1971
    %v2094 = vunpack.c.l.b16 %v1972
    %v2095 = vunpack.c.h.b16 %v1972
    %v2096 = vunpack.c.l.b16 %v1973
    %v2097 = vunpack.c.h.b16 %v1973
    %v2098 = vunpack.c.l.b16 %v1974
    %v2099 = vunpack.c.h.b16 %v1974
    %v2100 = vunpack.c.l.b16 %v1975
    %v2101 = vunpack.c.h.b16 %v1975
    %v2102 = vunpack.c.l.b16 %v1976
    %v2103 = vunpack.c.h.b16 %v1976
    %v2104 = vunpack.c.l.b16 %v1977
    %v2105 = vunpack.c.h.b16 %v1977
    %v2106 = vunpack.c.l.b16 %v1978
    %v2107 = vunpack.c.h.b16 %v1978
    %v2108 = vunpack.c.l.b16 %v1979
    %v2109 = vunpack.c.h.b16 %v1979
    %v2110 = vunpack.c.l.b16 %v1980
    %v2111 = vunpack.c.h.b16 %v1980
    %v2112 = vunpack.c.l.b16 %v1981
    %v2113 = vunpack.c.h.b16 %v1981
    %v2114 = vunpack.c.l.b16 %v1982
    %v2115 = vunpack.c.h.b16 %v1982
    %v2116 = vunpack.c.l.b16 %v1983
    %v2117 = vunpack.c.h.b16 %v1983
    %v2118 = vunpack.c.l.b16 %v1984
    %v2119 = vunpack.c.h.b16 %v1984
    %v2120 = vunpack.c.l.b16 %v1985
    %v2121 = vunpack.c.h.b16 %v1985
    %v2122 = vunpack.c.l.b16 %v1986
    %v2123 = vunpack.c.h.b16 %v1986
    %v2124 = vunpack.c.l.b16 %v1987
    %v2125 = vunpack.c.h.b16 %v1987
    %v2126 = vunpack.c.l.b16 %v1988
    %v2127 = vunpack.c.h.b16 %v1988
    %v2128 = vunpack.c.l.b16 %v1989
    %v2129 = vunpack.c.h.b16 %v1989
    %v2130 = vunpack.c.l.b16 %v1990
    %v2131 = vunpack.c.h.b16 %v1990
    %v2132 = vunpack.c.l.b16 %v1991
    %v2133 = vunpack.c.h.b16 %v1991
    %v2134 = vunpack.c.l.b16 %v1992
    %v2135 = vunpack.c.h.b16 %v1992
    %v2136 = vunpack.c.l.b16 %v1993
    %v2137 = vunpack.c.h.b16 %v1993
    %v2138 = vunpack.c.l.b16 %v1994
    %v2139 = vunpack.c.h.b16 %v1994
    %v2140 = vunpack.c.l.b16 %v1995
    %v2141 = vunpack.c.h.b16 %v1995
    %v2142 = vunpack.c.l.b16 %v1996
    %v2143 = vunpack.c.h.b16 %v1996
    %v2144 = vunpack.c.l.b16 %v1997
    %v2145 = vunpack.c.h.b16 %v1997
    %v2146 = vunpack.c.l.b16 %v1998
    %v2147 = vunpack.c.h.b16 %v1998
    %v2148 = vunpack.c.l.b16 %v1999
    %v2149 = vunpack.c.h.b16 %v1999
    %v2150 = vunpack.c.l.b16 %v2000
    %v2151 = vunpack.c.h.b16 %v2000
    %v2152 = vunpack.c.l.b16 %v2001
    %v2153 = vunpack.c.h.b16 %v2001
    %v2154 = vunpack.c.l.b16 %v2002
    %v2155 = vunpack.c.h.b16 %v2002
    %v2156 = vunpack.c.l.b16 %v2003
    %v2157 = vunpack.c.h.b16 %v2003
    %v2158 = vunpack.c.l.b16 %v2004
    %v2159 = vunpack.c.h.b16 %v2004
    %v2160 = vunpack.c.l.b16 %v2005
    %v2161 = vunpack.c.h.b16 %v2005
    %v2162 = vunpack.c.l.b16 %v2006
    %v2163 = vunpack.c.h.b16 %v2006
    %v2164 = vunpack.c.l.b16 %v2007
    %v2165 = vunpack.c.h.b16 %v2007
    %v2166 = vunpack.c.l.b16 %v2008
    %v2167 = vunpack.c.h.b16 %v2008
    %v2168 = vunpack.c.l.b16 %v2009
    %v2169 = vunpack.c.h.b16 %v2009
    %v2170 = vunpack.c.l.b16 %v2010
    %v2171 = vunpack.c.h.b16 %v2010
    %v2172 = vunpack.c.l.b16 %v2011
    %v2173 = vunpack.c.h.b16 %v2011
    %v2174 = vunpack.c.l.b16 %v2012
    %v2175 = vunpack.c.h.b16 %v2012
    %v2176 = vunpack.c.l.b16 %v2013
    %v2177 = vunpack.c.h.b16 %v2013
    %v2178 = vunpack.c.l.b16 %v2014
    %v2179 = vunpack.c.h.b16 %v2014
    %v2180 = vunpack.c.l.b16 %v2015
    %v2181 = vunpack.c.h.b16 %v2015
    %v2182 = vunpack.c.l.b16 %v2016
    %v2183 = vunpack.c.h.b16 %v2016
    %v2184 = vunpack.c.l.b16 %v2017
    %v2185 = vunpack.c.h.b16 %v2017
    %v2186 = vunpack.c.l.b16 %v2018
    %v2187 = vunpack.c.h.b16 %v2018
    %v2188 = vunpack.c.l.b16 %v2019
    %v2189 = vunpack.c.h.b16 %v2019
    %v2190 = vunpack.c.l.b16 %v2020
    %v2191 = vunpack.c.h.b16 %v2020
    %v2192 = vunpack.c.l.b16 %v2021
    %v2193 = vunpack.c.h.b16 %v2021
    %v2194 = vunpack.c.l.b16 %v2022
    %v2195 = vunpack.c.h.b16 %v2022
    %v2196 = vunpack.c.l.b16 %v2023
    %v2197 = vunpack.c.h.b16 %v2023
    %v2198 = vunpack.c.l.b16 %v2024
    %v2199 = vunpack.c.h.b16 %v2024
    %v2200 = vunpack.c.l.b16 %v2025
    %v2201 = vunpack.c.h.b16 %v2025
    %v2202 = vunpack.c.l.b16 %v2026
    %v2203 = vunpack.c.h.b16 %v2026
    %v2204 = vunpack.c.l.b16 %v2027
    %v2205 = vunpack.c.h.b16 %v2027
    %v2206 = vunpack.c.l.b16 %v2028
    %v2207 = vunpack.c.h.b16 %v2028
    %v2208 = vunpack.c.l.b16 %v2029
    %v2209 = vunpack.c.h.b16 %v2029
    %v2210 = vpack.c.b16 %v2092, %v2090
    %v2211 = vpack.c.b16 %v2093, %v2091
    %v2212 = vpack.c.b16 %v2096, %v2094
    %v2213 = vpack.c.b16 %v2097, %v2095
    %v2214 = vpack.c.b16 %v2100, %v2098
    %v2215 = vpack.c.b16 %v2101, %v2099
    %v2216 = vpack.c.b16 %v2104, %v2102
    %v2217 = vpack.c.b16 %v2105, %v2103
    %v2218 = vpack.c.b16 %v2108, %v2106
    %v2219 = vpack.c.b16 %v2109, %v2107
    %v2220 = vpack.c.b16 %v2112, %v2110
    %v2221 = vpack.c.b16 %v2113, %v2111
    %v2222 = vpack.c.b16 %v2116, %v2114
    %v2223 = vpack.c.b16 %v2117, %v2115
    %v2224 = vpack.c.b16 %v2120, %v2118
    %v2225 = vpack.c.b16 %v2121, %v2119
    %v2226 = vpack.c.b16 %v2124, %v2122
    %v2227 = vpack.c.b16 %v2125, %v2123
    %v2228 = vpack.c.b16 %v2128, %v2126
    %v2229 = vpack.c.b16 %v2129, %v2127
    %v2230 = vpack.c.b16 %v2132, %v2130
    %v2231 = vpack.c.b16 %v2133, %v2131
    %v2232 = vpack.c.b16 %v2136, %v2134
    %v2233 = vpack.c.b16 %v2137, %v2135
    %v2234 = vpack.c.b16 %v2140, %v2138
    %v2235 = vpack.c.b16 %v2141, %v2139
    %v2236 = vpack.c.b16 %v2144, %v2142
    %v2237 = vpack.c.b16 %v2145, %v2143
    %v2238 = vpack.c.b16 %v2148, %v2146
    %v2239 = vpack.c.b16 %v2149, %v2147
    %v2240 = vpack.c.b16 %v2152, %v2150
    %v2241 = vpack.c.b16 %v2153, %v2151
    %v2242 = vpack.c.b16 %v2156, %v2154
    %v2243 = vpack.c.b16 %v2157, %v2155
    %v2244 = vpack.c.b16 %v2160, %v2158
    %v2245 = vpack.c.b16 %v2161, %v2159
    %v2246 = vpack.c.b16 %v2164, %v2162
    %v2247 = vpack.c.b16 %v2165, %v2163
    %v2248 = vpack.c.b16 %v2168, %v2166
    %v2249 = vpack.c.b16 %v2169, %v2167
    %v2250 = vpack.c.b16 %v2172, %v2170
    %v2251 = vpack.c.b16 %v2173, %v2171
    %v2252 = vpack.c.b16 %v2176, %v2174
    %v2253 = vpack.c.b16 %v2177, %v2175
    %v2254 = vpack.c.b16 %v2180, %v2178
    %v2255 = vpack.c.b16 %v2181, %v2179
    %v2256 = vpack.c.b16 %v2184, %v2182
    %v2257 = vpack.c.b16 %v2185, %v2183
    %v2258 = vpack.c.b16 %v2188, %v2186
    %v2259 = vpack.c.b16 %v2189, %v2187
    %v2260 = vpack.c.b16 %v2192, %v2190
    %v2261 = vpack.c.b16 %v2193, %v2191
    %v2262 = vpack.c.b16 %v2196, %v2194
    %v2263 = vpack.c.b16 %v2197, %v2195
    %v2264 = vpack.c.b16 %v2200, %v2198
    %v2265 = vpack.c.b16 %v2201, %v2199
    %v2266 = vpack.c.b16 %v2204, %v2202
    %v2267 = vpack.c.b16 %v2205, %v2203
    %v2268 = vpack.c.b16 %v2208, %v2206
    %v2269 = vpack.c.b16 %v2209, %v2207
    %2330 = vmatprep.subr.bf16.mxu0 %v2225
    %2331 = vmatpush1.bf16.msra.mxu0 %v2224
    %2332 = vmatprep.subr.bf16.mxu0 %v2223
    %2333 = vmatpush1.bf16.msra.mxu0 %v2222
    %2334 = vmatprep.subr.bf16.mxu0 %v2221
    %2335 = vmatpush1.bf16.msra.mxu0 %v2220
    %2336 = vmatprep.subr.bf16.mxu0 %v2219
    %2337 = vmatpush1.bf16.msra.mxu0 %v2218
    %2338 = vmatprep.subr.bf16.mxu0 %v2217
    %2339 = vmatpush1.bf16.msra.mxu0 %v2216
    %2340 = vmatprep.subr.bf16.mxu0 %v2215
    %2341 = vmatpush1.bf16.msra.mxu0 %v2214
    %2342 = vmatprep.subr.bf16.mxu0 %v2213
    %2343 = vmatpush1.bf16.msra.mxu0 %v2212
    %2344 = vmatprep.subr.bf16.mxu0 %v2211
    %2345 = vmatpush1.bf16.msra.mxu0 %v2210
    %2346 = vmatprep.subr.bf16.mxu0 %v2241
    %2347 = vmatpush2.bf16.msra.mxu0 %v2240
    %2348 = vmatprep.subr.bf16.mxu0 %v2239
    %2349 = vmatpush2.bf16.msra.mxu0 %v2238
    %2350 = vmatprep.subr.bf16.mxu0 %v2237
    %2351 = vmatpush2.bf16.msra.mxu0 %v2236
    %2352 = vmatprep.subr.bf16.mxu0 %v2235
    %2353 = vmatpush2.bf16.msra.mxu0 %v2234
    %2354 = vmatprep.subr.bf16.mxu0 %v2233
    %2355 = vmatpush2.bf16.msra.mxu0 %v2232
    %2356 = vmatprep.subr.bf16.mxu0 %v2231
    %2357 = vmatpush2.bf16.msra.mxu0 %v2230
    %2358 = vmatprep.subr.bf16.mxu0 %v2229
    %2359 = vmatpush2.bf16.msra.mxu0 %v2228
    %2360 = vmatprep.subr.bf16.mxu0 %v2227
    %2361 = vmatpush2.bf16.msra.mxu0 %v2226
    %2362 = vmatprep.mubr.bf16.mxu0 %v1382
    %2363 = vmatmul.mubr.bf16.gmra.mxu0 %v1381
    %v2364 = vpop.f32.mrf.mxu0
    %v2365 = vadd.f32 0.0, %v2364
    %v2366 = vpop.f32.mrf.mxu0
    %v2367 = vadd.f32 0.0, %v2366
    %v2368 = vpop.f32.mrf.mxu0
    %v2369 = vadd.f32 0.0, %v2368
    %v2370 = vpop.f32.mrf.mxu0
    %v2371 = vadd.f32 0.0, %v2370
    %2372 = vmatprep.mubr.bf16.mxu0 %v1386
    %2373 = vmatmul.mubr.bf16.gmra.mxu0 %v1385
    %v2374 = vpop.f32.mrf.mxu0
    %v2375 = vadd.f32 0.0, %v2374
    %v2376 = vpop.f32.mrf.mxu0
    %v2377 = vadd.f32 0.0, %v2376
    %v2378 = vpop.f32.mrf.mxu0
    %v2379 = vadd.f32 0.0, %v2378
    %v2380 = vpop.f32.mrf.mxu0
    %v2381 = vadd.f32 0.0, %v2380
    %2382 = vmatprep.mubr.bf16.mxu0 %v1390
    %2383 = vmatmul.mubr.bf16.gmra.mxu0 %v1389
    %v2384 = vpop.f32.mrf.mxu0
    %v2385 = vadd.f32 0.0, %v2384
    %v2386 = vpop.f32.mrf.mxu0
    %v2387 = vadd.f32 0.0, %v2386
    %v2388 = vpop.f32.mrf.mxu0
    %v2389 = vadd.f32 0.0, %v2388
    %v2390 = vpop.f32.mrf.mxu0
    %v2391 = vadd.f32 0.0, %v2390
    %2392 = vmatprep.mubr.bf16.mxu0 %v1394
    %2393 = vmatmul.mubr.bf16.gmra.mxu0 %v1393
    %v2394 = vpop.f32.mrf.mxu0
    %v2395 = vadd.f32 0.0, %v2394
    %v2396 = vpop.f32.mrf.mxu0
    %v2397 = vadd.f32 0.0, %v2396
    %v2398 = vpop.f32.mrf.mxu0
    %v2399 = vadd.f32 0.0, %v2398
    %v2400 = vpop.f32.mrf.mxu0
    %v2401 = vadd.f32 0.0, %v2400
    %2402 = vmatprep.mubr.bf16.mxu0 %v1398
    %2403 = vmatmul.mubr.bf16.gmra.mxu0 %v1397
    %v2404 = vpop.f32.mrf.mxu0
    %v2405 = vadd.f32 0.0, %v2404
    %v2406 = vpop.f32.mrf.mxu0
    %v2407 = vadd.f32 0.0, %v2406
    %v2408 = vpop.f32.mrf.mxu0
    %v2409 = vadd.f32 0.0, %v2408
    %v2410 = vpop.f32.mrf.mxu0
    %v2411 = vadd.f32 0.0, %v2410
    %2412 = vmatprep.mubr.bf16.mxu0 %v1402
    %2413 = vmatmul.mubr.bf16.gmra.mxu0 %v1401
    %v2414 = vpop.f32.mrf.mxu0
    %v2415 = vadd.f32 0.0, %v2414
    %v2416 = vpop.f32.mrf.mxu0
    %v2417 = vadd.f32 0.0, %v2416
    %v2418 = vpop.f32.mrf.mxu0
    %v2419 = vadd.f32 0.0, %v2418
    %v2420 = vpop.f32.mrf.mxu0
    %v2421 = vadd.f32 0.0, %v2420
    %2422 = vdwg.mxu0
    %2423 = vmatprep.subr.bf16.mxu0 %v2257
    %2424 = vmatpush1.bf16.msra.mxu0 %v2256
    %2425 = vmatprep.subr.bf16.mxu0 %v2255
    %2426 = vmatpush1.bf16.msra.mxu0 %v2254
    %2427 = vmatprep.subr.bf16.mxu0 %v2253
    %2428 = vmatpush1.bf16.msra.mxu0 %v2252
    %2429 = vmatprep.subr.bf16.mxu0 %v2251
    %2430 = vmatpush1.bf16.msra.mxu0 %v2250
    %2431 = vmatprep.subr.bf16.mxu0 %v2249
    %2432 = vmatpush1.bf16.msra.mxu0 %v2248
    %2433 = vmatprep.subr.bf16.mxu0 %v2247
    %2434 = vmatpush1.bf16.msra.mxu0 %v2246
    %2435 = vmatprep.subr.bf16.mxu0 %v2245
    %2436 = vmatpush1.bf16.msra.mxu0 %v2244
    %2437 = vmatprep.subr.bf16.mxu0 %v2243
    %2438 = vmatpush1.bf16.msra.mxu0 %v2242
    %2439 = vmatprep.subr.bf16.mxu0 0
    %2440 = vmatpush2.bf16.msra.mxu0 0
    %2441 = vmatprep.subr.bf16.mxu0 0
    %2442 = vmatpush2.bf16.msra.mxu0 0
    %2443 = vmatprep.subr.bf16.mxu0 %v2269
    %2444 = vmatpush2.bf16.msra.mxu0 %v2268
    %2445 = vmatprep.subr.bf16.mxu0 %v2267
    %2446 = vmatpush2.bf16.msra.mxu0 %v2266
    %2447 = vmatprep.subr.bf16.mxu0 %v2265
    %2448 = vmatpush2.bf16.msra.mxu0 %v2264
    %2449 = vmatprep.subr.bf16.mxu0 %v2263
    %2450 = vmatpush2.bf16.msra.mxu0 %v2262
    %2451 = vmatprep.subr.bf16.mxu0 %v2261
    %2452 = vmatpush2.bf16.msra.mxu0 %v2260
    %2453 = vmatprep.subr.bf16.mxu0 %v2259
    %2454 = vmatpush2.bf16.msra.mxu0 %v2258
    %2455 = vmatprep.mubr.bf16.mxu0 %v1767
    %2456 = vmatmul.mubr.bf16.gmra.mxu0 %v1383
    %v2457 = vpop.f32.mrf.mxu0
    %v2458 = vadd.f32 %v2365, %v2457
    %v2459 = vpop.f32.mrf.mxu0
    %v2460 = vadd.f32 %v2367, %v2459
    %v2461 = vpop.f32.mrf.mxu0
    %v2462 = vadd.f32 %v2369, %v2461
    %v2463 = vpop.f32.mrf.mxu0
    %v2464 = vadd.f32 %v2371, %v2463
    %2465 = vmatprep.mubr.bf16.mxu0 %v1770
    %2466 = vmatmul.mubr.bf16.gmra.mxu0 %v1387
    %v2467 = vpop.f32.mrf.mxu0
    %v2468 = vadd.f32 %v2375, %v2467
    %v2469 = vpop.f32.mrf.mxu0
    %v2470 = vadd.f32 %v2377, %v2469
    %v2471 = vpop.f32.mrf.mxu0
    %v2472 = vadd.f32 %v2379, %v2471
    %v2473 = vpop.f32.mrf.mxu0
    %v2474 = vadd.f32 %v2381, %v2473
    %2475 = vmatprep.mubr.bf16.mxu0 %v1773
    %2476 = vmatmul.mubr.bf16.gmra.mxu0 %v1391
    %v2477 = vpop.f32.mrf.mxu0
    %v2478 = vadd.f32 %v2385, %v2477
    %v2479 = vpop.f32.mrf.mxu0
    %v2480 = vadd.f32 %v2387, %v2479
    %v2481 = vpop.f32.mrf.mxu0
    %v2482 = vadd.f32 %v2389, %v2481
    %v2483 = vpop.f32.mrf.mxu0
    %v2484 = vadd.f32 %v2391, %v2483
    %2485 = vmatprep.mubr.bf16.mxu0 %v1776
    %2486 = vmatmul.mubr.bf16.gmra.mxu0 %v1395
    %v2487 = vpop.f32.mrf.mxu0
    %v2488 = vadd.f32 %v2395, %v2487
    %v2489 = vpop.f32.mrf.mxu0
    %v2490 = vadd.f32 %v2397, %v2489
    %v2491 = vpop.f32.mrf.mxu0
    %v2492 = vadd.f32 %v2399, %v2491
    %v2493 = vpop.f32.mrf.mxu0
    %v2494 = vadd.f32 %v2401, %v2493
    %2495 = vmatprep.mubr.bf16.mxu0 %v1779
    %2496 = vmatmul.mubr.bf16.gmra.mxu0 %v1399
    %v2497 = vpop.f32.mrf.mxu0
    %v2498 = vadd.f32 %v2405, %v2497
    %v2499 = vpop.f32.mrf.mxu0
    %v2500 = vadd.f32 %v2407, %v2499
    %v2501 = vpop.f32.mrf.mxu0
    %v2502 = vadd.f32 %v2409, %v2501
    %v2503 = vpop.f32.mrf.mxu0
    %v2504 = vadd.f32 %v2411, %v2503
    %2505 = vmatprep.mubr.bf16.mxu0 %v1782
    %2506 = vmatmul.mubr.bf16.gmra.mxu0 %v1403
    %v2507 = vpop.f32.mrf.mxu0
    %v2508 = vadd.f32 %v2415, %v2507
    %v2509 = vpop.f32.mrf.mxu0
    %v2510 = vadd.f32 %v2417, %v2509
    %v2511 = vpop.f32.mrf.mxu0
    %v2512 = vadd.f32 %v2419, %v2511
    %v2513 = vpop.f32.mrf.mxu0
    %v2514 = vadd.f32 %v2421, %v2513
    %2515 = vdwg.mxu0
    %v2516 = vmax.f32 %v1912, %v2458
    %v2517 = vmax.f32 %v1914, %v2460
    %v2518 = vmax.f32 %v1916, %v2462
    %v2519 = vmax.f32 %v1918, %v2464
    %v2520 = vmax.f32 %v1922, %v2468
    %v2521 = vmax.f32 %v1924, %v2470
    %v2522 = vmax.f32 %v1926, %v2472
    %v2523 = vmax.f32 %v1928, %v2474
    %v2524 = vmax.f32 %v1932, %v2478
    %v2525 = vmax.f32 %v1934, %v2480
    %v2526 = vmax.f32 %v1936, %v2482
    %v2527 = vmax.f32 %v1938, %v2484
    %v2528 = vmax.f32 %v1942, %v2488
    %v2529 = vmax.f32 %v1944, %v2490
    %v2530 = vmax.f32 %v1946, %v2492
    %v2531 = vmax.f32 %v1948, %v2494
    %v2532 = vmax.f32 %v1952, %v2498
    %v2533 = vmax.f32 %v1954, %v2500
    %v2534 = vmax.f32 %v1956, %v2502
    %v2535 = vmax.f32 %v1958, %v2504
    %v2536 = vmax.f32 %v1962, %v2508
    %v2537 = vmax.f32 %v1964, %v2510
    %v2538 = vmax.f32 %v1966, %v2512
    %v2539 = vmax.f32 %v1968, %v2514
    %v2540 = vpack.c.bf16 %v2516, %v2516
    %v2541 = vpack.c.bf16 %v2517, %v2517
    %v2542 = vld [vmem:[%s6] sm:$0xf]
    %v2543 = vld [vmem:[%s6 + $0x4] sm:$0xf]
    %v2544 = vld [vmem:[%s6 + $0x8] sm:$0xf]
    %v2545 = vld [vmem:[%s6 + $0xc] sm:$0xf]
    %v2546 = vld [vmem:[%s6 + $0x10] sm:$0xf]
    %v2547 = vld [vmem:[%s6 + $0x14] sm:$0xf]
    %v2548 = vld [vmem:[%s6 + $0x18] sm:$0xf]
    %v2549 = vld [vmem:[%s6 + $0x1c] sm:$0xf]
    %v2550 = vld [vmem:[%s6 + $0x20] sm:$0xf]
    %v2551 = vld [vmem:[%s6 + $0x24] sm:$0xf]
    %v2552 = vld [vmem:[%s6 + $0x28] sm:$0xf]
    %v2553 = vld [vmem:[%s6 + $0x2c] sm:$0xf]
    %v2554 = vld [vmem:[%s6 + $0x30] sm:$0xf]
    %v2555 = vld [vmem:[%s6 + $0x34] sm:$0xf]
    %v2556 = vld [vmem:[%s6 + $0x38] sm:$0xf]
    %v2557 = vld [vmem:[%s6 + $0x3c] sm:$0xf]
    %v2558 = vld [vmem:[%s6 + $0x40] sm:$0xf]
    %v2559 = vld [vmem:[%s6 + $0x44] sm:$0xf]
    %v2560 = vld [vmem:[%s6 + $0x48] sm:$0xf]
    %v2561 = vld [vmem:[%s6 + $0x4c] sm:$0xf]
    %v2562 = vld [vmem:[%s6 + $0x50] sm:$0xf]
    %v2563 = vld [vmem:[%s6 + $0x54] sm:$0xf]
    %v2564 = vld [vmem:[%s6 + $0x58] sm:$0xf]
    %v2565 = vld [vmem:[%s6 + $0x5c] sm:$0xf]
    %v2566 = vld [vmem:[%s6 + $0x60] sm:$0xf]
    %v2567 = vld [vmem:[%s6 + $0x64] sm:$0xf]
    %v2568 = vld [vmem:[%s6 + $0x68] sm:$0xf]
    %v2569 = vld [vmem:[%s6 + $0x6c] sm:$0xf]
    %v2570 = vld [vmem:[%s6 + $0x70] sm:$0xf]
    %v2571 = vld [vmem:[%s6 + $0x74] sm:$0xf]
    %v2572 = vpack.c.bf16 %v2518, %v2518
    %v2573 = vpack.c.bf16 %v2519, %v2519
    %s2574 = scalar_lea.vmem %s6, 120
    %v2575 = vld [vmem:[%s2574] sm:$0xf]
    %v2576 = vld [vmem:[%s2574 + $0x4] sm:$0xf]
    %v2577 = vld [vmem:[%s2574 + $0x8] sm:$0xf]
    %v2578 = vld [vmem:[%s2574 + $0xc] sm:$0xf]
    %v2579 = vld [vmem:[%s2574 + $0x10] sm:$0xf]
    %v2580 = vld [vmem:[%s2574 + $0x14] sm:$0xf]
    %v2581 = vld [vmem:[%s2574 + $0x18] sm:$0xf]
    %v2582 = vld [vmem:[%s2574 + $0x1c] sm:$0xf]
    %v2583 = vld [vmem:[%s2574 + $0x20] sm:$0xf]
    %v2584 = vld [vmem:[%s2574 + $0x24] sm:$0xf]
    %v2585 = vld [vmem:[%s2574 + $0x28] sm:$0xf]
    %v2586 = vld [vmem:[%s2574 + $0x2c] sm:$0xf]
    %v2587 = vld [vmem:[%s2574 + $0x30] sm:$0xf]
    %v2588 = vld [vmem:[%s2574 + $0x34] sm:$0xf]
    %v2589 = vld [vmem:[%s2574 + $0x38] sm:$0xf]
    %v2590 = vld [vmem:[%s2574 + $0x3c] sm:$0xf]
    %v2591 = vld [vmem:[%s2574 + $0x40] sm:$0xf]
    %v2592 = vld [vmem:[%s2574 + $0x44] sm:$0xf]
    %v2593 = vld [vmem:[%s2574 + $0x48] sm:$0xf]
    %v2594 = vld [vmem:[%s2574 + $0x4c] sm:$0xf]
    %v2595 = vld [vmem:[%s2574 + $0x50] sm:$0xf]
    %v2596 = vld [vmem:[%s2574 + $0x54] sm:$0xf]
    %v2597 = vld [vmem:[%s2574 + $0x58] sm:$0xf]
    %v2598 = vld [vmem:[%s2574 + $0x5c] sm:$0xf]
    %v2599 = vld [vmem:[%s2574 + $0x60] sm:$0xf]
    %v2600 = vld [vmem:[%s2574 + $0x64] sm:$0xf]
    %v2601 = vld [vmem:[%s2574 + $0x68] sm:$0xf]
    %v2602 = vld [vmem:[%s2574 + $0x6c] sm:$0xf]
    %v2603 = vld [vmem:[%s2574 + $0x70] sm:$0xf]
    %v2604 = vld [vmem:[%s2574 + $0x74] sm:$0xf]
    %v2635 = vunpack.c.l.b16 %v2575
    %v2636 = vunpack.c.l.b16 %v2576
    %v2637 = vunpack.c.l.b16 %v2577
    %v2638 = vunpack.c.l.b16 %v2578
    %v2639 = vunpack.c.l.b16 %v2579
    %v2640 = vunpack.c.l.b16 %v2580
    %v2641 = vunpack.c.l.b16 %v2581
    %v2642 = vunpack.c.l.b16 %v2582
    %v2643 = vunpack.c.l.b16 %v2583
    %v2644 = vunpack.c.l.b16 %v2584
    %v2645 = vunpack.c.l.b16 %v2585
    %v2646 = vunpack.c.l.b16 %v2586
    %v2647 = vunpack.c.l.b16 %v2587
    %v2648 = vunpack.c.l.b16 %v2588
    %v2649 = vunpack.c.l.b16 %v2589
    %v2650 = vunpack.c.l.b16 %v2590
    %v2651 = vunpack.c.l.b16 %v2591
    %v2652 = vunpack.c.l.b16 %v2592
    %v2653 = vunpack.c.l.b16 %v2593
    %v2654 = vunpack.c.l.b16 %v2594
    %v2655 = vunpack.c.l.b16 %v2595
    %v2656 = vunpack.c.l.b16 %v2596
    %v2657 = vunpack.c.l.b16 %v2597
    %v2658 = vunpack.c.l.b16 %v2598
    %v2659 = vunpack.c.l.b16 %v2599
    %v2660 = vunpack.c.l.b16 %v2600
    %v2661 = vunpack.c.l.b16 %v2601
    %v2662 = vunpack.c.l.b16 %v2602
    %v2663 = vunpack.c.l.b16 %v2603
    %v2664 = vunpack.c.l.b16 %v2604
    %v2665 = vpack.c.b16 %v2636, %v2635
    %v2666 = vpack.c.b16 %v2638, %v2637
    %v2667 = vpack.c.b16 %v2640, %v2639
    %v2668 = vpack.c.b16 %v2642, %v2641
    %v2669 = vpack.c.b16 %v2644, %v2643
    %v2670 = vpack.c.b16 %v2646, %v2645
    %v2671 = vpack.c.b16 %v2648, %v2647
    %v2672 = vpack.c.b16 %v2650, %v2649
    %v2673 = vpack.c.b16 %v2652, %v2651
    %v2674 = vpack.c.b16 %v2654, %v2653
    %v2675 = vpack.c.b16 %v2656, %v2655
    %v2676 = vpack.c.b16 %v2658, %v2657
    %v2677 = vpack.c.b16 %v2660, %v2659
    %v2678 = vpack.c.b16 %v2662, %v2661
    %v2679 = vpack.c.b16 %v2664, %v2663
    %vm2695 = vcmask 916480
    %v2697 = vsel %vm2695, %v2573, 0
    %2699 = vmatprep.subr.bf16.mxu0 0
    %2700 = vmatpush1.bf16.msra.mxu0 %v2672
    %2701 = vmatprep.subr.bf16.mxu0 0
    %2702 = vmatpush1.bf16.msra.mxu0 %v2671
    %2703 = vmatprep.subr.bf16.mxu0 0
    %2704 = vmatpush1.bf16.msra.mxu0 %v2670
    %2705 = vmatprep.subr.bf16.mxu0 0
    %2706 = vmatpush1.bf16.msra.mxu0 %v2669
    %2707 = vmatprep.subr.bf16.mxu0 0
    %2708 = vmatpush1.bf16.msra.mxu0 %v2668
    %2709 = vmatprep.subr.bf16.mxu0 0
    %2710 = vmatpush1.bf16.msra.mxu0 %v2667
    %2711 = vmatprep.subr.bf16.mxu0 0
    %2712 = vmatpush1.bf16.msra.mxu0 %v2666
    %2713 = vmatprep.subr.bf16.mxu0 0
    %2714 = vmatpush1.bf16.msra.mxu0 %v2665
    %2715 = vmatprep.subr.bf16.mxu0 0
    %2716 = vmatpush2.bf16.msra.mxu0 0
    %2717 = vmatprep.subr.bf16.mxu0 0
    %2718 = vmatpush2.bf16.msra.mxu0 %v2679
    %2719 = vmatprep.subr.bf16.mxu0 0
    %2720 = vmatpush2.bf16.msra.mxu0 %v2678
    %2721 = vmatprep.subr.bf16.mxu0 0
    %2722 = vmatpush2.bf16.msra.mxu0 %v2677
    %2723 = vmatprep.subr.bf16.mxu0 0
    %2724 = vmatpush2.bf16.msra.mxu0 %v2676
    %2725 = vmatprep.subr.bf16.mxu0 0
    %2726 = vmatpush2.bf16.msra.mxu0 %v2675
    %2727 = vmatprep.subr.bf16.mxu0 0
    %2728 = vmatpush2.bf16.msra.mxu0 %v2674
    %2729 = vmatprep.subr.bf16.mxu0 0
    %2730 = vmatpush2.bf16.msra.mxu0 %v2673
    %2731 = vmatprep.mubr.bf16.mxu0 %v2697
    %2732 = vmatmul.mubr.bf16.gmra.mxu0 %v2572
    %v2733 = vpop.f32.mrf.mxu0
    %v2734 = vadd.f32 0.0, %v2733
    %v2735 = vpop.f32.mrf.mxu0
    %v2736 = vpop.f32.mrf.mxu0
    %v2737 = vpop.f32.mrf.mxu0
    %2738 = vdwg.mxu0
    %v2769 = vunpack.c.l.b16 %v2542
    %v2770 = vunpack.c.l.b16 %v2543
    %v2771 = vunpack.c.l.b16 %v2544
    %v2772 = vunpack.c.l.b16 %v2545
    %v2773 = vunpack.c.l.b16 %v2546
    %v2774 = vunpack.c.l.b16 %v2547
    %v2775 = vunpack.c.l.b16 %v2548
    %v2776 = vunpack.c.l.b16 %v2549
    %v2777 = vunpack.c.l.b16 %v2550
    %v2778 = vunpack.c.l.b16 %v2551
    %v2779 = vunpack.c.l.b16 %v2552
    %v2780 = vunpack.c.l.b16 %v2553
    %v2781 = vunpack.c.l.b16 %v2554
    %v2782 = vunpack.c.l.b16 %v2555
    %v2783 = vunpack.c.l.b16 %v2556
    %v2784 = vunpack.c.l.b16 %v2557
    %v2785 = vunpack.c.l.b16 %v2558
    %v2786 = vunpack.c.l.b16 %v2559
    %v2787 = vunpack.c.l.b16 %v2560
    %v2788 = vunpack.c.l.b16 %v2561
    %v2789 = vunpack.c.l.b16 %v2562
    %v2790 = vunpack.c.l.b16 %v2563
    %v2791 = vunpack.c.l.b16 %v2564
    %v2792 = vunpack.c.l.b16 %v2565
    %v2793 = vunpack.c.l.b16 %v2566
    %v2794 = vunpack.c.l.b16 %v2567
    %v2795 = vunpack.c.l.b16 %v2568
    %v2796 = vunpack.c.l.b16 %v2569
    %v2797 = vunpack.c.l.b16 %v2570
    %v2798 = vunpack.c.l.b16 %v2571
    %v2799 = vpack.c.b16 %v2770, %v2769
    %v2800 = vpack.c.b16 %v2772, %v2771
    %v2801 = vpack.c.b16 %v2774, %v2773
    %v2802 = vpack.c.b16 %v2776, %v2775
    %v2803 = vpack.c.b16 %v2778, %v2777
    %v2804 = vpack.c.b16 %v2780, %v2779
    %v2805 = vpack.c.b16 %v2782, %v2781
    %v2806 = vpack.c.b16 %v2784, %v2783
    %v2807 = vpack.c.b16 %v2786, %v2785
    %v2808 = vpack.c.b16 %v2788, %v2787
    %v2809 = vpack.c.b16 %v2790, %v2789
    %v2810 = vpack.c.b16 %v2792, %v2791
    %v2811 = vpack.c.b16 %v2794, %v2793
    %v2812 = vpack.c.b16 %v2796, %v2795
    %v2813 = vpack.c.b16 %v2798, %v2797
    %v2830 = vsel %vm2695, %v2541, 0
    %2832 = vmatprep.subr.bf16.mxu0 0
    %2833 = vmatpush1.bf16.msra.mxu0 %v2806
    %2834 = vmatprep.subr.bf16.mxu0 0
    %2835 = vmatpush1.bf16.msra.mxu0 %v2805
    %2836 = vmatprep.subr.bf16.mxu0 0
    %2837 = vmatpush1.bf16.msra.mxu0 %v2804
    %2838 = vmatprep.subr.bf16.mxu0 0
    %2839 = vmatpush1.bf16.msra.mxu0 %v2803
    %2840 = vmatprep.subr.bf16.mxu0 0
    %2841 = vmatpush1.bf16.msra.mxu0 %v2802
    %2842 = vmatprep.subr.bf16.mxu0 0
    %2843 = vmatpush1.bf16.msra.mxu0 %v2801
    %2844 = vmatprep.subr.bf16.mxu0 0
    %2845 = vmatpush1.bf16.msra.mxu0 %v2800
    %2846 = vmatprep.subr.bf16.mxu0 0
    %2847 = vmatpush1.bf16.msra.mxu0 %v2799
    %2848 = vmatprep.subr.bf16.mxu0 0
    %2849 = vmatpush2.bf16.msra.mxu0 0
    %2850 = vmatprep.subr.bf16.mxu0 0
    %2851 = vmatpush2.bf16.msra.mxu0 %v2813
    %2852 = vmatprep.subr.bf16.mxu0 0
    %2853 = vmatpush2.bf16.msra.mxu0 %v2812
    %2854 = vmatprep.subr.bf16.mxu0 0
    %2855 = vmatpush2.bf16.msra.mxu0 %v2811
    %2856 = vmatprep.subr.bf16.mxu0 0
    %2857 = vmatpush2.bf16.msra.mxu0 %v2810
    %2858 = vmatprep.subr.bf16.mxu0 0
    %2859 = vmatpush2.bf16.msra.mxu0 %v2809
    %2860 = vmatprep.subr.bf16.mxu0 0
    %2861 = vmatpush2.bf16.msra.mxu0 %v2808
    %2862 = vmatprep.subr.bf16.mxu0 0
    %2863 = vmatpush2.bf16.msra.mxu0 %v2807
    %2864 = vmatprep.mubr.bf16.mxu0 %v2830
    %2865 = vmatmul.mubr.bf16.gmra.mxu0 %v2540
    %v2866 = vpop.f32.mrf.mxu0
    %v2867 = vadd.f32 %v2734, %v2866
    %v2868 = vpop.f32.mrf.mxu0
    %v2869 = vpop.f32.mrf.mxu0
    %v2870 = vpop.f32.mrf.mxu0
    %2871 = vdwg.mxu0
    %v2872 = vpack.c.bf16 %v2520, %v2520
    %v2873 = vpack.c.bf16 %v2521, %v2521
    %s2874 = scalar_lea.vmem %s6, 240
    %v2875 = vld [vmem:[%s2874] sm:$0xf]
    %v2876 = vld [vmem:[%s2874 + $0x4] sm:$0xf]
    %v2877 = vld [vmem:[%s2874 + $0x8] sm:$0xf]
    %v2878 = vld [vmem:[%s2874 + $0xc] sm:$0xf]
    %v2879 = vld [vmem:[%s2874 + $0x10] sm:$0xf]
    %v2880 = vld [vmem:[%s2874 + $0x14] sm:$0xf]
    %v2881 = vld [vmem:[%s2874 + $0x18] sm:$0xf]
    %v2882 = vld [vmem:[%s2874 + $0x1c] sm:$0xf]
    %v2883 = vld [vmem:[%s2874 + $0x20] sm:$0xf]
    %v2884 = vld [vmem:[%s2874 + $0x24] sm:$0xf]
    %v2885 = vld [vmem:[%s2874 + $0x28] sm:$0xf]
    %v2886 = vld [vmem:[%s2874 + $0x2c] sm:$0xf]
    %v2887 = vld [vmem:[%s2874 + $0x30] sm:$0xf]
    %v2888 = vld [vmem:[%s2874 + $0x34] sm:$0xf]
    %v2889 = vld [vmem:[%s2874 + $0x38] sm:$0xf]
    %v2890 = vld [vmem:[%s2874 + $0x3c] sm:$0xf]
    %v2891 = vld [vmem:[%s2874 + $0x40] sm:$0xf]
    %v2892 = vld [vmem:[%s2874 + $0x44] sm:$0xf]
    %v2893 = vld [vmem:[%s2874 + $0x48] sm:$0xf]
    %v2894 = vld [vmem:[%s2874 + $0x4c] sm:$0xf]
    %v2895 = vld [vmem:[%s2874 + $0x50] sm:$0xf]
    %v2896 = vld [vmem:[%s2874 + $0x54] sm:$0xf]
    %v2897 = vld [vmem:[%s2874 + $0x58] sm:$0xf]
    %v2898 = vld [vmem:[%s2874 + $0x5c] sm:$0xf]
    %v2899 = vld [vmem:[%s2874 + $0x60] sm:$0xf]
    %v2900 = vld [vmem:[%s2874 + $0x64] sm:$0xf]
    %v2901 = vld [vmem:[%s2874 + $0x68] sm:$0xf]
    %v2902 = vld [vmem:[%s2874 + $0x6c] sm:$0xf]
    %v2903 = vld [vmem:[%s2874 + $0x70] sm:$0xf]
    %v2904 = vld [vmem:[%s2874 + $0x74] sm:$0xf]
    %v2935 = vunpack.c.l.b16 %v2875
    %v2936 = vunpack.c.l.b16 %v2876
    %v2937 = vunpack.c.l.b16 %v2877
    %v2938 = vunpack.c.l.b16 %v2878
    %v2939 = vunpack.c.l.b16 %v2879
    %v2940 = vunpack.c.l.b16 %v2880
    %v2941 = vunpack.c.l.b16 %v2881
    %v2942 = vunpack.c.l.b16 %v2882
    %v2943 = vunpack.c.l.b16 %v2883
    %v2944 = vunpack.c.l.b16 %v2884
    %v2945 = vunpack.c.l.b16 %v2885
    %v2946 = vunpack.c.l.b16 %v2886
    %v2947 = vunpack.c.l.b16 %v2887
    %v2948 = vunpack.c.l.b16 %v2888
    %v2949 = vunpack.c.l.b16 %v2889
    %v2950 = vunpack.c.l.b16 %v2890
    %v2951 = vunpack.c.l.b16 %v2891
    %v2952 = vunpack.c.l.b16 %v2892
    %v2953 = vunpack.c.l.b16 %v2893
    %v2954 = vunpack.c.l.b16 %v2894
    %v2955 = vunpack.c.l.b16 %v2895
    %v2956 = vunpack.c.l.b16 %v2896
    %v2957 = vunpack.c.l.b16 %v2897
    %v2958 = vunpack.c.l.b16 %v2898
    %v2959 = vunpack.c.l.b16 %v2899
    %v2960 = vunpack.c.l.b16 %v2900
    %v2961 = vunpack.c.l.b16 %v2901
    %v2962 = vunpack.c.l.b16 %v2902
    %v2963 = vunpack.c.l.b16 %v2903
    %v2964 = vunpack.c.l.b16 %v2904
    %v2965 = vpack.c.b16 %v2936, %v2935
    %v2966 = vpack.c.b16 %v2938, %v2937
    %v2967 = vpack.c.b16 %v2940, %v2939
    %v2968 = vpack.c.b16 %v2942, %v2941
    %v2969 = vpack.c.b16 %v2944, %v2943
    %v2970 = vpack.c.b16 %v2946, %v2945
    %v2971 = vpack.c.b16 %v2948, %v2947
    %v2972 = vpack.c.b16 %v2950, %v2949
    %v2973 = vpack.c.b16 %v2952, %v2951
    %v2974 = vpack.c.b16 %v2954, %v2953
    %v2975 = vpack.c.b16 %v2956, %v2955
    %v2976 = vpack.c.b16 %v2958, %v2957
    %v2977 = vpack.c.b16 %v2960, %v2959
    %v2978 = vpack.c.b16 %v2962, %v2961
    %v2979 = vpack.c.b16 %v2964, %v2963
    %v2996 = vsel %vm2695, %v2873, 0
    %2998 = vmatprep.subr.bf16.mxu0 0
    %2999 = vmatpush1.bf16.msra.mxu0 %v2972
    %3000 = vmatprep.subr.bf16.mxu0 0
    %3001 = vmatpush1.bf16.msra.mxu0 %v2971
    %3002 = vmatprep.subr.bf16.mxu0 0
    %3003 = vmatpush1.bf16.msra.mxu0 %v2970
    %3004 = vmatprep.subr.bf16.mxu0 0
    %3005 = vmatpush1.bf16.msra.mxu0 %v2969
    %3006 = vmatprep.subr.bf16.mxu0 0
    %3007 = vmatpush1.bf16.msra.mxu0 %v2968
    %3008 = vmatprep.subr.bf16.mxu0 0
    %3009 = vmatpush1.bf16.msra.mxu0 %v2967
    %3010 = vmatprep.subr.bf16.mxu0 0
    %3011 = vmatpush1.bf16.msra.mxu0 %v2966
    %3012 = vmatprep.subr.bf16.mxu0 0
    %3013 = vmatpush1.bf16.msra.mxu0 %v2965
    %3014 = vmatprep.subr.bf16.mxu0 0
    %3015 = vmatpush2.bf16.msra.mxu0 0
    %3016 = vmatprep.subr.bf16.mxu0 0
    %3017 = vmatpush2.bf16.msra.mxu0 %v2979
    %3018 = vmatprep.subr.bf16.mxu0 0
    %3019 = vmatpush2.bf16.msra.mxu0 %v2978
    %3020 = vmatprep.subr.bf16.mxu0 0
    %3021 = vmatpush2.bf16.msra.mxu0 %v2977
    %3022 = vmatprep.subr.bf16.mxu0 0
    %3023 = vmatpush2.bf16.msra.mxu0 %v2976
    %3024 = vmatprep.subr.bf16.mxu0 0
    %3025 = vmatpush2.bf16.msra.mxu0 %v2975
    %3026 = vmatprep.subr.bf16.mxu0 0
    %3027 = vmatpush2.bf16.msra.mxu0 %v2974
    %3028 = vmatprep.subr.bf16.mxu0 0
    %3029 = vmatpush2.bf16.msra.mxu0 %v2973
    %3030 = vmatprep.mubr.bf16.mxu0 %v2996
    %3031 = vmatmul.mubr.bf16.gmra.mxu0 %v2872
    %v3032 = vpop.f32.mrf.mxu0
    %v3033 = vadd.f32 0.0, %v3032
    %v3034 = vpop.f32.mrf.mxu0
    %v3035 = vpop.f32.mrf.mxu0
    %v3036 = vpop.f32.mrf.mxu0
    %3037 = vdwg.mxu0
    %v3038 = vadd.f32 %v2867, %v3033
    %v3039 = vpack.c.bf16 %v2522, %v2522
    %v3040 = vpack.c.bf16 %v2523, %v2523
    %s3041 = scalar_lea.vmem %s6, 360
    %v3042 = vld [vmem:[%s3041] sm:$0xf]
    %v3043 = vld [vmem:[%s3041 + $0x4] sm:$0xf]
    %v3044 = vld [vmem:[%s3041 + $0x8] sm:$0xf]
    %v3045 = vld [vmem:[%s3041 + $0xc] sm:$0xf]
    %v3046 = vld [vmem:[%s3041 + $0x10] sm:$0xf]
    %v3047 = vld [vmem:[%s3041 + $0x14] sm:$0xf]
    %v3048 = vld [vmem:[%s3041 + $0x18] sm:$0xf]
    %v3049 = vld [vmem:[%s3041 + $0x1c] sm:$0xf]
    %v3050 = vld [vmem:[%s3041 + $0x20] sm:$0xf]
    %v3051 = vld [vmem:[%s3041 + $0x24] sm:$0xf]
    %v3052 = vld [vmem:[%s3041 + $0x28] sm:$0xf]
    %v3053 = vld [vmem:[%s3041 + $0x2c] sm:$0xf]
    %v3054 = vld [vmem:[%s3041 + $0x30] sm:$0xf]
    %v3055 = vld [vmem:[%s3041 + $0x34] sm:$0xf]
    %v3056 = vld [vmem:[%s3041 + $0x38] sm:$0xf]
    %v3057 = vld [vmem:[%s3041 + $0x3c] sm:$0xf]
    %v3058 = vld [vmem:[%s3041 + $0x40] sm:$0xf]
    %v3059 = vld [vmem:[%s3041 + $0x44] sm:$0xf]
    %v3060 = vld [vmem:[%s3041 + $0x48] sm:$0xf]
    %v3061 = vld [vmem:[%s3041 + $0x4c] sm:$0xf]
    %v3062 = vld [vmem:[%s3041 + $0x50] sm:$0xf]
    %v3063 = vld [vmem:[%s3041 + $0x54] sm:$0xf]
    %v3064 = vld [vmem:[%s3041 + $0x58] sm:$0xf]
    %v3065 = vld [vmem:[%s3041 + $0x5c] sm:$0xf]
    %v3066 = vld [vmem:[%s3041 + $0x60] sm:$0xf]
    %v3067 = vld [vmem:[%s3041 + $0x64] sm:$0xf]
    %v3068 = vld [vmem:[%s3041 + $0x68] sm:$0xf]
    %v3069 = vld [vmem:[%s3041 + $0x6c] sm:$0xf]
    %v3070 = vld [vmem:[%s3041 + $0x70] sm:$0xf]
    %v3071 = vld [vmem:[%s3041 + $0x74] sm:$0xf]
    %v3102 = vunpack.c.l.b16 %v3042
    %v3103 = vunpack.c.l.b16 %v3043
    %v3104 = vunpack.c.l.b16 %v3044
    %v3105 = vunpack.c.l.b16 %v3045
    %v3106 = vunpack.c.l.b16 %v3046
    %v3107 = vunpack.c.l.b16 %v3047
    %v3108 = vunpack.c.l.b16 %v3048
    %v3109 = vunpack.c.l.b16 %v3049
    %v3110 = vunpack.c.l.b16 %v3050
    %v3111 = vunpack.c.l.b16 %v3051
    %v3112 = vunpack.c.l.b16 %v3052
    %v3113 = vunpack.c.l.b16 %v3053
    %v3114 = vunpack.c.l.b16 %v3054
    %v3115 = vunpack.c.l.b16 %v3055
    %v3116 = vunpack.c.l.b16 %v3056
    %v3117 = vunpack.c.l.b16 %v3057
    %v3118 = vunpack.c.l.b16 %v3058
    %v3119 = vunpack.c.l.b16 %v3059
    %v3120 = vunpack.c.l.b16 %v3060
    %v3121 = vunpack.c.l.b16 %v3061
    %v3122 = vunpack.c.l.b16 %v3062
    %v3123 = vunpack.c.l.b16 %v3063
    %v3124 = vunpack.c.l.b16 %v3064
    %v3125 = vunpack.c.l.b16 %v3065
    %v3126 = vunpack.c.l.b16 %v3066
    %v3127 = vunpack.c.l.b16 %v3067
    %v3128 = vunpack.c.l.b16 %v3068
    %v3129 = vunpack.c.l.b16 %v3069
    %v3130 = vunpack.c.l.b16 %v3070
    %v3131 = vunpack.c.l.b16 %v3071
    %v3132 = vpack.c.b16 %v3103, %v3102
    %v3133 = vpack.c.b16 %v3105, %v3104
    %v3134 = vpack.c.b16 %v3107, %v3106
    %v3135 = vpack.c.b16 %v3109, %v3108
    %v3136 = vpack.c.b16 %v3111, %v3110
    %v3137 = vpack.c.b16 %v3113, %v3112
    %v3138 = vpack.c.b16 %v3115, %v3114
    %v3139 = vpack.c.b16 %v3117, %v3116
    %v3140 = vpack.c.b16 %v3119, %v3118
    %v3141 = vpack.c.b16 %v3121, %v3120
    %v3142 = vpack.c.b16 %v3123, %v3122
    %v3143 = vpack.c.b16 %v3125, %v3124
    %v3144 = vpack.c.b16 %v3127, %v3126
    %v3145 = vpack.c.b16 %v3129, %v3128
    %v3146 = vpack.c.b16 %v3131, %v3130
    %v3163 = vsel %vm2695, %v3040, 0
    %3165 = vmatprep.subr.bf16.mxu0 0
    %3166 = vmatpush1.bf16.msra.mxu0 %v3139
    %3167 = vmatprep.subr.bf16.mxu0 0
    %3168 = vmatpush1.bf16.msra.mxu0 %v3138
    %3169 = vmatprep.subr.bf16.mxu0 0
    %3170 = vmatpush1.bf16.msra.mxu0 %v3137
    %3171 = vmatprep.subr.bf16.mxu0 0
    %3172 = vmatpush1.bf16.msra.mxu0 %v3136
    %3173 = vmatprep.subr.bf16.mxu0 0
    %3174 = vmatpush1.bf16.msra.mxu0 %v3135
    %3175 = vmatprep.subr.bf16.mxu0 0
    %3176 = vmatpush1.bf16.msra.mxu0 %v3134
    %3177 = vmatprep.subr.bf16.mxu0 0
    %3178 = vmatpush1.bf16.msra.mxu0 %v3133
    %3179 = vmatprep.subr.bf16.mxu0 0
    %3180 = vmatpush1.bf16.msra.mxu0 %v3132
    %3181 = vmatprep.subr.bf16.mxu0 0
    %3182 = vmatpush2.bf16.msra.mxu0 0
    %3183 = vmatprep.subr.bf16.mxu0 0
    %3184 = vmatpush2.bf16.msra.mxu0 %v3146
    %3185 = vmatprep.subr.bf16.mxu0 0
    %3186 = vmatpush2.bf16.msra.mxu0 %v3145
    %3187 = vmatprep.subr.bf16.mxu0 0
    %3188 = vmatpush2.bf16.msra.mxu0 %v3144
    %3189 = vmatprep.subr.bf16.mxu0 0
    %3190 = vmatpush2.bf16.msra.mxu0 %v3143
    %3191 = vmatprep.subr.bf16.mxu0 0
    %3192 = vmatpush2.bf16.msra.mxu0 %v3142
    %3193 = vmatprep.subr.bf16.mxu0 0
    %3194 = vmatpush2.bf16.msra.mxu0 %v3141
    %3195 = vmatprep.subr.bf16.mxu0 0
    %3196 = vmatpush2.bf16.msra.mxu0 %v3140
    %3197 = vmatprep.mubr.bf16.mxu0 %v3163
    %3198 = vmatmul.mubr.bf16.gmra.mxu0 %v3039
    %v3199 = vpop.f32.mrf.mxu0
    %v3200 = vadd.f32 0.0, %v3199
    %v3201 = vpop.f32.mrf.mxu0
    %v3202 = vpop.f32.mrf.mxu0
    %v3203 = vpop.f32.mrf.mxu0
    %3204 = vdwg.mxu0
    %v3205 = vadd.f32 %v3038, %v3200
    %v3206 = vpack.c.bf16 %v2524, %v2524
    %v3207 = vpack.c.bf16 %v2525, %v2525
    %s3208 = scalar_lea.vmem %s6, 480
    %v3209 = vld [vmem:[%s3208] sm:$0xf]
    %v3210 = vld [vmem:[%s3208 + $0x4] sm:$0xf]
    %v3211 = vld [vmem:[%s3208 + $0x8] sm:$0xf]
    %v3212 = vld [vmem:[%s3208 + $0xc] sm:$0xf]
    %v3213 = vld [vmem:[%s3208 + $0x10] sm:$0xf]
    %v3214 = vld [vmem:[%s3208 + $0x14] sm:$0xf]
    %v3215 = vld [vmem:[%s3208 + $0x18] sm:$0xf]
    %v3216 = vld [vmem:[%s3208 + $0x1c] sm:$0xf]
    %v3217 = vld [vmem:[%s3208 + $0x20] sm:$0xf]
    %v3218 = vld [vmem:[%s3208 + $0x24] sm:$0xf]
    %v3219 = vld [vmem:[%s3208 + $0x28] sm:$0xf]
    %v3220 = vld [vmem:[%s3208 + $0x2c] sm:$0xf]
    %v3221 = vld [vmem:[%s3208 + $0x30] sm:$0xf]
    %v3222 = vld [vmem:[%s3208 + $0x34] sm:$0xf]
    %v3223 = vld [vmem:[%s3208 + $0x38] sm:$0xf]
    %v3224 = vld [vmem:[%s3208 + $0x3c] sm:$0xf]
    %v3225 = vld [vmem:[%s3208 + $0x40] sm:$0xf]
    %v3226 = vld [vmem:[%s3208 + $0x44] sm:$0xf]
    %v3227 = vld [vmem:[%s3208 + $0x48] sm:$0xf]
    %v3228 = vld [vmem:[%s3208 + $0x4c] sm:$0xf]
    %v3229 = vld [vmem:[%s3208 + $0x50] sm:$0xf]
    %v3230 = vld [vmem:[%s3208 + $0x54] sm:$0xf]
    %v3231 = vld [vmem:[%s3208 + $0x58] sm:$0xf]
    %v3232 = vld [vmem:[%s3208 + $0x5c] sm:$0xf]
    %v3233 = vld [vmem:[%s3208 + $0x60] sm:$0xf]
    %v3234 = vld [vmem:[%s3208 + $0x64] sm:$0xf]
    %v3235 = vld [vmem:[%s3208 + $0x68] sm:$0xf]
    %v3236 = vld [vmem:[%s3208 + $0x6c] sm:$0xf]
    %v3237 = vld [vmem:[%s3208 + $0x70] sm:$0xf]
    %v3238 = vld [vmem:[%s3208 + $0x74] sm:$0xf]
    %v3269 = vunpack.c.l.b16 %v3209
    %v3270 = vunpack.c.l.b16 %v3210
    %v3271 = vunpack.c.l.b16 %v3211
    %v3272 = vunpack.c.l.b16 %v3212
    %v3273 = vunpack.c.l.b16 %v3213
    %v3274 = vunpack.c.l.b16 %v3214
    %v3275 = vunpack.c.l.b16 %v3215
    %v3276 = vunpack.c.l.b16 %v3216
    %v3277 = vunpack.c.l.b16 %v3217
    %v3278 = vunpack.c.l.b16 %v3218
    %v3279 = vunpack.c.l.b16 %v3219
    %v3280 = vunpack.c.l.b16 %v3220
    %v3281 = vunpack.c.l.b16 %v3221
    %v3282 = vunpack.c.l.b16 %v3222
    %v3283 = vunpack.c.l.b16 %v3223
    %v3284 = vunpack.c.l.b16 %v3224
    %v3285 = vunpack.c.l.b16 %v3225
    %v3286 = vunpack.c.l.b16 %v3226
    %v3287 = vunpack.c.l.b16 %v3227
    %v3288 = vunpack.c.l.b16 %v3228
    %v3289 = vunpack.c.l.b16 %v3229
    %v3290 = vunpack.c.l.b16 %v3230
    %v3291 = vunpack.c.l.b16 %v3231
    %v3292 = vunpack.c.l.b16 %v3232
    %v3293 = vunpack.c.l.b16 %v3233
    %v3294 = vunpack.c.l.b16 %v3234
    %v3295 = vunpack.c.l.b16 %v3235
    %v3296 = vunpack.c.l.b16 %v3236
    %v3297 = vunpack.c.l.b16 %v3237
    %v3298 = vunpack.c.l.b16 %v3238
    %v3299 = vpack.c.b16 %v3270, %v3269
    %v3300 = vpack.c.b16 %v3272, %v3271
    %v3301 = vpack.c.b16 %v3274, %v3273
    %v3302 = vpack.c.b16 %v3276, %v3275
    %v3303 = vpack.c.b16 %v3278, %v3277
    %v3304 = vpack.c.b16 %v3280, %v3279
    %v3305 = vpack.c.b16 %v3282, %v3281
    %v3306 = vpack.c.b16 %v3284, %v3283
    %v3307 = vpack.c.b16 %v3286, %v3285
    %v3308 = vpack.c.b16 %v3288, %v3287
    %v3309 = vpack.c.b16 %v3290, %v3289
    %v3310 = vpack.c.b16 %v3292, %v3291
    %v3311 = vpack.c.b16 %v3294, %v3293
    %v3312 = vpack.c.b16 %v3296, %v3295
    %v3313 = vpack.c.b16 %v3298, %v3297
    %v3330 = vsel %vm2695, %v3207, 0
    %3332 = vmatprep.subr.bf16.mxu0 0
    %3333 = vmatpush1.bf16.msra.mxu0 %v3306
    %3334 = vmatprep.subr.bf16.mxu0 0
    %3335 = vmatpush1.bf16.msra.mxu0 %v3305
    %3336 = vmatprep.subr.bf16.mxu0 0
    %3337 = vmatpush1.bf16.msra.mxu0 %v3304
    %3338 = vmatprep.subr.bf16.mxu0 0
    %3339 = vmatpush1.bf16.msra.mxu0 %v3303
    %3340 = vmatprep.subr.bf16.mxu0 0
    %3341 = vmatpush1.bf16.msra.mxu0 %v3302
    %3342 = vmatprep.subr.bf16.mxu0 0
    %3343 = vmatpush1.bf16.msra.mxu0 %v3301
    %3344 = vmatprep.subr.bf16.mxu0 0
    %3345 = vmatpush1.bf16.msra.mxu0 %v3300
    %3346 = vmatprep.subr.bf16.mxu0 0
    %3347 = vmatpush1.bf16.msra.mxu0 %v3299
    %3348 = vmatprep.subr.bf16.mxu0 0
    %3349 = vmatpush2.bf16.msra.mxu0 0
    %3350 = vmatprep.subr.bf16.mxu0 0
    %3351 = vmatpush2.bf16.msra.mxu0 %v3313
    %3352 = vmatprep.subr.bf16.mxu0 0
    %3353 = vmatpush2.bf16.msra.mxu0 %v3312
    %3354 = vmatprep.subr.bf16.mxu0 0
    %3355 = vmatpush2.bf16.msra.mxu0 %v3311
    %3356 = vmatprep.subr.bf16.mxu0 0
    %3357 = vmatpush2.bf16.msra.mxu0 %v3310
    %3358 = vmatprep.subr.bf16.mxu0 0
    %3359 = vmatpush2.bf16.msra.mxu0 %v3309
    %3360 = vmatprep.subr.bf16.mxu0 0
    %3361 = vmatpush2.bf16.msra.mxu0 %v3308
    %3362 = vmatprep.subr.bf16.mxu0 0
    %3363 = vmatpush2.bf16.msra.mxu0 %v3307
    %3364 = vmatprep.mubr.bf16.mxu0 %v3330
    %3365 = vmatmul.mubr.bf16.gmra.mxu0 %v3206
    %v3366 = vpop.f32.mrf.mxu0
    %v3367 = vadd.f32 0.0, %v3366
    %v3368 = vpop.f32.mrf.mxu0
    %v3369 = vpop.f32.mrf.mxu0
    %v3370 = vpop.f32.mrf.mxu0
    %3371 = vdwg.mxu0
    %v3372 = vadd.f32 %v3205, %v3367
    %v3373 = vpack.c.bf16 %v2526, %v2526
    %v3374 = vpack.c.bf16 %v2527, %v2527
    %s3375 = scalar_lea.vmem %s6, 600
    %v3376 = vld [vmem:[%s3375] sm:$0xf]
    %v3377 = vld [vmem:[%s3375 + $0x4] sm:$0xf]
    %v3378 = vld [vmem:[%s3375 + $0x8] sm:$0xf]
    %v3379 = vld [vmem:[%s3375 + $0xc] sm:$0xf]
    %v3380 = vld [vmem:[%s3375 + $0x10] sm:$0xf]
    %v3381 = vld [vmem:[%s3375 + $0x14] sm:$0xf]
    %v3382 = vld [vmem:[%s3375 + $0x18] sm:$0xf]
    %v3383 = vld [vmem:[%s3375 + $0x1c] sm:$0xf]
    %v3384 = vld [vmem:[%s3375 + $0x20] sm:$0xf]
    %v3385 = vld [vmem:[%s3375 + $0x24] sm:$0xf]
    %v3386 = vld [vmem:[%s3375 + $0x28] sm:$0xf]
    %v3387 = vld [vmem:[%s3375 + $0x2c] sm:$0xf]
    %v3388 = vld [vmem:[%s3375 + $0x30] sm:$0xf]
    %v3389 = vld [vmem:[%s3375 + $0x34] sm:$0xf]
    %v3390 = vld [vmem:[%s3375 + $0x38] sm:$0xf]
    %v3391 = vld [vmem:[%s3375 + $0x3c] sm:$0xf]
    %v3392 = vld [vmem:[%s3375 + $0x40] sm:$0xf]
    %v3393 = vld [vmem:[%s3375 + $0x44] sm:$0xf]
    %v3394 = vld [vmem:[%s3375 + $0x48] sm:$0xf]
    %v3395 = vld [vmem:[%s3375 + $0x4c] sm:$0xf]
    %v3396 = vld [vmem:[%s3375 + $0x50] sm:$0xf]
    %v3397 = vld [vmem:[%s3375 + $0x54] sm:$0xf]
    %v3398 = vld [vmem:[%s3375 + $0x58] sm:$0xf]
    %v3399 = vld [vmem:[%s3375 + $0x5c] sm:$0xf]
    %v3400 = vld [vmem:[%s3375 + $0x60] sm:$0xf]
    %v3401 = vld [vmem:[%s3375 + $0x64] sm:$0xf]
    %v3402 = vld [vmem:[%s3375 + $0x68] sm:$0xf]
    %v3403 = vld [vmem:[%s3375 + $0x6c] sm:$0xf]
    %v3404 = vld [vmem:[%s3375 + $0x70] sm:$0xf]
    %v3405 = vld [vmem:[%s3375 + $0x74] sm:$0xf]
    %v3436 = vunpack.c.l.b16 %v3376
    %v3437 = vunpack.c.l.b16 %v3377
    %v3438 = vunpack.c.l.b16 %v3378
    %v3439 = vunpack.c.l.b16 %v3379
    %v3440 = vunpack.c.l.b16 %v3380
    %v3441 = vunpack.c.l.b16 %v3381
    %v3442 = vunpack.c.l.b16 %v3382
    %v3443 = vunpack.c.l.b16 %v3383
    %v3444 = vunpack.c.l.b16 %v3384
    %v3445 = vunpack.c.l.b16 %v3385
    %v3446 = vunpack.c.l.b16 %v3386
    %v3447 = vunpack.c.l.b16 %v3387
    %v3448 = vunpack.c.l.b16 %v3388
    %v3449 = vunpack.c.l.b16 %v3389
    %v3450 = vunpack.c.l.b16 %v3390
    %v3451 = vunpack.c.l.b16 %v3391
    %v3452 = vunpack.c.l.b16 %v3392
    %v3453 = vunpack.c.l.b16 %v3393
    %v3454 = vunpack.c.l.b16 %v3394
    %v3455 = vunpack.c.l.b16 %v3395
    %v3456 = vunpack.c.l.b16 %v3396
    %v3457 = vunpack.c.l.b16 %v3397
    %v3458 = vunpack.c.l.b16 %v3398
    %v3459 = vunpack.c.l.b16 %v3399
    %v3460 = vunpack.c.l.b16 %v3400
    %v3461 = vunpack.c.l.b16 %v3401
    %v3462 = vunpack.c.l.b16 %v3402
    %v3463 = vunpack.c.l.b16 %v3403
    %v3464 = vunpack.c.l.b16 %v3404
    %v3465 = vunpack.c.l.b16 %v3405
    %v3466 = vpack.c.b16 %v3437, %v3436
    %v3467 = vpack.c.b16 %v3439, %v3438
    %v3468 = vpack.c.b16 %v3441, %v3440
    %v3469 = vpack.c.b16 %v3443, %v3442
    %v3470 = vpack.c.b16 %v3445, %v3444
    %v3471 = vpack.c.b16 %v3447, %v3446
    %v3472 = vpack.c.b16 %v3449, %v3448
    %v3473 = vpack.c.b16 %v3451, %v3450
    %v3474 = vpack.c.b16 %v3453, %v3452
    %v3475 = vpack.c.b16 %v3455, %v3454
    %v3476 = vpack.c.b16 %v3457, %v3456
    %v3477 = vpack.c.b16 %v3459, %v3458
    %v3478 = vpack.c.b16 %v3461, %v3460
    %v3479 = vpack.c.b16 %v3463, %v3462
    %v3480 = vpack.c.b16 %v3465, %v3464
    %v3497 = vsel %vm2695, %v3374, 0
    %3499 = vmatprep.subr.bf16.mxu0 0
    %3500 = vmatpush1.bf16.msra.mxu0 %v3473
    %3501 = vmatprep.subr.bf16.mxu0 0
    %3502 = vmatpush1.bf16.msra.mxu0 %v3472
    %3503 = vmatprep.subr.bf16.mxu0 0
    %3504 = vmatpush1.bf16.msra.mxu0 %v3471
    %3505 = vmatprep.subr.bf16.mxu0 0
    %3506 = vmatpush1.bf16.msra.mxu0 %v3470
    %3507 = vmatprep.subr.bf16.mxu0 0
    %3508 = vmatpush1.bf16.msra.mxu0 %v3469
    %3509 = vmatprep.subr.bf16.mxu0 0
    %3510 = vmatpush1.bf16.msra.mxu0 %v3468
    %3511 = vmatprep.subr.bf16.mxu0 0
    %3512 = vmatpush1.bf16.msra.mxu0 %v3467
    %3513 = vmatprep.subr.bf16.mxu0 0
    %3514 = vmatpush1.bf16.msra.mxu0 %v3466
    %3515 = vmatprep.subr.bf16.mxu0 0
    %3516 = vmatpush2.bf16.msra.mxu0 0
    %3517 = vmatprep.subr.bf16.mxu0 0
    %3518 = vmatpush2.bf16.msra.mxu0 %v3480
    %3519 = vmatprep.subr.bf16.mxu0 0
    %3520 = vmatpush2.bf16.msra.mxu0 %v3479
    %3521 = vmatprep.subr.bf16.mxu0 0
    %3522 = vmatpush2.bf16.msra.mxu0 %v3478
    %3523 = vmatprep.subr.bf16.mxu0 0
    %3524 = vmatpush2.bf16.msra.mxu0 %v3477
    %3525 = vmatprep.subr.bf16.mxu0 0
    %3526 = vmatpush2.bf16.msra.mxu0 %v3476
    %3527 = vmatprep.subr.bf16.mxu0 0
    %3528 = vmatpush2.bf16.msra.mxu0 %v3475
    %3529 = vmatprep.subr.bf16.mxu0 0
    %3530 = vmatpush2.bf16.msra.mxu0 %v3474
    %3531 = vmatprep.mubr.bf16.mxu0 %v3497
    %3532 = vmatmul.mubr.bf16.gmra.mxu0 %v3373
    %v3533 = vpop.f32.mrf.mxu0
    %v3534 = vadd.f32 0.0, %v3533
    %v3535 = vpop.f32.mrf.mxu0
    %v3536 = vpop.f32.mrf.mxu0
    %v3537 = vpop.f32.mrf.mxu0
    %3538 = vdwg.mxu0
    %v3539 = vadd.f32 %v3372, %v3534
    %v3540 = vpack.c.bf16 %v2528, %v2528
    %v3541 = vpack.c.bf16 %v2529, %v2529
    %s3542 = scalar_lea.vmem %s6, 720
    %v3543 = vld [vmem:[%s3542] sm:$0xf]
    %v3544 = vld [vmem:[%s3542 + $0x4] sm:$0xf]
    %v3545 = vld [vmem:[%s3542 + $0x8] sm:$0xf]
    %v3546 = vld [vmem:[%s3542 + $0xc] sm:$0xf]
    %v3547 = vld [vmem:[%s3542 + $0x10] sm:$0xf]
    %v3548 = vld [vmem:[%s3542 + $0x14] sm:$0xf]
    %v3549 = vld [vmem:[%s3542 + $0x18] sm:$0xf]
    %v3550 = vld [vmem:[%s3542 + $0x1c] sm:$0xf]
    %v3551 = vld [vmem:[%s3542 + $0x20] sm:$0xf]
    %v3552 = vld [vmem:[%s3542 + $0x24] sm:$0xf]
    %v3553 = vld [vmem:[%s3542 + $0x28] sm:$0xf]
    %v3554 = vld [vmem:[%s3542 + $0x2c] sm:$0xf]
    %v3555 = vld [vmem:[%s3542 + $0x30] sm:$0xf]
    %v3556 = vld [vmem:[%s3542 + $0x34] sm:$0xf]
    %v3557 = vld [vmem:[%s3542 + $0x38] sm:$0xf]
    %v3558 = vld [vmem:[%s3542 + $0x3c] sm:$0xf]
    %v3559 = vld [vmem:[%s3542 + $0x40] sm:$0xf]
    %v3560 = vld [vmem:[%s3542 + $0x44] sm:$0xf]
    %v3561 = vld [vmem:[%s3542 + $0x48] sm:$0xf]
    %v3562 = vld [vmem:[%s3542 + $0x4c] sm:$0xf]
    %v3563 = vld [vmem:[%s3542 + $0x50] sm:$0xf]
    %v3564 = vld [vmem:[%s3542 + $0x54] sm:$0xf]
    %v3565 = vld [vmem:[%s3542 + $0x58] sm:$0xf]
    %v3566 = vld [vmem:[%s3542 + $0x5c] sm:$0xf]
    %v3567 = vld [vmem:[%s3542 + $0x60] sm:$0xf]
    %v3568 = vld [vmem:[%s3542 + $0x64] sm:$0xf]
    %v3569 = vld [vmem:[%s3542 + $0x68] sm:$0xf]
    %v3570 = vld [vmem:[%s3542 + $0x6c] sm:$0xf]
    %v3571 = vld [vmem:[%s3542 + $0x70] sm:$0xf]
    %v3572 = vld [vmem:[%s3542 + $0x74] sm:$0xf]
    %v3603 = vunpack.c.l.b16 %v3543
    %v3604 = vunpack.c.l.b16 %v3544
    %v3605 = vunpack.c.l.b16 %v3545
    %v3606 = vunpack.c.l.b16 %v3546
    %v3607 = vunpack.c.l.b16 %v3547
    %v3608 = vunpack.c.l.b16 %v3548
    %v3609 = vunpack.c.l.b16 %v3549
    %v3610 = vunpack.c.l.b16 %v3550
    %v3611 = vunpack.c.l.b16 %v3551
    %v3612 = vunpack.c.l.b16 %v3552
    %v3613 = vunpack.c.l.b16 %v3553
    %v3614 = vunpack.c.l.b16 %v3554
    %v3615 = vunpack.c.l.b16 %v3555
    %v3616 = vunpack.c.l.b16 %v3556
    %v3617 = vunpack.c.l.b16 %v3557
    %v3618 = vunpack.c.l.b16 %v3558
    %v3619 = vunpack.c.l.b16 %v3559
    %v3620 = vunpack.c.l.b16 %v3560
    %v3621 = vunpack.c.l.b16 %v3561
    %v3622 = vunpack.c.l.b16 %v3562
    %v3623 = vunpack.c.l.b16 %v3563
    %v3624 = vunpack.c.l.b16 %v3564
    %v3625 = vunpack.c.l.b16 %v3565
    %v3626 = vunpack.c.l.b16 %v3566
    %v3627 = vunpack.c.l.b16 %v3567
    %v3628 = vunpack.c.l.b16 %v3568
    %v3629 = vunpack.c.l.b16 %v3569
    %v3630 = vunpack.c.l.b16 %v3570
    %v3631 = vunpack.c.l.b16 %v3571
    %v3632 = vunpack.c.l.b16 %v3572
    %v3633 = vpack.c.b16 %v3604, %v3603
    %v3634 = vpack.c.b16 %v3606, %v3605
    %v3635 = vpack.c.b16 %v3608, %v3607
    %v3636 = vpack.c.b16 %v3610, %v3609
    %v3637 = vpack.c.b16 %v3612, %v3611
    %v3638 = vpack.c.b16 %v3614, %v3613
    %v3639 = vpack.c.b16 %v3616, %v3615
    %v3640 = vpack.c.b16 %v3618, %v3617
    %v3641 = vpack.c.b16 %v3620, %v3619
    %v3642 = vpack.c.b16 %v3622, %v3621
    %v3643 = vpack.c.b16 %v3624, %v3623
    %v3644 = vpack.c.b16 %v3626, %v3625
    %v3645 = vpack.c.b16 %v3628, %v3627
    %v3646 = vpack.c.b16 %v3630, %v3629
    %v3647 = vpack.c.b16 %v3632, %v3631
    %v3664 = vsel %vm2695, %v3541, 0
    %3666 = vmatprep.subr.bf16.mxu0 0
    %3667 = vmatpush1.bf16.msra.mxu0 %v3640
    %3668 = vmatprep.subr.bf16.mxu0 0
    %3669 = vmatpush1.bf16.msra.mxu0 %v3639
    %3670 = vmatprep.subr.bf16.mxu0 0
    %3671 = vmatpush1.bf16.msra.mxu0 %v3638
    %3672 = vmatprep.subr.bf16.mxu0 0
    %3673 = vmatpush1.bf16.msra.mxu0 %v3637
    %3674 = vmatprep.subr.bf16.mxu0 0
    %3675 = vmatpush1.bf16.msra.mxu0 %v3636
    %3676 = vmatprep.subr.bf16.mxu0 0
    %3677 = vmatpush1.bf16.msra.mxu0 %v3635
    %3678 = vmatprep.subr.bf16.mxu0 0
    %3679 = vmatpush1.bf16.msra.mxu0 %v3634
    %3680 = vmatprep.subr.bf16.mxu0 0
    %3681 = vmatpush1.bf16.msra.mxu0 %v3633
    %3682 = vmatprep.subr.bf16.mxu0 0
    %3683 = vmatpush2.bf16.msra.mxu0 0
    %3684 = vmatprep.subr.bf16.mxu0 0
    %3685 = vmatpush2.bf16.msra.mxu0 %v3647
    %3686 = vmatprep.subr.bf16.mxu0 0
    %3687 = vmatpush2.bf16.msra.mxu0 %v3646
    %3688 = vmatprep.subr.bf16.mxu0 0
    %3689 = vmatpush2.bf16.msra.mxu0 %v3645
    %3690 = vmatprep.subr.bf16.mxu0 0
    %3691 = vmatpush2.bf16.msra.mxu0 %v3644
    %3692 = vmatprep.subr.bf16.mxu0 0
    %3693 = vmatpush2.bf16.msra.mxu0 %v3643
    %3694 = vmatprep.subr.bf16.mxu0 0
    %3695 = vmatpush2.bf16.msra.mxu0 %v3642
    %3696 = vmatprep.subr.bf16.mxu0 0
    %3697 = vmatpush2.bf16.msra.mxu0 %v3641
    %3698 = vmatprep.mubr.bf16.mxu0 %v3664
    %3699 = vmatmul.mubr.bf16.gmra.mxu0 %v3540
    %v3700 = vpop.f32.mrf.mxu0
    %v3701 = vadd.f32 0.0, %v3700
    %v3702 = vpop.f32.mrf.mxu0
    %v3703 = vpop.f32.mrf.mxu0
    %v3704 = vpop.f32.mrf.mxu0
    %3705 = vdwg.mxu0
    %v3706 = vadd.f32 %v3539, %v3701
    %v3707 = vpack.c.bf16 %v2530, %v2530
    %v3708 = vpack.c.bf16 %v2531, %v2531
    %s3709 = scalar_lea.vmem %s6, 840
    %v3710 = vld [vmem:[%s3709] sm:$0xf]
    %v3711 = vld [vmem:[%s3709 + $0x4] sm:$0xf]
    %v3712 = vld [vmem:[%s3709 + $0x8] sm:$0xf]
    %v3713 = vld [vmem:[%s3709 + $0xc] sm:$0xf]
    %v3714 = vld [vmem:[%s3709 + $0x10] sm:$0xf]
    %v3715 = vld [vmem:[%s3709 + $0x14] sm:$0xf]
    %v3716 = vld [vmem:[%s3709 + $0x18] sm:$0xf]
    %v3717 = vld [vmem:[%s3709 + $0x1c] sm:$0xf]
    %v3718 = vld [vmem:[%s3709 + $0x20] sm:$0xf]
    %v3719 = vld [vmem:[%s3709 + $0x24] sm:$0xf]
    %v3720 = vld [vmem:[%s3709 + $0x28] sm:$0xf]
    %v3721 = vld [vmem:[%s3709 + $0x2c] sm:$0xf]
    %v3722 = vld [vmem:[%s3709 + $0x30] sm:$0xf]
    %v3723 = vld [vmem:[%s3709 + $0x34] sm:$0xf]
    %v3724 = vld [vmem:[%s3709 + $0x38] sm:$0xf]
    %v3725 = vld [vmem:[%s3709 + $0x3c] sm:$0xf]
    %v3726 = vld [vmem:[%s3709 + $0x40] sm:$0xf]
    %v3727 = vld [vmem:[%s3709 + $0x44] sm:$0xf]
    %v3728 = vld [vmem:[%s3709 + $0x48] sm:$0xf]
    %v3729 = vld [vmem:[%s3709 + $0x4c] sm:$0xf]
    %v3730 = vld [vmem:[%s3709 + $0x50] sm:$0xf]
    %v3731 = vld [vmem:[%s3709 + $0x54] sm:$0xf]
    %v3732 = vld [vmem:[%s3709 + $0x58] sm:$0xf]
    %v3733 = vld [vmem:[%s3709 + $0x5c] sm:$0xf]
    %v3734 = vld [vmem:[%s3709 + $0x60] sm:$0xf]
    %v3735 = vld [vmem:[%s3709 + $0x64] sm:$0xf]
    %v3736 = vld [vmem:[%s3709 + $0x68] sm:$0xf]
    %v3737 = vld [vmem:[%s3709 + $0x6c] sm:$0xf]
    %v3738 = vld [vmem:[%s3709 + $0x70] sm:$0xf]
    %v3739 = vld [vmem:[%s3709 + $0x74] sm:$0xf]
    %v3770 = vunpack.c.l.b16 %v3710
    %v3771 = vunpack.c.l.b16 %v3711
    %v3772 = vunpack.c.l.b16 %v3712
    %v3773 = vunpack.c.l.b16 %v3713
    %v3774 = vunpack.c.l.b16 %v3714
    %v3775 = vunpack.c.l.b16 %v3715
    %v3776 = vunpack.c.l.b16 %v3716
    %v3777 = vunpack.c.l.b16 %v3717
    %v3778 = vunpack.c.l.b16 %v3718
    %v3779 = vunpack.c.l.b16 %v3719
    %v3780 = vunpack.c.l.b16 %v3720
    %v3781 = vunpack.c.l.b16 %v3721
    %v3782 = vunpack.c.l.b16 %v3722
    %v3783 = vunpack.c.l.b16 %v3723
    %v3784 = vunpack.c.l.b16 %v3724
    %v3785 = vunpack.c.l.b16 %v3725
    %v3786 = vunpack.c.l.b16 %v3726
    %v3787 = vunpack.c.l.b16 %v3727
    %v3788 = vunpack.c.l.b16 %v3728
    %v3789 = vunpack.c.l.b16 %v3729
    %v3790 = vunpack.c.l.b16 %v3730
    %v3791 = vunpack.c.l.b16 %v3731
    %v3792 = vunpack.c.l.b16 %v3732
    %v3793 = vunpack.c.l.b16 %v3733
    %v3794 = vunpack.c.l.b16 %v3734
    %v3795 = vunpack.c.l.b16 %v3735
    %v3796 = vunpack.c.l.b16 %v3736
    %v3797 = vunpack.c.l.b16 %v3737
    %v3798 = vunpack.c.l.b16 %v3738
    %v3799 = vunpack.c.l.b16 %v3739
    %v3800 = vpack.c.b16 %v3771, %v3770
    %v3801 = vpack.c.b16 %v3773, %v3772
    %v3802 = vpack.c.b16 %v3775, %v3774
    %v3803 = vpack.c.b16 %v3777, %v3776
    %v3804 = vpack.c.b16 %v3779, %v3778
    %v3805 = vpack.c.b16 %v3781, %v3780
    %v3806 = vpack.c.b16 %v3783, %v3782
    %v3807 = vpack.c.b16 %v3785, %v3784
    %v3808 = vpack.c.b16 %v3787, %v3786
    %v3809 = vpack.c.b16 %v3789, %v3788
    %v3810 = vpack.c.b16 %v3791, %v3790
    %v3811 = vpack.c.b16 %v3793, %v3792
    %v3812 = vpack.c.b16 %v3795, %v3794
    %v3813 = vpack.c.b16 %v3797, %v3796
    %v3814 = vpack.c.b16 %v3799, %v3798
    %v3831 = vsel %vm2695, %v3708, 0
    %3833 = vmatprep.subr.bf16.mxu0 0
    %3834 = vmatpush1.bf16.msra.mxu0 %v3807
    %3835 = vmatprep.subr.bf16.mxu0 0
    %3836 = vmatpush1.bf16.msra.mxu0 %v3806
    %3837 = vmatprep.subr.bf16.mxu0 0
    %3838 = vmatpush1.bf16.msra.mxu0 %v3805
    %3839 = vmatprep.subr.bf16.mxu0 0
    %3840 = vmatpush1.bf16.msra.mxu0 %v3804
    %3841 = vmatprep.subr.bf16.mxu0 0
    %3842 = vmatpush1.bf16.msra.mxu0 %v3803
    %3843 = vmatprep.subr.bf16.mxu0 0
    %3844 = vmatpush1.bf16.msra.mxu0 %v3802
    %3845 = vmatprep.subr.bf16.mxu0 0
    %3846 = vmatpush1.bf16.msra.mxu0 %v3801
    %3847 = vmatprep.subr.bf16.mxu0 0
    %3848 = vmatpush1.bf16.msra.mxu0 %v3800
    %3849 = vmatprep.subr.bf16.mxu0 0
    %3850 = vmatpush2.bf16.msra.mxu0 0
    %3851 = vmatprep.subr.bf16.mxu0 0
    %3852 = vmatpush2.bf16.msra.mxu0 %v3814
    %3853 = vmatprep.subr.bf16.mxu0 0
    %3854 = vmatpush2.bf16.msra.mxu0 %v3813
    %3855 = vmatprep.subr.bf16.mxu0 0
    %3856 = vmatpush2.bf16.msra.mxu0 %v3812
    %3857 = vmatprep.subr.bf16.mxu0 0
    %3858 = vmatpush2.bf16.msra.mxu0 %v3811
    %3859 = vmatprep.subr.bf16.mxu0 0
    %3860 = vmatpush2.bf16.msra.mxu0 %v3810
    %3861 = vmatprep.subr.bf16.mxu0 0
    %3862 = vmatpush2.bf16.msra.mxu0 %v3809
    %3863 = vmatprep.subr.bf16.mxu0 0
    %3864 = vmatpush2.bf16.msra.mxu0 %v3808
    %3865 = vmatprep.mubr.bf16.mxu0 %v3831
    %3866 = vmatmul.mubr.bf16.gmra.mxu0 %v3707
    %v3867 = vpop.f32.mrf.mxu0
    %v3868 = vadd.f32 0.0, %v3867
    %v3869 = vpop.f32.mrf.mxu0
    %v3870 = vpop.f32.mrf.mxu0
    %v3871 = vpop.f32.mrf.mxu0
    %3872 = vdwg.mxu0
    %v3873 = vadd.f32 %v3706, %v3868
    %v3874 = vpack.c.bf16 %v2532, %v2532
    %v3875 = vpack.c.bf16 %v2533, %v2533
    %s3876 = scalar_lea.vmem %s6, 960
    %v3877 = vld [vmem:[%s3876] sm:$0xf]
    %v3878 = vld [vmem:[%s3876 + $0x4] sm:$0xf]
    %v3879 = vld [vmem:[%s3876 + $0x8] sm:$0xf]
    %v3880 = vld [vmem:[%s3876 + $0xc] sm:$0xf]
    %v3881 = vld [vmem:[%s3876 + $0x10] sm:$0xf]
    %v3882 = vld [vmem:[%s3876 + $0x14] sm:$0xf]
    %v3883 = vld [vmem:[%s3876 + $0x18] sm:$0xf]
    %v3884 = vld [vmem:[%s3876 + $0x1c] sm:$0xf]
    %v3885 = vld [vmem:[%s3876 + $0x20] sm:$0xf]
    %v3886 = vld [vmem:[%s3876 + $0x24] sm:$0xf]
    %v3887 = vld [vmem:[%s3876 + $0x28] sm:$0xf]
    %v3888 = vld [vmem:[%s3876 + $0x2c] sm:$0xf]
    %v3889 = vld [vmem:[%s3876 + $0x30] sm:$0xf]
    %v3890 = vld [vmem:[%s3876 + $0x34] sm:$0xf]
    %v3891 = vld [vmem:[%s3876 + $0x38] sm:$0xf]
    %v3892 = vld [vmem:[%s3876 + $0x3c] sm:$0xf]
    %v3893 = vld [vmem:[%s3876 + $0x40] sm:$0xf]
    %v3894 = vld [vmem:[%s3876 + $0x44] sm:$0xf]
    %v3895 = vld [vmem:[%s3876 + $0x48] sm:$0xf]
    %v3896 = vld [vmem:[%s3876 + $0x4c] sm:$0xf]
    %v3897 = vld [vmem:[%s3876 + $0x50] sm:$0xf]
    %v3898 = vld [vmem:[%s3876 + $0x54] sm:$0xf]
    %v3899 = vld [vmem:[%s3876 + $0x58] sm:$0xf]
    %v3900 = vld [vmem:[%s3876 + $0x5c] sm:$0xf]
    %v3901 = vld [vmem:[%s3876 + $0x60] sm:$0xf]
    %v3902 = vld [vmem:[%s3876 + $0x64] sm:$0xf]
    %v3903 = vld [vmem:[%s3876 + $0x68] sm:$0xf]
    %v3904 = vld [vmem:[%s3876 + $0x6c] sm:$0xf]
    %v3905 = vld [vmem:[%s3876 + $0x70] sm:$0xf]
    %v3906 = vld [vmem:[%s3876 + $0x74] sm:$0xf]
    %v3937 = vunpack.c.l.b16 %v3877
    %v3938 = vunpack.c.l.b16 %v3878
    %v3939 = vunpack.c.l.b16 %v3879
    %v3940 = vunpack.c.l.b16 %v3880
    %v3941 = vunpack.c.l.b16 %v3881
    %v3942 = vunpack.c.l.b16 %v3882
    %v3943 = vunpack.c.l.b16 %v3883
    %v3944 = vunpack.c.l.b16 %v3884
    %v3945 = vunpack.c.l.b16 %v3885
    %v3946 = vunpack.c.l.b16 %v3886
    %v3947 = vunpack.c.l.b16 %v3887
    %v3948 = vunpack.c.l.b16 %v3888
    %v3949 = vunpack.c.l.b16 %v3889
    %v3950 = vunpack.c.l.b16 %v3890
    %v3951 = vunpack.c.l.b16 %v3891
    %v3952 = vunpack.c.l.b16 %v3892
    %v3953 = vunpack.c.l.b16 %v3893
    %v3954 = vunpack.c.l.b16 %v3894
    %v3955 = vunpack.c.l.b16 %v3895
    %v3956 = vunpack.c.l.b16 %v3896
    %v3957 = vunpack.c.l.b16 %v3897
    %v3958 = vunpack.c.l.b16 %v3898
    %v3959 = vunpack.c.l.b16 %v3899
    %v3960 = vunpack.c.l.b16 %v3900
    %v3961 = vunpack.c.l.b16 %v3901
    %v3962 = vunpack.c.l.b16 %v3902
    %v3963 = vunpack.c.l.b16 %v3903
    %v3964 = vunpack.c.l.b16 %v3904
    %v3965 = vunpack.c.l.b16 %v3905
    %v3966 = vunpack.c.l.b16 %v3906
    %v3967 = vpack.c.b16 %v3938, %v3937
    %v3968 = vpack.c.b16 %v3940, %v3939
    %v3969 = vpack.c.b16 %v3942, %v3941
    %v3970 = vpack.c.b16 %v3944, %v3943
    %v3971 = vpack.c.b16 %v3946, %v3945
    %v3972 = vpack.c.b16 %v3948, %v3947
    %v3973 = vpack.c.b16 %v3950, %v3949
    %v3974 = vpack.c.b16 %v3952, %v3951
    %v3975 = vpack.c.b16 %v3954, %v3953
    %v3976 = vpack.c.b16 %v3956, %v3955
    %v3977 = vpack.c.b16 %v3958, %v3957
    %v3978 = vpack.c.b16 %v3960, %v3959
    %v3979 = vpack.c.b16 %v3962, %v3961
    %v3980 = vpack.c.b16 %v3964, %v3963
    %v3981 = vpack.c.b16 %v3966, %v3965
    %v3998 = vsel %vm2695, %v3875, 0
    %4000 = vmatprep.subr.bf16.mxu0 0
    %4001 = vmatpush1.bf16.msra.mxu0 %v3974
    %4002 = vmatprep.subr.bf16.mxu0 0
    %4003 = vmatpush1.bf16.msra.mxu0 %v3973
    %4004 = vmatprep.subr.bf16.mxu0 0
    %4005 = vmatpush1.bf16.msra.mxu0 %v3972
    %4006 = vmatprep.subr.bf16.mxu0 0
    %4007 = vmatpush1.bf16.msra.mxu0 %v3971
    %4008 = vmatprep.subr.bf16.mxu0 0
    %4009 = vmatpush1.bf16.msra.mxu0 %v3970
    %4010 = vmatprep.subr.bf16.mxu0 0
    %4011 = vmatpush1.bf16.msra.mxu0 %v3969
    %4012 = vmatprep.subr.bf16.mxu0 0
    %4013 = vmatpush1.bf16.msra.mxu0 %v3968
    %4014 = vmatprep.subr.bf16.mxu0 0
    %4015 = vmatpush1.bf16.msra.mxu0 %v3967
    %4016 = vmatprep.subr.bf16.mxu0 0
    %4017 = vmatpush2.bf16.msra.mxu0 0
    %4018 = vmatprep.subr.bf16.mxu0 0
    %4019 = vmatpush2.bf16.msra.mxu0 %v3981
    %4020 = vmatprep.subr.bf16.mxu0 0
    %4021 = vmatpush2.bf16.msra.mxu0 %v3980
    %4022 = vmatprep.subr.bf16.mxu0 0
    %4023 = vmatpush2.bf16.msra.mxu0 %v3979
    %4024 = vmatprep.subr.bf16.mxu0 0
    %4025 = vmatpush2.bf16.msra.mxu0 %v3978
    %4026 = vmatprep.subr.bf16.mxu0 0
    %4027 = vmatpush2.bf16.msra.mxu0 %v3977
    %4028 = vmatprep.subr.bf16.mxu0 0
    %4029 = vmatpush2.bf16.msra.mxu0 %v3976
    %4030 = vmatprep.subr.bf16.mxu0 0
    %4031 = vmatpush2.bf16.msra.mxu0 %v3975
    %4032 = vmatprep.mubr.bf16.mxu0 %v3998
    %4033 = vmatmul.mubr.bf16.gmra.mxu0 %v3874
    %v4034 = vpop.f32.mrf.mxu0
    %v4035 = vadd.f32 0.0, %v4034
    %v4036 = vpop.f32.mrf.mxu0
    %v4037 = vpop.f32.mrf.mxu0
    %v4038 = vpop.f32.mrf.mxu0
    %4039 = vdwg.mxu0
    %v4040 = vadd.f32 %v3873, %v4035
    %v4041 = vpack.c.bf16 %v2534, %v2534
    %v4042 = vpack.c.bf16 %v2535, %v2535
    %s4043 = scalar_lea.vmem %s6, 1080
    %v4044 = vld [vmem:[%s4043] sm:$0xf]
    %v4045 = vld [vmem:[%s4043 + $0x4] sm:$0xf]
    %v4046 = vld [vmem:[%s4043 + $0x8] sm:$0xf]
    %v4047 = vld [vmem:[%s4043 + $0xc] sm:$0xf]
    %v4048 = vld [vmem:[%s4043 + $0x10] sm:$0xf]
    %v4049 = vld [vmem:[%s4043 + $0x14] sm:$0xf]
    %v4050 = vld [vmem:[%s4043 + $0x18] sm:$0xf]
    %v4051 = vld [vmem:[%s4043 + $0x1c] sm:$0xf]
    %v4052 = vld [vmem:[%s4043 + $0x20] sm:$0xf]
    %v4053 = vld [vmem:[%s4043 + $0x24] sm:$0xf]
    %v4054 = vld [vmem:[%s4043 + $0x28] sm:$0xf]
    %v4055 = vld [vmem:[%s4043 + $0x2c] sm:$0xf]
    %v4056 = vld [vmem:[%s4043 + $0x30] sm:$0xf]
    %v4057 = vld [vmem:[%s4043 + $0x34] sm:$0xf]
    %v4058 = vld [vmem:[%s4043 + $0x38] sm:$0xf]
    %v4059 = vld [vmem:[%s4043 + $0x3c] sm:$0xf]
    %v4060 = vld [vmem:[%s4043 + $0x40] sm:$0xf]
    %v4061 = vld [vmem:[%s4043 + $0x44] sm:$0xf]
    %v4062 = vld [vmem:[%s4043 + $0x48] sm:$0xf]
    %v4063 = vld [vmem:[%s4043 + $0x4c] sm:$0xf]
    %v4064 = vld [vmem:[%s4043 + $0x50] sm:$0xf]
    %v4065 = vld [vmem:[%s4043 + $0x54] sm:$0xf]
    %v4066 = vld [vmem:[%s4043 + $0x58] sm:$0xf]
    %v4067 = vld [vmem:[%s4043 + $0x5c] sm:$0xf]
    %v4068 = vld [vmem:[%s4043 + $0x60] sm:$0xf]
    %v4069 = vld [vmem:[%s4043 + $0x64] sm:$0xf]
    %v4070 = vld [vmem:[%s4043 + $0x68] sm:$0xf]
    %v4071 = vld [vmem:[%s4043 + $0x6c] sm:$0xf]
    %v4072 = vld [vmem:[%s4043 + $0x70] sm:$0xf]
    %v4073 = vld [vmem:[%s4043 + $0x74] sm:$0xf]
    %v4104 = vunpack.c.l.b16 %v4044
    %v4105 = vunpack.c.l.b16 %v4045
    %v4106 = vunpack.c.l.b16 %v4046
    %v4107 = vunpack.c.l.b16 %v4047
    %v4108 = vunpack.c.l.b16 %v4048
    %v4109 = vunpack.c.l.b16 %v4049
    %v4110 = vunpack.c.l.b16 %v4050
    %v4111 = vunpack.c.l.b16 %v4051
    %v4112 = vunpack.c.l.b16 %v4052
    %v4113 = vunpack.c.l.b16 %v4053
    %v4114 = vunpack.c.l.b16 %v4054
    %v4115 = vunpack.c.l.b16 %v4055
    %v4116 = vunpack.c.l.b16 %v4056
    %v4117 = vunpack.c.l.b16 %v4057
    %v4118 = vunpack.c.l.b16 %v4058
    %v4119 = vunpack.c.l.b16 %v4059
    %v4120 = vunpack.c.l.b16 %v4060
    %v4121 = vunpack.c.l.b16 %v4061
    %v4122 = vunpack.c.l.b16 %v4062
    %v4123 = vunpack.c.l.b16 %v4063
    %v4124 = vunpack.c.l.b16 %v4064
    %v4125 = vunpack.c.l.b16 %v4065
    %v4126 = vunpack.c.l.b16 %v4066
    %v4127 = vunpack.c.l.b16 %v4067
    %v4128 = vunpack.c.l.b16 %v4068
    %v4129 = vunpack.c.l.b16 %v4069
    %v4130 = vunpack.c.l.b16 %v4070
    %v4131 = vunpack.c.l.b16 %v4071
    %v4132 = vunpack.c.l.b16 %v4072
    %v4133 = vunpack.c.l.b16 %v4073
    %v4134 = vpack.c.b16 %v4105, %v4104
    %v4135 = vpack.c.b16 %v4107, %v4106
    %v4136 = vpack.c.b16 %v4109, %v4108
    %v4137 = vpack.c.b16 %v4111, %v4110
    %v4138 = vpack.c.b16 %v4113, %v4112
    %v4139 = vpack.c.b16 %v4115, %v4114
    %v4140 = vpack.c.b16 %v4117, %v4116
    %v4141 = vpack.c.b16 %v4119, %v4118
    %v4142 = vpack.c.b16 %v4121, %v4120
    %v4143 = vpack.c.b16 %v4123, %v4122
    %v4144 = vpack.c.b16 %v4125, %v4124
    %v4145 = vpack.c.b16 %v4127, %v4126
    %v4146 = vpack.c.b16 %v4129, %v4128
    %v4147 = vpack.c.b16 %v4131, %v4130
    %v4148 = vpack.c.b16 %v4133, %v4132
    %v4165 = vsel %vm2695, %v4042, 0
    %4167 = vmatprep.subr.bf16.mxu0 0
    %4168 = vmatpush1.bf16.msra.mxu0 %v4141
    %4169 = vmatprep.subr.bf16.mxu0 0
    %4170 = vmatpush1.bf16.msra.mxu0 %v4140
    %4171 = vmatprep.subr.bf16.mxu0 0
    %4172 = vmatpush1.bf16.msra.mxu0 %v4139
    %4173 = vmatprep.subr.bf16.mxu0 0
    %4174 = vmatpush1.bf16.msra.mxu0 %v4138
    %4175 = vmatprep.subr.bf16.mxu0 0
    %4176 = vmatpush1.bf16.msra.mxu0 %v4137
    %4177 = vmatprep.subr.bf16.mxu0 0
    %4178 = vmatpush1.bf16.msra.mxu0 %v4136
    %4179 = vmatprep.subr.bf16.mxu0 0
    %4180 = vmatpush1.bf16.msra.mxu0 %v4135
    %4181 = vmatprep.subr.bf16.mxu0 0
    %4182 = vmatpush1.bf16.msra.mxu0 %v4134
    %4183 = vmatprep.subr.bf16.mxu0 0
    %4184 = vmatpush2.bf16.msra.mxu0 0
    %4185 = vmatprep.subr.bf16.mxu0 0
    %4186 = vmatpush2.bf16.msra.mxu0 %v4148
    %4187 = vmatprep.subr.bf16.mxu0 0
    %4188 = vmatpush2.bf16.msra.mxu0 %v4147
    %4189 = vmatprep.subr.bf16.mxu0 0
    %4190 = vmatpush2.bf16.msra.mxu0 %v4146
    %4191 = vmatprep.subr.bf16.mxu0 0
    %4192 = vmatpush2.bf16.msra.mxu0 %v4145
    %4193 = vmatprep.subr.bf16.mxu0 0
    %4194 = vmatpush2.bf16.msra.mxu0 %v4144
    %4195 = vmatprep.subr.bf16.mxu0 0
    %4196 = vmatpush2.bf16.msra.mxu0 %v4143
    %4197 = vmatprep.subr.bf16.mxu0 0
    %4198 = vmatpush2.bf16.msra.mxu0 %v4142
    %4199 = vmatprep.mubr.bf16.mxu0 %v4165
    %4200 = vmatmul.mubr.bf16.gmra.mxu0 %v4041
    %v4201 = vpop.f32.mrf.mxu0
    %v4202 = vadd.f32 0.0, %v4201
    %v4203 = vpop.f32.mrf.mxu0
    %v4204 = vpop.f32.mrf.mxu0
    %v4205 = vpop.f32.mrf.mxu0
    %4206 = vdwg.mxu0
    %v4207 = vadd.f32 %v4040, %v4202
    %v4208 = vpack.c.bf16 %v2536, %v2536
    %v4209 = vpack.c.bf16 %v2537, %v2537
    %s4210 = scalar_lea.vmem %s6, 1200
    %v4211 = vld [vmem:[%s4210] sm:$0xf]
    %v4212 = vld [vmem:[%s4210 + $0x4] sm:$0xf]
    %v4213 = vld [vmem:[%s4210 + $0x8] sm:$0xf]
    %v4214 = vld [vmem:[%s4210 + $0xc] sm:$0xf]
    %v4215 = vld [vmem:[%s4210 + $0x10] sm:$0xf]
    %v4216 = vld [vmem:[%s4210 + $0x14] sm:$0xf]
    %v4217 = vld [vmem:[%s4210 + $0x18] sm:$0xf]
    %v4218 = vld [vmem:[%s4210 + $0x1c] sm:$0xf]
    %v4219 = vld [vmem:[%s4210 + $0x20] sm:$0xf]
    %v4220 = vld [vmem:[%s4210 + $0x24] sm:$0xf]
    %v4221 = vld [vmem:[%s4210 + $0x28] sm:$0xf]
    %v4222 = vld [vmem:[%s4210 + $0x2c] sm:$0xf]
    %v4223 = vld [vmem:[%s4210 + $0x30] sm:$0xf]
    %v4224 = vld [vmem:[%s4210 + $0x34] sm:$0xf]
    %v4225 = vld [vmem:[%s4210 + $0x38] sm:$0xf]
    %v4226 = vld [vmem:[%s4210 + $0x3c] sm:$0xf]
    %v4227 = vld [vmem:[%s4210 + $0x40] sm:$0xf]
    %v4228 = vld [vmem:[%s4210 + $0x44] sm:$0xf]
    %v4229 = vld [vmem:[%s4210 + $0x48] sm:$0xf]
    %v4230 = vld [vmem:[%s4210 + $0x4c] sm:$0xf]
    %v4231 = vld [vmem:[%s4210 + $0x50] sm:$0xf]
    %v4232 = vld [vmem:[%s4210 + $0x54] sm:$0xf]
    %v4233 = vld [vmem:[%s4210 + $0x58] sm:$0xf]
    %v4234 = vld [vmem:[%s4210 + $0x5c] sm:$0xf]
    %v4235 = vld [vmem:[%s4210 + $0x60] sm:$0xf]
    %v4236 = vld [vmem:[%s4210 + $0x64] sm:$0xf]
    %v4237 = vld [vmem:[%s4210 + $0x68] sm:$0xf]
    %v4238 = vld [vmem:[%s4210 + $0x6c] sm:$0xf]
    %v4239 = vld [vmem:[%s4210 + $0x70] sm:$0xf]
    %v4240 = vld [vmem:[%s4210 + $0x74] sm:$0xf]
    %v4271 = vunpack.c.l.b16 %v4211
    %v4272 = vunpack.c.l.b16 %v4212
    %v4273 = vunpack.c.l.b16 %v4213
    %v4274 = vunpack.c.l.b16 %v4214
    %v4275 = vunpack.c.l.b16 %v4215
    %v4276 = vunpack.c.l.b16 %v4216
    %v4277 = vunpack.c.l.b16 %v4217
    %v4278 = vunpack.c.l.b16 %v4218
    %v4279 = vunpack.c.l.b16 %v4219
    %v4280 = vunpack.c.l.b16 %v4220
    %v4281 = vunpack.c.l.b16 %v4221
    %v4282 = vunpack.c.l.b16 %v4222
    %v4283 = vunpack.c.l.b16 %v4223
    %v4284 = vunpack.c.l.b16 %v4224
    %v4285 = vunpack.c.l.b16 %v4225
    %v4286 = vunpack.c.l.b16 %v4226
    %v4287 = vunpack.c.l.b16 %v4227
    %v4288 = vunpack.c.l.b16 %v4228
    %v4289 = vunpack.c.l.b16 %v4229
    %v4290 = vunpack.c.l.b16 %v4230
    %v4291 = vunpack.c.l.b16 %v4231
    %v4292 = vunpack.c.l.b16 %v4232
    %v4293 = vunpack.c.l.b16 %v4233
    %v4294 = vunpack.c.l.b16 %v4234
    %v4295 = vunpack.c.l.b16 %v4235
    %v4296 = vunpack.c.l.b16 %v4236
    %v4297 = vunpack.c.l.b16 %v4237
    %v4298 = vunpack.c.l.b16 %v4238
    %v4299 = vunpack.c.l.b16 %v4239
    %v4300 = vunpack.c.l.b16 %v4240
    %v4301 = vpack.c.b16 %v4272, %v4271
    %v4302 = vpack.c.b16 %v4274, %v4273
    %v4303 = vpack.c.b16 %v4276, %v4275
    %v4304 = vpack.c.b16 %v4278, %v4277
    %v4305 = vpack.c.b16 %v4280, %v4279
    %v4306 = vpack.c.b16 %v4282, %v4281
    %v4307 = vpack.c.b16 %v4284, %v4283
    %v4308 = vpack.c.b16 %v4286, %v4285
    %v4309 = vpack.c.b16 %v4288, %v4287
    %v4310 = vpack.c.b16 %v4290, %v4289
    %v4311 = vpack.c.b16 %v4292, %v4291
    %v4312 = vpack.c.b16 %v4294, %v4293
    %v4313 = vpack.c.b16 %v4296, %v4295
    %v4314 = vpack.c.b16 %v4298, %v4297
    %v4315 = vpack.c.b16 %v4300, %v4299
    %v4332 = vsel %vm2695, %v4209, 0
    %4334 = vmatprep.subr.bf16.mxu0 0
    %4335 = vmatpush1.bf16.msra.mxu0 %v4308
    %4336 = vmatprep.subr.bf16.mxu0 0
    %4337 = vmatpush1.bf16.msra.mxu0 %v4307
    %4338 = vmatprep.subr.bf16.mxu0 0
    %4339 = vmatpush1.bf16.msra.mxu0 %v4306
    %4340 = vmatprep.subr.bf16.mxu0 0
    %4341 = vmatpush1.bf16.msra.mxu0 %v4305
    %4342 = vmatprep.subr.bf16.mxu0 0
    %4343 = vmatpush1.bf16.msra.mxu0 %v4304
    %4344 = vmatprep.subr.bf16.mxu0 0
    %4345 = vmatpush1.bf16.msra.mxu0 %v4303
    %4346 = vmatprep.subr.bf16.mxu0 0
    %4347 = vmatpush1.bf16.msra.mxu0 %v4302
    %4348 = vmatprep.subr.bf16.mxu0 0
    %4349 = vmatpush1.bf16.msra.mxu0 %v4301
    %4350 = vmatprep.subr.bf16.mxu0 0
    %4351 = vmatpush2.bf16.msra.mxu0 0
    %4352 = vmatprep.subr.bf16.mxu0 0
    %4353 = vmatpush2.bf16.msra.mxu0 %v4315
    %4354 = vmatprep.subr.bf16.mxu0 0
    %4355 = vmatpush2.bf16.msra.mxu0 %v4314
    %4356 = vmatprep.subr.bf16.mxu0 0
    %4357 = vmatpush2.bf16.msra.mxu0 %v4313
    %4358 = vmatprep.subr.bf16.mxu0 0
    %4359 = vmatpush2.bf16.msra.mxu0 %v4312
    %4360 = vmatprep.subr.bf16.mxu0 0
    %4361 = vmatpush2.bf16.msra.mxu0 %v4311
    %4362 = vmatprep.subr.bf16.mxu0 0
    %4363 = vmatpush2.bf16.msra.mxu0 %v4310
    %4364 = vmatprep.subr.bf16.mxu0 0
    %4365 = vmatpush2.bf16.msra.mxu0 %v4309
    %4366 = vmatprep.mubr.bf16.mxu0 %v4332
    %4367 = vmatmul.mubr.bf16.gmra.mxu0 %v4208
    %v4368 = vpop.f32.mrf.mxu0
    %v4369 = vadd.f32 0.0, %v4368
    %v4370 = vpop.f32.mrf.mxu0
    %v4371 = vpop.f32.mrf.mxu0
    %v4372 = vpop.f32.mrf.mxu0
    %4373 = vdwg.mxu0
    %v4374 = vadd.f32 %v4207, %v4369
    %v4375 = vpack.c.bf16 %v2538, %v2538
    %v4376 = vpack.c.bf16 %v2539, %v2539
    %s4377 = scalar_lea.vmem %s6, 1320
    %v4378 = vld [vmem:[%s4377] sm:$0xf]
    %v4379 = vld [vmem:[%s4377 + $0x4] sm:$0xf]
    %v4380 = vld [vmem:[%s4377 + $0x8] sm:$0xf]
    %v4381 = vld [vmem:[%s4377 + $0xc] sm:$0xf]
    %v4382 = vld [vmem:[%s4377 + $0x10] sm:$0xf]
    %v4383 = vld [vmem:[%s4377 + $0x14] sm:$0xf]
    %v4384 = vld [vmem:[%s4377 + $0x18] sm:$0xf]
    %v4385 = vld [vmem:[%s4377 + $0x1c] sm:$0xf]
    %v4386 = vld [vmem:[%s4377 + $0x20] sm:$0xf]
    %v4387 = vld [vmem:[%s4377 + $0x24] sm:$0xf]
    %v4388 = vld [vmem:[%s4377 + $0x28] sm:$0xf]
    %v4389 = vld [vmem:[%s4377 + $0x2c] sm:$0xf]
    %v4390 = vld [vmem:[%s4377 + $0x30] sm:$0xf]
    %v4391 = vld [vmem:[%s4377 + $0x34] sm:$0xf]
    %v4392 = vld [vmem:[%s4377 + $0x38] sm:$0xf]
    %v4393 = vld [vmem:[%s4377 + $0x3c] sm:$0xf]
    %v4394 = vld [vmem:[%s4377 + $0x40] sm:$0xf]
    %v4395 = vld [vmem:[%s4377 + $0x44] sm:$0xf]
    %v4396 = vld [vmem:[%s4377 + $0x48] sm:$0xf]
    %v4397 = vld [vmem:[%s4377 + $0x4c] sm:$0xf]
    %v4398 = vld [vmem:[%s4377 + $0x50] sm:$0xf]
    %v4399 = vld [vmem:[%s4377 + $0x54] sm:$0xf]
    %v4400 = vld [vmem:[%s4377 + $0x58] sm:$0xf]
    %v4401 = vld [vmem:[%s4377 + $0x5c] sm:$0xf]
    %v4402 = vld [vmem:[%s4377 + $0x60] sm:$0xf]
    %v4403 = vld [vmem:[%s4377 + $0x64] sm:$0xf]
    %v4404 = vld [vmem:[%s4377 + $0x68] sm:$0xf]
    %v4405 = vld [vmem:[%s4377 + $0x6c] sm:$0xf]
    %v4406 = vld [vmem:[%s4377 + $0x70] sm:$0xf]
    %v4407 = vld [vmem:[%s4377 + $0x74] sm:$0xf]
    %v4438 = vunpack.c.l.b16 %v4378
    %v4439 = vunpack.c.l.b16 %v4379
    %v4440 = vunpack.c.l.b16 %v4380
    %v4441 = vunpack.c.l.b16 %v4381
    %v4442 = vunpack.c.l.b16 %v4382
    %v4443 = vunpack.c.l.b16 %v4383
    %v4444 = vunpack.c.l.b16 %v4384
    %v4445 = vunpack.c.l.b16 %v4385
    %v4446 = vunpack.c.l.b16 %v4386
    %v4447 = vunpack.c.l.b16 %v4387
    %v4448 = vunpack.c.l.b16 %v4388
    %v4449 = vunpack.c.l.b16 %v4389
    %v4450 = vunpack.c.l.b16 %v4390
    %v4451 = vunpack.c.l.b16 %v4391
    %v4452 = vunpack.c.l.b16 %v4392
    %v4453 = vunpack.c.l.b16 %v4393
    %v4454 = vunpack.c.l.b16 %v4394
    %v4455 = vunpack.c.l.b16 %v4395
    %v4456 = vunpack.c.l.b16 %v4396
    %v4457 = vunpack.c.l.b16 %v4397
    %v4458 = vunpack.c.l.b16 %v4398
    %v4459 = vunpack.c.l.b16 %v4399
    %v4460 = vunpack.c.l.b16 %v4400
    %v4461 = vunpack.c.l.b16 %v4401
    %v4462 = vunpack.c.l.b16 %v4402
    %v4463 = vunpack.c.l.b16 %v4403
    %v4464 = vunpack.c.l.b16 %v4404
    %v4465 = vunpack.c.l.b16 %v4405
    %v4466 = vunpack.c.l.b16 %v4406
    %v4467 = vunpack.c.l.b16 %v4407
    %v4468 = vpack.c.b16 %v4439, %v4438
    %v4469 = vpack.c.b16 %v4441, %v4440
    %v4470 = vpack.c.b16 %v4443, %v4442
    %v4471 = vpack.c.b16 %v4445, %v4444
    %v4472 = vpack.c.b16 %v4447, %v4446
    %v4473 = vpack.c.b16 %v4449, %v4448
    %v4474 = vpack.c.b16 %v4451, %v4450
    %v4475 = vpack.c.b16 %v4453, %v4452
    %v4476 = vpack.c.b16 %v4455, %v4454
    %v4477 = vpack.c.b16 %v4457, %v4456
    %v4478 = vpack.c.b16 %v4459, %v4458
    %v4479 = vpack.c.b16 %v4461, %v4460
    %v4480 = vpack.c.b16 %v4463, %v4462
    %v4481 = vpack.c.b16 %v4465, %v4464
    %v4482 = vpack.c.b16 %v4467, %v4466
    %v4499 = vsel %vm2695, %v4376, 0
    %4501 = vmatprep.subr.bf16.mxu0 0
    %4502 = vmatpush1.bf16.msra.mxu0 %v4475
    %4503 = vmatprep.subr.bf16.mxu0 0
    %4504 = vmatpush1.bf16.msra.mxu0 %v4474
    %4505 = vmatprep.subr.bf16.mxu0 0
    %4506 = vmatpush1.bf16.msra.mxu0 %v4473
    %4507 = vmatprep.subr.bf16.mxu0 0
    %4508 = vmatpush1.bf16.msra.mxu0 %v4472
    %4509 = vmatprep.subr.bf16.mxu0 0
    %4510 = vmatpush1.bf16.msra.mxu0 %v4471
    %4511 = vmatprep.subr.bf16.mxu0 0
    %4512 = vmatpush1.bf16.msra.mxu0 %v4470
    %4513 = vmatprep.subr.bf16.mxu0 0
    %4514 = vmatpush1.bf16.msra.mxu0 %v4469
    %4515 = vmatprep.subr.bf16.mxu0 0
    %4516 = vmatpush1.bf16.msra.mxu0 %v4468
    %4517 = vmatprep.subr.bf16.mxu0 0
    %4518 = vmatpush2.bf16.msra.mxu0 0
    %4519 = vmatprep.subr.bf16.mxu0 0
    %4520 = vmatpush2.bf16.msra.mxu0 %v4482
    %4521 = vmatprep.subr.bf16.mxu0 0
    %4522 = vmatpush2.bf16.msra.mxu0 %v4481
    %4523 = vmatprep.subr.bf16.mxu0 0
    %4524 = vmatpush2.bf16.msra.mxu0 %v4480
    %4525 = vmatprep.subr.bf16.mxu0 0
    %4526 = vmatpush2.bf16.msra.mxu0 %v4479
    %4527 = vmatprep.subr.bf16.mxu0 0
    %4528 = vmatpush2.bf16.msra.mxu0 %v4478
    %4529 = vmatprep.subr.bf16.mxu0 0
    %4530 = vmatpush2.bf16.msra.mxu0 %v4477
    %4531 = vmatprep.subr.bf16.mxu0 0
    %4532 = vmatpush2.bf16.msra.mxu0 %v4476
    %4533 = vmatprep.mubr.bf16.mxu0 %v4499
    %4534 = vmatmul.mubr.bf16.gmra.mxu0 %v4375
    %v4535 = vpop.f32.mrf.mxu0
    %v4536 = vadd.f32 0.0, %v4535
    %v4537 = vpop.f32.mrf.mxu0
    %v4538 = vpop.f32.mrf.mxu0
    %v4539 = vpop.f32.mrf.mxu0
    %4540 = vdwg.mxu0
    %v4541 = vadd.f32 %v4374, %v4536
    %v4542 = vld [vmem:[%s7] sm:$0x1]
    %v4544 = vlaneseq
    %v4545 = vshrl.u32 %v4544, 7
    %v4546 = vsub.s32 0, %v4545
    %v4547 = vrot.slane %v4542, %v4546
    %v4549 = vadd.f32 %v4541, %v4547
    %4550 = vst [vmem:[%s8] sm:$0xff] %v4549
    // Predicated region
    $region38: #{easynet_forward.1} parent=1 // pred_check
      _
    $region39: #{easynet_forward.1} parent=1 // pred_check_branch
      %4552 = sbr.rel (0) target = $region41
    $region40: #{easynet_forward.1} parent=1 // pred_region
      _
    $region41: #{easynet_forward.1} parent=1 // pred_fallthru
      _
    // Predicated region
    $region42: #{easynet_forward.1} parent=1 // pred_check
      _
    $region43: #{easynet_forward.1} parent=1 // pred_check_branch
      %4554 = sbr.rel (0) target = $region45
    $region44: #{easynet_forward.1} parent=1 // pred_region
      _
    $region45: #{easynet_forward.1} parent=1 // pred_fallthru
      _
    %4555 = vsyncpa [#allocation3], 1

</llo_original>
